<compile_context>
chip_gen: v5e
topology: v5e:2x2
jax: 0.10.0
libtpu: 0.0.40
codegen_flags: <defaults>
</compile_context>

<pallas_src>
import functools

import jax
import jax.numpy as jnp
from jax import lax
from jax.experimental import pallas as pl
from jax.experimental.pallas import tpu as pltpu


def _vmem_limit(need_bytes):
    """Scoped-VMEM limit from the actual block sizes, with headroom, capped
    safely below v7x's 64 MiB physical VMEM (v5e/v6e have 128 MiB)."""
    return int(min(max(2 * need_bytes, 16 << 20), 56 << 20))


# ---------------------------------------------------------------------------
# Kernel A: row-tiled GEMM + fused LeakyReLU (conv1 im2col path, K = k*k*3).
# ---------------------------------------------------------------------------
def _gemm_act_kernel(x_ref, w_ref, o_ref, *, leaky_relu, slope=0.2):
    y = jnp.dot(x_ref[...], w_ref[...], preferred_element_type=jnp.float32)
    if leaky_relu:
        y = jnp.where(y >= 0.0, y, slope * y)
    o_ref[...] = y.astype(o_ref.dtype)


def _im2col(x_nhwc, k, stride, pad):
    """(N,H,W,C) -> (N, Ho*Wo, k*k*C), patch features ordered (kh, kw, c)."""
    N, H, W, C = x_nhwc.shape
    Ho = (H + 2 * pad - k) // stride + 1
    Wo = (W + 2 * pad - k) // stride + 1
    xp = jnp.pad(x_nhwc, ((0, 0), (pad, pad), (pad, pad), (0, 0)))
    cols = []
    for kh in range(k):
        for kw in range(k):
            cols.append(lax.slice(
                xp,
                (0, kh, kw, 0),
                (N, kh + (Ho - 1) * stride + 1, kw + (Wo - 1) * stride + 1, C),
                (1, stride, stride, 1)))                     # (N, Ho, Wo, C)
    patches = jnp.concatenate(cols, axis=-1)                 # (N, Ho, Wo, k*k*C)
    return patches.reshape(N, Ho * Wo, k * k * C), Ho, Wo


def conv_im2col_block(x_nhwc, w_oihw, *, stride, pad, leaky_relu,
                      out_dtype=jnp.bfloat16):
    """conv (small Cin) as im2col + tiled Pallas GEMM with fused LeakyReLU."""
    cout, cin, k, _ = w_oihw.shape
    patches, Ho, Wo = _im2col(x_nhwc.astype(jnp.bfloat16), k, stride, pad)
    N, M, K = patches.shape
    wmat = jnp.transpose(w_oihw, (2, 3, 1, 0)).reshape(K, cout).astype(jnp.bfloat16)

    tm = M
    for cand in (2048, 1024, 512, 256, 128):
        if M % cand == 0 and M > cand:
            tm = cand
            break

    obytes = jnp.dtype(out_dtype).itemsize
    need = 2 * (tm * K * 2) + 2 * (K * cout * 2) + 2 * (tm * cout * obytes)

    y = pl.pallas_call(
        functools.partial(_gemm_act_kernel, leaky_relu=leaky_relu),
        out_shape=jax.ShapeDtypeStruct((N, M, cout), out_dtype),
        grid_spec=pltpu.PrefetchScalarGridSpec(
            num_scalar_prefetch=0,
            grid=(N, M // tm),
            in_specs=[
                pl.BlockSpec((pl.Squeezed(), tm, K), lambda n, t: (n, t, 0)),
                # Whole weight matrix, constant index -> VMEM-resident.
                pl.BlockSpec((K, cout), lambda n, t: (0, 0)),
            ],
            out_specs=pl.BlockSpec((pl.Squeezed(), tm, cout),
                                   lambda n, t: (n, t, 0)),
        ),
        compiler_params=pltpu.CompilerParams(
            dimension_semantics=("parallel", "parallel"),
            vmem_limit_bytes=_vmem_limit(need),
        ),
    )(patches, wmat)
    return y.reshape(N, Ho, Wo, cout)


# ---------------------------------------------------------------------------
# Kernel B: phase-split conv (+ InstanceNorm + LeakyReLU), one (sample, phase)
# grid step, f32 VMEM accumulator across phases, fully VMEM-resident weights.
# ---------------------------------------------------------------------------
def _conv_phase_kernel(x_ref, w_ref, o_ref, *scratch, ks, Wq, Wo, Ho,
                       do_inorm, do_lrelu, multi_phase, eps=1e-5, slope=0.2):
    p = pl.program_id(1)
    last = pl.num_programs(1) - 1
    L = Ho * Wq                                     # rows of the over-wide slab
    TT = ks * ks
    wbase = p * TT                                  # this phase's taps (resident w)

    # All tap offsets are static -> static contiguous row slices + MXU GEMMs.
    update = None
    for qh in range(ks):
        for qw in range(ks):
            xs = x_ref[pl.ds(qh * Wq + qw, L), :]               # (L, Cin) bf16
            wt = w_ref[wbase + (qh * ks + qw)]                  # (Cin, Cp) bf16
            contrib = jnp.dot(xs, wt, preferred_element_type=jnp.float32)
            update = contrib if update is None else update + contrib

    if multi_phase:
        acc_ref = scratch[0]

        @pl.when(p == 0)
        def _first():                       # no zero-fill pass
            acc_ref[...] = update

        @pl.when(jnp.logical_and(p > 0, p < last))
        def _middle():
            acc_ref[...] += update

    @pl.when(p == last)
    def _finalize():
        y = (scratch[0][...] + update) if multi_phase else update   # (L, Cp) f32
        if do_inorm:
            # InstanceNorm2d(affine=False): per-channel stats over the valid
            # Ho*Wo positions only (mask the Wq-Wo overshoot columns).
            # Two-pass (mean, then centered variance) for better precision.
            row = lax.broadcasted_iota(jnp.int32, (L, 1), 0)
            valid = (row % Wq) < Wo
            inv_cnt = 1.0 / float(Ho * Wo)
            ym = jnp.where(valid, y, 0.0)
            mean = jnp.sum(ym, axis=0, keepdims=True) * inv_cnt
            d = jnp.where(valid, y - mean, 0.0)
            var = jnp.sum(d * d, axis=0, keepdims=True) * inv_cnt
            y = (y - mean) * lax.rsqrt(var + eps)
        if do_lrelu:
            y = jnp.where(y >= 0.0, y, slope * y)
        o_ref[...] = y.astype(o_ref.dtype)


def _phase_split(x_nhwc, k, stride, pad):
    """Space-to-depth phase split of the padded NHWC activation.

    Returns (N, s*s, R, C) with R = Hq*Wq + k/s - 1 (flattened hq*Wq + wq rows
    per phase plus trailing zero rows so every tap window is an in-bounds
    contiguous slice), plus the layer geometry.  For stride 1 this is just a
    pad + flatten (no transpose copy)."""
    N, H, W, C = x_nhwc.shape
    s, ks = stride, k // stride
    Hp, Wp = H + 2 * pad, W + 2 * pad
    assert k % s == 0 and Hp % s == 0 and Wp % s == 0, "unsupported geometry"
    Hq, Wq = Hp // s, Wp // s
    Ho, Wo = (Hp - k) // s + 1, (Wp - k) // s + 1
    xp = jnp.pad(x_nhwc, ((0, 0), (pad, pad), (pad, pad), (0, 0)))
    xs = xp.reshape(N, Hq, s, Wq, s, C).transpose(0, 2, 4, 1, 3, 5)
    xs = xs.reshape(N, s * s, Hq * Wq, C)
    xs = jnp.pad(xs, ((0, 0), (0, 0), (0, ks - 1), (0, 0)))
    # TODO(synk): this pad/transpose is materialized in HBM between layers;
    # writing the next layer's phase layout directly from the finalize step
    # would save ~2 activation passes per layer.
    return xs, (s, ks, Wq, Ho, Wo)


def _weight_taps(w_oihw, s, ks, cp):
    """(Cout,Cin,k,k) -> (s*s*ks*ks, Cin, Cp); Cout zero-padded to Cp."""
    cout, cin, k, _ = w_oihw.shape
    w = jnp.transpose(w_oihw, (2, 3, 1, 0))                 # (kh, kw, Cin, Cout)
    if cp > cout:
        w = jnp.pad(w, ((0, 0), (0, 0), (0, 0), (0, cp - cout)))
    taps = []
    for p in range(s * s):
        r, c = p // s, p % s
        for qh in range(ks):
            for qw in range(ks):
                taps.append(w[s * qh + r, s * qw + c])       # (Cin, Cp)
    return jnp.stack(taps, 0)                                # (s*s*ks*ks, Cin, Cp)


def conv_block(x_nhwc, w_oihw, *, stride, pad, instance_norm, leaky_relu,
               out_dtype=jnp.bfloat16):
    """Bias-free conv [+ InstanceNorm] [+ LeakyReLU(0.2)] as one Pallas call."""
    cout, cin, k, _ = w_oihw.shape
    cp = max(8, ((cout + 7) // 8) * 8)      # small rounding only (no 128x pad)
    xs, (s, ks, Wq, Ho, Wo) = _phase_split(x_nhwc.astype(jnp.bfloat16),
                                           k, stride, pad)
    wt = _weight_taps(w_oihw, s, ks, cp).astype(jnp.bfloat16)
    N, n_phases, R, _ = xs.shape
    L = Ho * Wq
    multi = n_phases > 1

    obytes = jnp.dtype(out_dtype).itemsize
    need = (2 * (R * cin * 2) +                 # phase plane, double-buffered
            2 * (wt.size * 2) +                 # resident weights (budget 2x)
            2 * (L * cp * obytes) +             # output block
            (L * cp * 4 if multi else 0))       # f32 accumulator

    kern = functools.partial(_conv_phase_kernel, ks=ks, Wq=Wq, Wo=Wo, Ho=Ho,
                             do_inorm=instance_norm, do_lrelu=leaky_relu,
                             multi_phase=multi)
    y = pl.pallas_call(
        kern,
        out_shape=jax.ShapeDtypeStruct((N, L, cp), out_dtype),
        grid_spec=pltpu.PrefetchScalarGridSpec(
            num_scalar_prefetch=0,
            grid=(N, n_phases),                 # (batch parallel, phase reduction)
            in_specs=[
                # One phase plane per step (streamed over the reduction axis).
                pl.BlockSpec((pl.Squeezed(), pl.Squeezed(), R, cin),
                             lambda n, p: (n, p, 0, 0)),
                # Entire tap-weight tensor, constant index -> fetched once,
                # VMEM-resident; kernel slices the current phase dynamically.
                pl.BlockSpec((n_phases * ks * ks, cin, cp),
                             lambda n, p: (0, 0, 0)),
            ],
            # Same output block across the phase axis -> VMEM-resident,
            # written once at the last phase.
            out_specs=pl.BlockSpec((pl.Squeezed(), L, cp),
                                   lambda n, p: (n, 0, 0)),
            scratch_shapes=([pltpu.VMEM((L, cp), jnp.float32)] if multi else []),
        ),
        compiler_params=pltpu.CompilerParams(
            dimension_semantics=("parallel", "arbitrary"),
            vmem_limit_bytes=_vmem_limit(need),
        ),
    )(xs, wt)
    # Drop the Wq-Wo overshoot columns and the Cout rounding; back to NHWC.
    return y.reshape(N, Ho, Wq, cp)[:, :, :Wo, :cout]


# ---------------------------------------------------------------------------
# Discriminator
# ---------------------------------------------------------------------------
def init_params(key, conv_dim=64):
    """Deterministic Kaiming-style init of all Conv2d weights (bias=False)."""
    def w(k, cout, cin, ksz):
        fan_in = cin * ksz * ksz
        std = (2.0 / fan_in) ** 0.5
        return std * jax.random.normal(k, (cout, cin, ksz, ksz), jnp.float32)

    ks = jax.random.split(key, 6)
    return {
        "conv1": w(ks[0], conv_dim, 3, 4),
        "conv2": w(ks[1], conv_dim * 2, conv_dim, 4),
        "conv3": w(ks[2], conv_dim * 4, conv_dim * 2, 4),
        "conv4": w(ks[3], conv_dim * 8, conv_dim * 4, 4),
        "conv5": w(ks[4], conv_dim * 8, conv_dim * 8, 4),  # defined, unused in forward
        "conv6": w(ks[5], 1, conv_dim * 8, 4),
    }


def discriminator_forward(x_nchw, params):
    x = jnp.transpose(x_nchw, (0, 2, 3, 1))            # NCHW -> NHWC
    # conv1: Cin=3 -> im2col GEMM path (K=48), fused LeakyReLU.
    out = conv_im2col_block(x, params["conv1"], stride=2, pad=1,
                            leaky_relu=True)
    out = conv_block(out, params["conv2"], stride=2, pad=1,
                     instance_norm=True, leaky_relu=True)
    out = conv_block(out, params["conv3"], stride=2, pad=1,
                     instance_norm=True, leaky_relu=True)
    out = conv_block(out, params["conv4"], stride=2, pad=1,
                     instance_norm=True, leaky_relu=True)
    # conv5 + BatchNorm is skipped, exactly as in the PyTorch forward().
    out = conv_block(out, params["conv6"], stride=1, pad=1,
                     instance_norm=False, leaky_relu=False,
                     out_dtype=jnp.float32)
    return jnp.transpose(out, (0, 3, 1, 2))            # NHWC -> NCHW


# ---------------------------------------------------------------------------
# Pure-JAX reference (XLA convs) with the same bf16-operand / f32-accumulate
# policy as the kernels, for a tight correctness check.
# ---------------------------------------------------------------------------
def _ref_forward(x, params):
    def conv(x, w, stride):
        return lax.conv_general_dilated(
            x.astype(jnp.bfloat16), w.astype(jnp.bfloat16),
            (stride, stride), ((1, 1), (1, 1)),
            dimension_numbers=("NCHW", "OIHW", "NCHW"),
            preferred_element_type=jnp.float32)

    def inorm(y):
        m = jnp.mean(y, axis=(2, 3), keepdims=True)
        v = jnp.mean((y - m) ** 2, axis=(2, 3), keepdims=True)
        return (y - m) * lax.rsqrt(v + 1e-5)

    def lrelu(y):
        return jnp.where(y >= 0, y, 0.2 * y)

    y = lrelu(conv(x, params["conv1"], 2))
    y = lrelu(inorm(conv(y, params["conv2"], 2)))
    y = lrelu(inorm(conv(y, params["conv3"], 2)))
    y = lrelu(inorm(conv(y, params["conv4"], 2)))
    return conv(y, params["conv6"], 1)


if __name__ == "__main__":
    key = jax.random.PRNGKey(0)
    kx, kp = jax.random.split(key)

    conv_dim = 8                                            # small analogue of 64
    x = jax.random.normal(kx, (2, 3, 32, 32), jnp.float32)  # small 256x256x3 analogue
    params = init_params(kp, conv_dim=conv_dim)

    out = jax.jit(discriminator_forward)(x, params)
    out = jax.block_until_ready(out)
    assert out.shape == (2, 1, 1, 1), out.shape

    ref = _ref_forward(x, params)
    max_err = float(jnp.max(jnp.abs(out - ref)))
    # bf16 MXU operands + f32 accumulation on both sides; only reduction order
    # differs between the kernel and XLA paths.
    assert jnp.allclose(out, ref, rtol=2e-2, atol=2e-2), max_err

    print("KERNEL_OK")
</pallas_src>

<mosaic_0001>
module attributes {stable_mosaic.version = 11 : i64} {
  func.func @_gemm_act_kernel(%arg0: i32, %arg1: i32, %arg2: memref<1x128x48xbf16, #tpu.memory_space<vmem>>, %arg3: memref<48x8xbf16, #tpu.memory_space<vmem>>, %arg4: memref<1x128x8xbf16, #tpu.memory_space<vmem>>) attributes {dimension_semantics = [#tpu.dimension_semantics<parallel>, #tpu.dimension_semantics<parallel>], iteration_bounds = array<i64: 2, 2>, scalar_prefetch = 0 : i64, scratch_operands = 0 : i64, tpu.core_type = #tpu.core_type<tc>, window_params = [{transform_indices = @transform_0, window_bounds = array<i64: 1, 128, 48>}, {pipeline_mode = #tpu.pipeline_mode<synchronous>, transform_indices = @transform_1, window_bounds = array<i64: 48, 8>}, {transform_indices = @transform_2, window_bounds = array<i64: 1, 128, 8>}]} {
    %c0 = arith.constant 0 : index
    %c0_0 = arith.constant 0 : index
    %c0_1 = arith.constant 0 : index
    %0 = vector.load %arg2[%c0, %c0_0, %c0_1] : memref<1x128x48xbf16, #tpu.memory_space<vmem>>, vector<1x128x48xbf16>
    %1 = vector.shape_cast %0 : vector<1x128x48xbf16> to vector<128x48xbf16>
    %c0_2 = arith.constant 0 : index
    %c0_3 = arith.constant 0 : index
    %2 = vector.load %arg3[%c0_2, %c0_3] : memref<48x8xbf16, #tpu.memory_space<vmem>>, vector<48x8xbf16>
    %cst = arith.constant dense<0.000000e+00> : vector<128x8xf32>
    %3 = tpu.matmul %1, %2, %cst {dimension_numbers = #tpu.dot_dimension_numbers<[1], [0], [0], [1], [0, 0, 1, 1], [], []>} : vector<128x48xbf16>, vector<48x8xbf16>, vector<128x8xf32> -> vector<128x8xf32>
    %cst_4 = arith.constant 0.000000e+00 : f32
    %4 = vector.broadcast %cst_4 : f32 to vector<128x8xf32>
    %5 = arith.cmpf oge, %3, %4 : vector<128x8xf32>
    %cst_5 = arith.constant 2.000000e-01 : f32
    %6 = vector.broadcast %cst_5 : f32 to vector<128x8xf32>
    %7 = arith.mulf %6, %3 : vector<128x8xf32>
    %8 = arith.select %5, %3, %7 : vector<128x8xi1>, vector<128x8xf32>
    %9 = arith.truncf %8 : vector<128x8xf32> to vector<128x8xbf16>
    %c0_6 = arith.constant 0 : index
    %c0_7 = arith.constant 0 : index
    %c0_8 = arith.constant 0 : index
    %10 = vector.load %arg4[%c0_6, %c0_7, %c0_8] : memref<1x128x8xbf16, #tpu.memory_space<vmem>>, vector<1x128x8xbf16>
    %11 = vector.shape_cast %10 : vector<1x128x8xbf16> to vector<128x8xbf16>
    %12 = vector.shape_cast %9 : vector<128x8xbf16> to vector<1x128x8xbf16>
    tpu.vector_store %arg4[%c0_6, %c0_7, %c0_8], %12 {strides = array<i32>} : memref<1x128x8xbf16, #tpu.memory_space<vmem>>, vector<1x128x8xbf16>,
    return
  }
  func.func @transform_0(%arg0: i32, %arg1: i32) -> (i32, i32, i32) {
    %c0_i32 = arith.constant 0 : i32
    %c0_i32_0 = arith.constant 0 : i32
    return %arg0, %arg1, %c0_i32 : i32, i32, i32
  }
  func.func @transform_1(%arg0: i32, %arg1: i32) -> (i32, i32) {
    %c0_i32 = arith.constant 0 : i32
    %c0_i32_0 = arith.constant 0 : i32
    %c0_i32_1 = arith.constant 0 : i32
    return %c0_i32, %c0_i32_0 : i32, i32
  }
  func.func @transform_2(%arg0: i32, %arg1: i32) -> (i32, i32, i32) {
    %c0_i32 = arith.constant 0 : i32
    %c0_i32_0 = arith.constant 0 : i32
    return %arg0, %arg1, %c0_i32 : i32, i32, i32
  }
}

module attributes {stable_mosaic.version = 11 : i64} {
  func.func @_conv_phase_kernel(%arg0: i32, %arg1: i32, %arg2: memref<1x1x82x8xbf16, #tpu.memory_space<vmem>>, %arg3: memref<16x8x16xbf16, #tpu.memory_space<vmem>>, %arg4: memref<1x72x16xbf16, #tpu.memory_space<vmem>>, %arg5: memref<72x16xf32, #tpu.memory_space<vmem>>) attributes {dimension_semantics = [#tpu.dimension_semantics<parallel>, #tpu.dimension_semantics<arbitrary>], iteration_bounds = array<i64: 2, 4>, scalar_prefetch = 0 : i64, scratch_operands = 1 : i64, tpu.core_type = #tpu.core_type<tc>, window_params = [{transform_indices = @transform_0, window_bounds = array<i64: 1, 1, 82, 8>}, {pipeline_mode = #tpu.pipeline_mode<synchronous>, transform_indices = @transform_1, window_bounds = array<i64: 16, 8, 16>}, {transform_indices = @transform_2, window_bounds = array<i64: 1, 72, 16>}]} {
    %c4_i32 = arith.constant 4 : i32
    %0 = arith.muli %arg1, %c4_i32 : i32
    %c0 = arith.constant 0 : index
    %c0_0 = arith.constant 0 : index
    %c0_1 = arith.constant 0 : index
    %c0_2 = arith.constant 0 : index
    %1 = vector.load %arg2[%c0, %c0_0, %c0_1, %c0_2] : memref<1x1x82x8xbf16, #tpu.memory_space<vmem>>, vector<1x1x72x8xbf16>
    %2 = vector.shape_cast %1 : vector<1x1x72x8xbf16> to vector<72x8xbf16>
    %c0_i32 = arith.constant 0 : i32
    %3 = arith.addi %0, %c0_i32 : i32
    %4 = arith.index_cast %3 : i32 to index
    %c0_3 = arith.constant 0 : index
    %c0_4 = arith.constant 0 : index
    %5 = vector.load %arg3[%4, %c0_3, %c0_4] : memref<16x8x16xbf16, #tpu.memory_space<vmem>>, vector<1x8x16xbf16>
    %6 = vector.shape_cast %5 : vector<1x8x16xbf16> to vector<8x16xbf16>
    %cst = arith.constant dense<0.000000e+00> : vector<72x16xf32>
    %7 = tpu.matmul %2, %6, %cst {dimension_numbers = #tpu.dot_dimension_numbers<[1], [0], [0], [1], [0, 0, 1, 1], [], []>} : vector<72x8xbf16>, vector<8x16xbf16>, vector<72x16xf32> -> vector<72x16xf32>
    %c0_5 = arith.constant 0 : index
    %c0_6 = arith.constant 0 : index
    %c1 = arith.constant 1 : index
    %c0_7 = arith.constant 0 : index
    %8 = vector.load %arg2[%c0_5, %c0_6, %c1, %c0_7] : memref<1x1x82x8xbf16, #tpu.memory_space<vmem>>, vector<1x1x72x8xbf16>
    %9 = vector.shape_cast %8 : vector<1x1x72x8xbf16> to vector<72x8xbf16>
    %c1_i32 = arith.constant 1 : i32
    %10 = arith.addi %0, %c1_i32 : i32
    %11 = arith.index_cast %10 : i32 to index
    %c0_8 = arith.constant 0 : index
    %c0_9 = arith.constant 0 : index
    %12 = vector.load %arg3[%11, %c0_8, %c0_9] : memref<16x8x16xbf16, #tpu.memory_space<vmem>>, vector<1x8x16xbf16>
    %13 = vector.shape_cast %12 : vector<1x8x16xbf16> to vector<8x16xbf16>
    %cst_10 = arith.constant dense<0.000000e+00> : vector<72x16xf32>
    %14 = tpu.matmul %9, %13, %cst_10 {dimension_numbers = #tpu.dot_dimension_numbers<[1], [0], [0], [1], [0, 0, 1, 1], [], []>} : vector<72x8xbf16>, vector<8x16xbf16>, vector<72x16xf32> -> vector<72x16xf32>
    %15 = arith.addf %7, %14 : vector<72x16xf32>
    %c0_11 = arith.constant 0 : index
    %c0_12 = arith.constant 0 : index
    %c9 = arith.constant 9 : index
    %c0_13 = arith.constant 0 : index
    %16 = vector.load %arg2[%c0_11, %c0_12, %c9, %c0_13] : memref<1x1x82x8xbf16, #tpu.memory_space<vmem>>, vector<1x1x72x8xbf16>
    %17 = vector.shape_cast %16 : vector<1x1x72x8xbf16> to vector<72x8xbf16>
    %c2_i32 = arith.constant 2 : i32
    %18 = arith.addi %0, %c2_i32 : i32
    %19 = arith.index_cast %18 : i32 to index
    %c0_14 = arith.constant 0 : index
    %c0_15 = arith.constant 0 : index
    %20 = vector.load %arg3[%19, %c0_14, %c0_15] : memref<16x8x16xbf16, #tpu.memory_space<vmem>>, vector<1x8x16xbf16>
    %21 = vector.shape_cast %20 : vector<1x8x16xbf16> to vector<8x16xbf16>
    %cst_16 = arith.constant dense<0.000000e+00> : vector<72x16xf32>
    %22 = tpu.matmul %17, %21, %cst_16 {dimension_numbers = #tpu.dot_dimension_numbers<[1], [0], [0], [1], [0, 0, 1, 1], [], []>} : vector<72x8xbf16>, vector<8x16xbf16>, vector<72x16xf32> -> vector<72x16xf32>
    %23 = arith.addf %15, %22 : vector<72x16xf32>
    %c0_17 = arith.constant 0 : index
    %c0_18 = arith.constant 0 : index
    %c10 = arith.constant 10 : index
    %c0_19 = arith.constant 0 : index
    %24 = vector.load %arg2[%c0_17, %c0_18, %c10, %c0_19] : memref<1x1x82x8xbf16, #tpu.memory_space<vmem>>, vector<1x1x72x8xbf16>
    %25 = vector.shape_cast %24 : vector<1x1x72x8xbf16> to vector<72x8xbf16>
    %c3_i32 = arith.constant 3 : i32
    %26 = arith.addi %0, %c3_i32 : i32
    %27 = arith.index_cast %26 : i32 to index
    %c0_20 = arith.constant 0 : index
    %c0_21 = arith.constant 0 : index
    %28 = vector.load %arg3[%27, %c0_20, %c0_21] : memref<16x8x16xbf16, #tpu.memory_space<vmem>>, vector<1x8x16xbf16>
    %29 = vector.shape_cast %28 : vector<1x8x16xbf16> to vector<8x16xbf16>
    %cst_22 = arith.constant dense<0.000000e+00> : vector<72x16xf32>
    %30 = tpu.matmul %25, %29, %cst_22 {dimension_numbers = #tpu.dot_dimension_numbers<[1], [0], [0], [1], [0, 0, 1, 1], [], []>} : vector<72x8xbf16>, vector<8x16xbf16>, vector<72x16xf32> -> vector<72x16xf32>
    %31 = arith.addf %23, %30 : vector<72x16xf32>
    %c0_i32_23 = arith.constant 0 : i32
    %32 = arith.cmpi eq, %arg1, %c0_i32_23 : i32
    %33 = arith.extui %32 : i1 to i32
    %c0_i32_24 = arith.constant 0 : i32
    %34 = arith.cmpi ne, %33, %c0_i32_24 : i32
    scf.if %34 {
      %c0_30 = arith.constant 0 : index
      %c0_31 = arith.constant 0 : index
      %43 = vector.load %arg5[%c0_30, %c0_31] : memref<72x16xf32, #tpu.memory_space<vmem>>, vector<72x16xf32>
      tpu.vector_store %arg5[%c0_30, %c0_31], %31 {strides = array<i32>} : memref<72x16xf32, #tpu.memory_space<vmem>>, vector<72x16xf32>,
    } else {
    }
    %c0_i32_25 = arith.constant 0 : i32
    %35 = arith.cmpi sgt, %arg1, %c0_i32_25 : i32
    %c3_i32_26 = arith.constant 3 : i32
    %36 = arith.cmpi slt, %arg1, %c3_i32_26 : i32
    %37 = arith.andi %35, %36 : i1
    %38 = arith.extui %37 : i1 to i32
    %c0_i32_27 = arith.constant 0 : i32
    %39 = arith.cmpi ne, %38, %c0_i32_27 : i32
    scf.if %39 {
      %c0_30 = arith.constant 0 : index
      %c0_31 = arith.constant 0 : index
      %43 = vector.load %arg5[%c0_30, %c0_31] : memref<72x16xf32, #tpu.memory_space<vmem>>, vector<72x16xf32>
      %44 = arith.addf %43, %31 : vector<72x16xf32>
      %c0_32 = arith.constant 0 : index
      %c0_33 = arith.constant 0 : index
      %45 = vector.load %arg5[%c0_32, %c0_33] : memref<72x16xf32, #tpu.memory_space<vmem>>, vector<72x16xf32>
      tpu.vector_store %arg5[%c0_32, %c0_33], %44 {strides = array<i32>} : memref<72x16xf32, #tpu.memory_space<vmem>>, vector<72x16xf32>,
    } else {
    }
    %c3_i32_28 = arith.constant 3 : i32
    %40 = arith.cmpi eq, %arg1, %c3_i32_28 : i32
    %41 = arith.extui %40 : i1 to i32
    %c0_i32_29 = arith.constant 0 : i32
    %42 = arith.cmpi ne, %41, %c0_i32_29 : i32
    scf.if %42 {
      %c0_30 = arith.constant 0 : index
      %c0_31 = arith.constant 0 : index
      %43 = vector.load %arg5[%c0_30, %c0_31] : memref<72x16xf32, #tpu.memory_space<vmem>>, vector<72x16xf32>
      %44 = arith.addf %43, %31 : vector<72x16xf32>
      %45 = tpu.iota {dimensions = array<i32: 0>} : vector<72x1xi32>
      %c9_i32 = arith.constant 9 : i32
      %c0_i32_32 = arith.constant 0 : i32
      %46 = arith.cmpi eq, %c9_i32, %c0_i32_32 : i32
      %c1_i32_33 = arith.constant 1 : i32
      %47 = arith.select %46, %c1_i32_33, %c9_i32 : i32
      %48 = vector.broadcast %47 : i32 to vector<72x1xi32>
      %49 = arith.remsi %45, %48 : vector<72x1xi32>
      %c0_i32_34 = arith.constant 0 : i32
      %50 = vector.broadcast %c0_i32_34 : i32 to vector<72x1xi32>
      %51 = arith.cmpi ne, %49, %50 : vector<72x1xi32>
      %c0_i32_35 = arith.constant 0 : i32
      %52 = vector.broadcast %c0_i32_35 : i32 to vector<72x1xi32>
      %53 = arith.cmpi slt, %49, %52 : vector<72x1xi32>
      %c0_i32_36 = arith.constant 0 : i32
      %54 = arith.cmpi slt, %47, %c0_i32_36 : i32
      %55 = vector.broadcast %54 : i1 to vector<72x1xi1>
      %56 = vector.broadcast %55 : vector<72x1xi1> to vector<72x1xi1>
      %57 = arith.xori %53, %56 : vector<72x1xi1>
      %58 = arith.andi %57, %51 : vector<72x1xi1>
      %59 = vector.broadcast %47 : i32 to vector<72x1xi32>
      %60 = arith.addi %49, %59 : vector<72x1xi32>
      %61 = arith.select %58, %60, %49 : vector<72x1xi1>, vector<72x1xi32>
      %c8_i32 = arith.constant 8 : i32
      %62 = vector.broadcast %c8_i32 : i32 to vector<72x1xi32>
      %63 = arith.cmpi slt, %61, %62 : vector<72x1xi32>
      %cst_37 = arith.constant 0.000000e+00 : f32
      %64 = vector.shape_cast %63 : vector<72x1xi1> to vector<72x1xi1>
      %65 = vector.broadcast %64 : vector<72x1xi1> to vector<72x16xi1>
      %66 = vector.broadcast %cst_37 : f32 to vector<72x16xf32>
      %67 = arith.select %65, %44, %66 : vector<72x16xi1>, vector<72x16xf32>
      %cst_38 = arith.constant dense<0.000000e+00> : vector<16xf32>
      %68 = vector.multi_reduction <add>, %67, %cst_38 [0] : vector<72x16xf32> to vector<16xf32>
      %69 = vector.shape_cast %68 : vector<16xf32> to vector<1x16xf32>
      %cst_39 = arith.constant 1.562500e-02 : f32
      %70 = vector.broadcast %cst_39 : f32 to vector<1x16xf32>
      %71 = arith.mulf %69, %70 : vector<1x16xf32>
      %72 = vector.broadcast %71 : vector<1x16xf32> to vector<72x16xf32>
      %73 = arith.subf %44, %72 : vector<72x16xf32>
      %cst_40 = arith.constant 0.000000e+00 : f32
      %74 = vector.shape_cast %63 : vector<72x1xi1> to vector<72x1xi1>
      %75 = vector.broadcast %74 : vector<72x1xi1> to vector<72x16xi1>
      %76 = vector.broadcast %cst_40 : f32 to vector<72x16xf32>
      %77 = arith.select %75, %73, %76 : vector<72x16xi1>, vector<72x16xf32>
      %78 = arith.mulf %77, %77 : vector<72x16xf32>
      %cst_41 = arith.constant dense<0.000000e+00> : vector<16xf32>
      %79 = vector.multi_reduction <add>, %78, %cst_41 [0] : vector<72x16xf32> to vector<16xf32>
      %80 = vector.shape_cast %79 : vector<16xf32> to vector<1x16xf32>
      %cst_42 = arith.constant 1.562500e-02 : f32
      %81 = vector.broadcast %cst_42 : f32 to vector<1x16xf32>
      %82 = arith.mulf %80, %81 : vector<1x16xf32>
      %83 = vector.broadcast %71 : vector<1x16xf32> to vector<72x16xf32>
      %84 = arith.subf %44, %83 : vector<72x16xf32>
      %cst_43 = arith.constant 9.99999974E-6 : f32
      %85 = vector.broadcast %cst_43 : f32 to vector<1x16xf32>
      %86 = arith.addf %82, %85 : vector<1x16xf32>
      %87 = math.rsqrt %86 : vector<1x16xf32>
      %88 = vector.broadcast %87 : vector<1x16xf32> to vector<72x16xf32>
      %89 = arith.mulf %84, %88 : vector<72x16xf32>
      %cst_44 = arith.constant 0.000000e+00 : f32
      %90 = vector.broadcast %cst_44 : f32 to vector<72x16xf32>
      %91 = arith.cmpf oge, %89, %90 : vector<72x16xf32>
      %cst_45 = arith.constant 2.000000e-01 : f32
      %92 = vector.broadcast %cst_45 : f32 to vector<72x16xf32>
      %93 = arith.mulf %92, %89 : vector<72x16xf32>
      %94 = arith.select %91, %89, %93 : vector<72x16xi1>, vector<72x16xf32>
      %95 = arith.truncf %94 : vector<72x16xf32> to vector<72x16xbf16>
      %c0_46 = arith.constant 0 : index
      %c0_47 = arith.constant 0 : index
      %c0_48 = arith.constant 0 : index
      %96 = vector.load %arg4[%c0_46, %c0_47, %c0_48] : memref<1x72x16xbf16, #tpu.memory_space<vmem>>, vector<1x72x16xbf16>
      %97 = vector.shape_cast %96 : vector<1x72x16xbf16> to vector<72x16xbf16>
      %98 = vector.shape_cast %95 : vector<72x16xbf16> to vector<1x72x16xbf16>
      tpu.vector_store %arg4[%c0_46, %c0_47, %c0_48], %98 {strides = array<i32>} : memref<1x72x16xbf16, #tpu.memory_space<vmem>>, vector<1x72x16xbf16>,
    } else {
    }
    return
  }
  func.func @transform_0(%arg0: i32, %arg1: i32) -> (i32, i32, i32, i32) {
    %c0_i32 = arith.constant 0 : i32
    %c0_i32_0 = arith.constant 0 : i32
    %c0_i32_1 = arith.constant 0 : i32
    return %arg0, %arg1, %c0_i32, %c0_i32_0 : i32, i32, i32, i32
  }
  func.func @transform_1(%arg0: i32, %arg1: i32) -> (i32, i32, i32) {
    %c0_i32 = arith.constant 0 : i32
    %c0_i32_0 = arith.constant 0 : i32
    %c0_i32_1 = arith.constant 0 : i32
    %c0_i32_2 = arith.constant 0 : i32
    return %c0_i32, %c0_i32_0, %c0_i32_1 : i32, i32, i32
  }
  func.func @transform_2(%arg0: i32, %arg1: i32) -> (i32, i32, i32) {
    %c0_i32 = arith.constant 0 : i32
    %c0_i32_0 = arith.constant 0 : i32
    %c0_i32_1 = arith.constant 0 : i32
    return %arg0, %c0_i32, %c0_i32_0 : i32, i32, i32
  }
}

module attributes {stable_mosaic.version = 11 : i64} {
  func.func @_conv_phase_kernel(%arg0: i32, %arg1: i32, %arg2: memref<1x1x26x16xbf16, #tpu.memory_space<vmem>>, %arg3: memref<16x16x32xbf16, #tpu.memory_space<vmem>>, %arg4: memref<1x20x32xbf16, #tpu.memory_space<vmem>>, %arg5: memref<20x32xf32, #tpu.memory_space<vmem>>) attributes {dimension_semantics = [#tpu.dimension_semantics<parallel>, #tpu.dimension_semantics<arbitrary>], iteration_bounds = array<i64: 2, 4>, scalar_prefetch = 0 : i64, scratch_operands = 1 : i64, tpu.core_type = #tpu.core_type<tc>, window_params = [{transform_indices = @transform_0, window_bounds = array<i64: 1, 1, 26, 16>}, {pipeline_mode = #tpu.pipeline_mode<synchronous>, transform_indices = @transform_1, window_bounds = array<i64: 16, 16, 32>}, {transform_indices = @transform_2, window_bounds = array<i64: 1, 20, 32>}]} {
    %c4_i32 = arith.constant 4 : i32
    %0 = arith.muli %arg1, %c4_i32 : i32
    %c0 = arith.constant 0 : index
    %c0_0 = arith.constant 0 : index
    %c0_1 = arith.constant 0 : index
    %c0_2 = arith.constant 0 : index
    %1 = vector.load %arg2[%c0, %c0_0, %c0_1, %c0_2] : memref<1x1x26x16xbf16, #tpu.memory_space<vmem>>, vector<1x1x20x16xbf16>
    %2 = vector.shape_cast %1 : vector<1x1x20x16xbf16> to vector<20x16xbf16>
    %c0_i32 = arith.constant 0 : i32
    %3 = arith.addi %0, %c0_i32 : i32
    %4 = arith.index_cast %3 : i32 to index
    %c0_3 = arith.constant 0 : index
    %c0_4 = arith.constant 0 : index
    %5 = vector.load %arg3[%4, %c0_3, %c0_4] : memref<16x16x32xbf16, #tpu.memory_space<vmem>>, vector<1x16x32xbf16>
    %6 = vector.shape_cast %5 : vector<1x16x32xbf16> to vector<16x32xbf16>
    %cst = arith.constant dense<0.000000e+00> : vector<20x32xf32>
    %7 = tpu.matmul %2, %6, %cst {dimension_numbers = #tpu.dot_dimension_numbers<[1], [0], [0], [1], [0, 0, 1, 1], [], []>} : vector<20x16xbf16>, vector<16x32xbf16>, vector<20x32xf32> -> vector<20x32xf32>
    %c0_5 = arith.constant 0 : index
    %c0_6 = arith.constant 0 : index
    %c1 = arith.constant 1 : index
    %c0_7 = arith.constant 0 : index
    %8 = vector.load %arg2[%c0_5, %c0_6, %c1, %c0_7] : memref<1x1x26x16xbf16, #tpu.memory_space<vmem>>, vector<1x1x20x16xbf16>
    %9 = vector.shape_cast %8 : vector<1x1x20x16xbf16> to vector<20x16xbf16>
    %c1_i32 = arith.constant 1 : i32
    %10 = arith.addi %0, %c1_i32 : i32
    %11 = arith.index_cast %10 : i32 to index
    %c0_8 = arith.constant 0 : index
    %c0_9 = arith.constant 0 : index
    %12 = vector.load %arg3[%11, %c0_8, %c0_9] : memref<16x16x32xbf16, #tpu.memory_space<vmem>>, vector<1x16x32xbf16>
    %13 = vector.shape_cast %12 : vector<1x16x32xbf16> to vector<16x32xbf16>
    %cst_10 = arith.constant dense<0.000000e+00> : vector<20x32xf32>
    %14 = tpu.matmul %9, %13, %cst_10 {dimension_numbers = #tpu.dot_dimension_numbers<[1], [0], [0], [1], [0, 0, 1, 1], [], []>} : vector<20x16xbf16>, vector<16x32xbf16>, vector<20x32xf32> -> vector<20x32xf32>
    %15 = arith.addf %7, %14 : vector<20x32xf32>
    %c0_11 = arith.constant 0 : index
    %c0_12 = arith.constant 0 : index
    %c5 = arith.constant 5 : index
    %c0_13 = arith.constant 0 : index
    %16 = vector.load %arg2[%c0_11, %c0_12, %c5, %c0_13] : memref<1x1x26x16xbf16, #tpu.memory_space<vmem>>, vector<1x1x20x16xbf16>
    %17 = vector.shape_cast %16 : vector<1x1x20x16xbf16> to vector<20x16xbf16>
    %c2_i32 = arith.constant 2 : i32
    %18 = arith.addi %0, %c2_i32 : i32
    %19 = arith.index_cast %18 : i32 to index
    %c0_14 = arith.constant 0 : index
    %c0_15 = arith.constant 0 : index
    %20 = vector.load %arg3[%19, %c0_14, %c0_15] : memref<16x16x32xbf16, #tpu.memory_space<vmem>>, vector<1x16x32xbf16>
    %21 = vector.shape_cast %20 : vector<1x16x32xbf16> to vector<16x32xbf16>
    %cst_16 = arith.constant dense<0.000000e+00> : vector<20x32xf32>
    %22 = tpu.matmul %17, %21, %cst_16 {dimension_numbers = #tpu.dot_dimension_numbers<[1], [0], [0], [1], [0, 0, 1, 1], [], []>} : vector<20x16xbf16>, vector<16x32xbf16>, vector<20x32xf32> -> vector<20x32xf32>
    %23 = arith.addf %15, %22 : vector<20x32xf32>
    %c0_17 = arith.constant 0 : index
    %c0_18 = arith.constant 0 : index
    %c6 = arith.constant 6 : index
    %c0_19 = arith.constant 0 : index
    %24 = vector.load %arg2[%c0_17, %c0_18, %c6, %c0_19] : memref<1x1x26x16xbf16, #tpu.memory_space<vmem>>, vector<1x1x20x16xbf16>
    %25 = vector.shape_cast %24 : vector<1x1x20x16xbf16> to vector<20x16xbf16>
    %c3_i32 = arith.constant 3 : i32
    %26 = arith.addi %0, %c3_i32 : i32
    %27 = arith.index_cast %26 : i32 to index
    %c0_20 = arith.constant 0 : index
    %c0_21 = arith.constant 0 : index
    %28 = vector.load %arg3[%27, %c0_20, %c0_21] : memref<16x16x32xbf16, #tpu.memory_space<vmem>>, vector<1x16x32xbf16>
    %29 = vector.shape_cast %28 : vector<1x16x32xbf16> to vector<16x32xbf16>
    %cst_22 = arith.constant dense<0.000000e+00> : vector<20x32xf32>
    %30 = tpu.matmul %25, %29, %cst_22 {dimension_numbers = #tpu.dot_dimension_numbers<[1], [0], [0], [1], [0, 0, 1, 1], [], []>} : vector<20x16xbf16>, vector<16x32xbf16>, vector<20x32xf32> -> vector<20x32xf32>
    %31 = arith.addf %23, %30 : vector<20x32xf32>
    %c0_i32_23 = arith.constant 0 : i32
    %32 = arith.cmpi eq, %arg1, %c0_i32_23 : i32
    %33 = arith.extui %32 : i1 to i32
    %c0_i32_24 = arith.constant 0 : i32
    %34 = arith.cmpi ne, %33, %c0_i32_24 : i32
    scf.if %34 {
      %c0_30 = arith.constant 0 : index
      %c0_31 = arith.constant 0 : index
      %43 = vector.load %arg5[%c0_30, %c0_31] : memref<20x32xf32, #tpu.memory_space<vmem>>, vector<20x32xf32>
      tpu.vector_store %arg5[%c0_30, %c0_31], %31 {strides = array<i32>} : memref<20x32xf32, #tpu.memory_space<vmem>>, vector<20x32xf32>,
    } else {
    }
    %c0_i32_25 = arith.constant 0 : i32
    %35 = arith.cmpi sgt, %arg1, %c0_i32_25 : i32
    %c3_i32_26 = arith.constant 3 : i32
    %36 = arith.cmpi slt, %arg1, %c3_i32_26 : i32
    %37 = arith.andi %35, %36 : i1
    %38 = arith.extui %37 : i1 to i32
    %c0_i32_27 = arith.constant 0 : i32
    %39 = arith.cmpi ne, %38, %c0_i32_27 : i32
    scf.if %39 {
      %c0_30 = arith.constant 0 : index
      %c0_31 = arith.constant 0 : index
      %43 = vector.load %arg5[%c0_30, %c0_31] : memref<20x32xf32, #tpu.memory_space<vmem>>, vector<20x32xf32>
      %44 = arith.addf %43, %31 : vector<20x32xf32>
      %c0_32 = arith.constant 0 : index
      %c0_33 = arith.constant 0 : index
      %45 = vector.load %arg5[%c0_32, %c0_33] : memref<20x32xf32, #tpu.memory_space<vmem>>, vector<20x32xf32>
      tpu.vector_store %arg5[%c0_32, %c0_33], %44 {strides = array<i32>} : memref<20x32xf32, #tpu.memory_space<vmem>>, vector<20x32xf32>,
    } else {
    }
    %c3_i32_28 = arith.constant 3 : i32
    %40 = arith.cmpi eq, %arg1, %c3_i32_28 : i32
    %41 = arith.extui %40 : i1 to i32
    %c0_i32_29 = arith.constant 0 : i32
    %42 = arith.cmpi ne, %41, %c0_i32_29 : i32
    scf.if %42 {
      %c0_30 = arith.constant 0 : index
      %c0_31 = arith.constant 0 : index
      %43 = vector.load %arg5[%c0_30, %c0_31] : memref<20x32xf32, #tpu.memory_space<vmem>>, vector<20x32xf32>
      %44 = arith.addf %43, %31 : vector<20x32xf32>
      %45 = tpu.iota {dimensions = array<i32: 0>} : vector<20x1xi32>
      %c5_i32 = arith.constant 5 : i32
      %c0_i32_32 = arith.constant 0 : i32
      %46 = arith.cmpi eq, %c5_i32, %c0_i32_32 : i32
      %c1_i32_33 = arith.constant 1 : i32
      %47 = arith.select %46, %c1_i32_33, %c5_i32 : i32
      %48 = vector.broadcast %47 : i32 to vector<20x1xi32>
      %49 = arith.remsi %45, %48 : vector<20x1xi32>
      %c0_i32_34 = arith.constant 0 : i32
      %50 = vector.broadcast %c0_i32_34 : i32 to vector<20x1xi32>
      %51 = arith.cmpi ne, %49, %50 : vector<20x1xi32>
      %c0_i32_35 = arith.constant 0 : i32
      %52 = vector.broadcast %c0_i32_35 : i32 to vector<20x1xi32>
      %53 = arith.cmpi slt, %49, %52 : vector<20x1xi32>
      %c0_i32_36 = arith.constant 0 : i32
      %54 = arith.cmpi slt, %47, %c0_i32_36 : i32
      %55 = vector.broadcast %54 : i1 to vector<20x1xi1>
      %56 = vector.broadcast %55 : vector<20x1xi1> to vector<20x1xi1>
      %57 = arith.xori %53, %56 : vector<20x1xi1>
      %58 = arith.andi %57, %51 : vector<20x1xi1>
      %59 = vector.broadcast %47 : i32 to vector<20x1xi32>
      %60 = arith.addi %49, %59 : vector<20x1xi32>
      %61 = arith.select %58, %60, %49 : vector<20x1xi1>, vector<20x1xi32>
      %c4_i32_37 = arith.constant 4 : i32
      %62 = vector.broadcast %c4_i32_37 : i32 to vector<20x1xi32>
      %63 = arith.cmpi slt, %61, %62 : vector<20x1xi32>
      %cst_38 = arith.constant 0.000000e+00 : f32
      %64 = vector.shape_cast %63 : vector<20x1xi1> to vector<20x1xi1>
      %65 = vector.broadcast %64 : vector<20x1xi1> to vector<20x32xi1>
      %66 = vector.broadcast %cst_38 : f32 to vector<20x32xf32>
      %67 = arith.select %65, %44, %66 : vector<20x32xi1>, vector<20x32xf32>
      %cst_39 = arith.constant dense<0.000000e+00> : vector<32xf32>
      %68 = vector.multi_reduction <add>, %67, %cst_39 [0] : vector<20x32xf32> to vector<32xf32>
      %69 = vector.shape_cast %68 : vector<32xf32> to vector<1x32xf32>
      %cst_40 = arith.constant 6.250000e-02 : f32
      %70 = vector.broadcast %cst_40 : f32 to vector<1x32xf32>
      %71 = arith.mulf %69, %70 : vector<1x32xf32>
      %72 = vector.broadcast %71 : vector<1x32xf32> to vector<20x32xf32>
      %73 = arith.subf %44, %72 : vector<20x32xf32>
      %cst_41 = arith.constant 0.000000e+00 : f32
      %74 = vector.shape_cast %63 : vector<20x1xi1> to vector<20x1xi1>
      %75 = vector.broadcast %74 : vector<20x1xi1> to vector<20x32xi1>
      %76 = vector.broadcast %cst_41 : f32 to vector<20x32xf32>
      %77 = arith.select %75, %73, %76 : vector<20x32xi1>, vector<20x32xf32>
      %78 = arith.mulf %77, %77 : vector<20x32xf32>
      %cst_42 = arith.constant dense<0.000000e+00> : vector<32xf32>
      %79 = vector.multi_reduction <add>, %78, %cst_42 [0] : vector<20x32xf32> to vector<32xf32>
      %80 = vector.shape_cast %79 : vector<32xf32> to vector<1x32xf32>
      %cst_43 = arith.constant 6.250000e-02 : f32
      %81 = vector.broadcast %cst_43 : f32 to vector<1x32xf32>
      %82 = arith.mulf %80, %81 : vector<1x32xf32>
      %83 = vector.broadcast %71 : vector<1x32xf32> to vector<20x32xf32>
      %84 = arith.subf %44, %83 : vector<20x32xf32>
      %cst_44 = arith.constant 9.99999974E-6 : f32
      %85 = vector.broadcast %cst_44 : f32 to vector<1x32xf32>
      %86 = arith.addf %82, %85 : vector<1x32xf32>
      %87 = math.rsqrt %86 : vector<1x32xf32>
      %88 = vector.broadcast %87 : vector<1x32xf32> to vector<20x32xf32>
      %89 = arith.mulf %84, %88 : vector<20x32xf32>
      %cst_45 = arith.constant 0.000000e+00 : f32
      %90 = vector.broadcast %cst_45 : f32 to vector<20x32xf32>
      %91 = arith.cmpf oge, %89, %90 : vector<20x32xf32>
      %cst_46 = arith.constant 2.000000e-01 : f32
      %92 = vector.broadcast %cst_46 : f32 to vector<20x32xf32>
      %93 = arith.mulf %92, %89 : vector<20x32xf32>
      %94 = arith.select %91, %89, %93 : vector<20x32xi1>, vector<20x32xf32>
      %95 = arith.truncf %94 : vector<20x32xf32> to vector<20x32xbf16>
      %c0_47 = arith.constant 0 : index
      %c0_48 = arith.constant 0 : index
      %c0_49 = arith.constant 0 : index
      %96 = vector.load %arg4[%c0_47, %c0_48, %c0_49] : memref<1x20x32xbf16, #tpu.memory_space<vmem>>, vector<1x20x32xbf16>
      %97 = vector.shape_cast %96 : vector<1x20x32xbf16> to vector<20x32xbf16>
      %98 = vector.shape_cast %95 : vector<20x32xbf16> to vector<1x20x32xbf16>
      tpu.vector_store %arg4[%c0_47, %c0_48, %c0_49], %98 {strides = array<i32>} : memref<1x20x32xbf16, #tpu.memory_space<vmem>>, vector<1x20x32xbf16>,
    } else {
    }
    return
  }
  func.func @transform_0(%arg0: i32, %arg1: i32) -> (i32, i32, i32, i32) {
    %c0_i32 = arith.constant 0 : i32
    %c0_i32_0 = arith.constant 0 : i32
    %c0_i32_1 = arith.constant 0 : i32
    return %arg0, %arg1, %c0_i32, %c0_i32_0 : i32, i32, i32, i32
  }
  func.func @transform_1(%arg0: i32, %arg1: i32) -> (i32, i32, i32) {
    %c0_i32 = arith.constant 0 : i32
    %c0_i32_0 = arith.constant 0 : i32
    %c0_i32_1 = arith.constant 0 : i32
    %c0_i32_2 = arith.constant 0 : i32
    return %c0_i32, %c0_i32_0, %c0_i32_1 : i32, i32, i32
  }
  func.func @transform_2(%arg0: i32, %arg1: i32) -> (i32, i32, i32) {
    %c0_i32 = arith.constant 0 : i32
    %c0_i32_0 = arith.constant 0 : i32
    %c0_i32_1 = arith.constant 0 : i32
    return %arg0, %c0_i32, %c0_i32_0 : i32, i32, i32
  }
}

module attributes {stable_mosaic.version = 11 : i64} {
  func.func @_conv_phase_kernel(%arg0: i32, %arg1: i32, %arg2: memref<1x1x10x32xbf16, #tpu.memory_space<vmem>>, %arg3: memref<16x32x64xbf16, #tpu.memory_space<vmem>>, %arg4: memref<1x6x64xbf16, #tpu.memory_space<vmem>>, %arg5: memref<6x64xf32, #tpu.memory_space<vmem>>) attributes {dimension_semantics = [#tpu.dimension_semantics<parallel>, #tpu.dimension_semantics<arbitrary>], iteration_bounds = array<i64: 2, 4>, scalar_prefetch = 0 : i64, scratch_operands = 1 : i64, tpu.core_type = #tpu.core_type<tc>, window_params = [{transform_indices = @transform_0, window_bounds = array<i64: 1, 1, 10, 32>}, {pipeline_mode = #tpu.pipeline_mode<synchronous>, transform_indices = @transform_1, window_bounds = array<i64: 16, 32, 64>}, {transform_indices = @transform_2, window_bounds = array<i64: 1, 6, 64>}]} {
    %c4_i32 = arith.constant 4 : i32
    %0 = arith.muli %arg1, %c4_i32 : i32
    %c0 = arith.constant 0 : index
    %c0_0 = arith.constant 0 : index
    %c0_1 = arith.constant 0 : index
    %c0_2 = arith.constant 0 : index
    %1 = vector.load %arg2[%c0, %c0_0, %c0_1, %c0_2] : memref<1x1x10x32xbf16, #tpu.memory_space<vmem>>, vector<1x1x6x32xbf16>
    %2 = vector.shape_cast %1 : vector<1x1x6x32xbf16> to vector<6x32xbf16>
    %c0_i32 = arith.constant 0 : i32
    %3 = arith.addi %0, %c0_i32 : i32
    %4 = arith.index_cast %3 : i32 to index
    %c0_3 = arith.constant 0 : index
    %c0_4 = arith.constant 0 : index
    %5 = vector.load %arg3[%4, %c0_3, %c0_4] : memref<16x32x64xbf16, #tpu.memory_space<vmem>>, vector<1x32x64xbf16>
    %6 = vector.shape_cast %5 : vector<1x32x64xbf16> to vector<32x64xbf16>
    %cst = arith.constant dense<0.000000e+00> : vector<6x64xf32>
    %7 = tpu.matmul %2, %6, %cst {dimension_numbers = #tpu.dot_dimension_numbers<[1], [0], [0], [1], [0, 0, 1, 1], [], []>} : vector<6x32xbf16>, vector<32x64xbf16>, vector<6x64xf32> -> vector<6x64xf32>
    %c0_5 = arith.constant 0 : index
    %c0_6 = arith.constant 0 : index
    %c1 = arith.constant 1 : index
    %c0_7 = arith.constant 0 : index
    %8 = vector.load %arg2[%c0_5, %c0_6, %c1, %c0_7] : memref<1x1x10x32xbf16, #tpu.memory_space<vmem>>, vector<1x1x6x32xbf16>
    %9 = vector.shape_cast %8 : vector<1x1x6x32xbf16> to vector<6x32xbf16>
    %c1_i32 = arith.constant 1 : i32
    %10 = arith.addi %0, %c1_i32 : i32
    %11 = arith.index_cast %10 : i32 to index
    %c0_8 = arith.constant 0 : index
    %c0_9 = arith.constant 0 : index
    %12 = vector.load %arg3[%11, %c0_8, %c0_9] : memref<16x32x64xbf16, #tpu.memory_space<vmem>>, vector<1x32x64xbf16>
    %13 = vector.shape_cast %12 : vector<1x32x64xbf16> to vector<32x64xbf16>
    %cst_10 = arith.constant dense<0.000000e+00> : vector<6x64xf32>
    %14 = tpu.matmul %9, %13, %cst_10 {dimension_numbers = #tpu.dot_dimension_numbers<[1], [0], [0], [1], [0, 0, 1, 1], [], []>} : vector<6x32xbf16>, vector<32x64xbf16>, vector<6x64xf32> -> vector<6x64xf32>
    %15 = arith.addf %7, %14 : vector<6x64xf32>
    %c0_11 = arith.constant 0 : index
    %c0_12 = arith.constant 0 : index
    %c3 = arith.constant 3 : index
    %c0_13 = arith.constant 0 : index
    %16 = vector.load %arg2[%c0_11, %c0_12, %c3, %c0_13] : memref<1x1x10x32xbf16, #tpu.memory_space<vmem>>, vector<1x1x6x32xbf16>
    %17 = vector.shape_cast %16 : vector<1x1x6x32xbf16> to vector<6x32xbf16>
    %c2_i32 = arith.constant 2 : i32
    %18 = arith.addi %0, %c2_i32 : i32
    %19 = arith.index_cast %18 : i32 to index
    %c0_14 = arith.constant 0 : index
    %c0_15 = arith.constant 0 : index
    %20 = vector.load %arg3[%19, %c0_14, %c0_15] : memref<16x32x64xbf16, #tpu.memory_space<vmem>>, vector<1x32x64xbf16>
    %21 = vector.shape_cast %20 : vector<1x32x64xbf16> to vector<32x64xbf16>
    %cst_16 = arith.constant dense<0.000000e+00> : vector<6x64xf32>
    %22 = tpu.matmul %17, %21, %cst_16 {dimension_numbers = #tpu.dot_dimension_numbers<[1], [0], [0], [1], [0, 0, 1, 1], [], []>} : vector<6x32xbf16>, vector<32x64xbf16>, vector<6x64xf32> -> vector<6x64xf32>
    %23 = arith.addf %15, %22 : vector<6x64xf32>
    %c0_17 = arith.constant 0 : index
    %c0_18 = arith.constant 0 : index
    %c4 = arith.constant 4 : index
    %c0_19 = arith.constant 0 : index
    %24 = vector.load %arg2[%c0_17, %c0_18, %c4, %c0_19] : memref<1x1x10x32xbf16, #tpu.memory_space<vmem>>, vector<1x1x6x32xbf16>
    %25 = vector.shape_cast %24 : vector<1x1x6x32xbf16> to vector<6x32xbf16>
    %c3_i32 = arith.constant 3 : i32
    %26 = arith.addi %0, %c3_i32 : i32
    %27 = arith.index_cast %26 : i32 to index
    %c0_20 = arith.constant 0 : index
    %c0_21 = arith.constant 0 : index
    %28 = vector.load %arg3[%27, %c0_20, %c0_21] : memref<16x32x64xbf16, #tpu.memory_space<vmem>>, vector<1x32x64xbf16>
    %29 = vector.shape_cast %28 : vector<1x32x64xbf16> to vector<32x64xbf16>
    %cst_22 = arith.constant dense<0.000000e+00> : vector<6x64xf32>
    %30 = tpu.matmul %25, %29, %cst_22 {dimension_numbers = #tpu.dot_dimension_numbers<[1], [0], [0], [1], [0, 0, 1, 1], [], []>} : vector<6x32xbf16>, vector<32x64xbf16>, vector<6x64xf32> -> vector<6x64xf32>
    %31 = arith.addf %23, %30 : vector<6x64xf32>
    %c0_i32_23 = arith.constant 0 : i32
    %32 = arith.cmpi eq, %arg1, %c0_i32_23 : i32
    %33 = arith.extui %32 : i1 to i32
    %c0_i32_24 = arith.constant 0 : i32
    %34 = arith.cmpi ne, %33, %c0_i32_24 : i32
    scf.if %34 {
      %c0_30 = arith.constant 0 : index
      %c0_31 = arith.constant 0 : index
      %43 = vector.load %arg5[%c0_30, %c0_31] : memref<6x64xf32, #tpu.memory_space<vmem>>, vector<6x64xf32>
      tpu.vector_store %arg5[%c0_30, %c0_31], %31 {strides = array<i32>} : memref<6x64xf32, #tpu.memory_space<vmem>>, vector<6x64xf32>,
    } else {
    }
    %c0_i32_25 = arith.constant 0 : i32
    %35 = arith.cmpi sgt, %arg1, %c0_i32_25 : i32
    %c3_i32_26 = arith.constant 3 : i32
    %36 = arith.cmpi slt, %arg1, %c3_i32_26 : i32
    %37 = arith.andi %35, %36 : i1
    %38 = arith.extui %37 : i1 to i32
    %c0_i32_27 = arith.constant 0 : i32
    %39 = arith.cmpi ne, %38, %c0_i32_27 : i32
    scf.if %39 {
      %c0_30 = arith.constant 0 : index
      %c0_31 = arith.constant 0 : index
      %43 = vector.load %arg5[%c0_30, %c0_31] : memref<6x64xf32, #tpu.memory_space<vmem>>, vector<6x64xf32>
      %44 = arith.addf %43, %31 : vector<6x64xf32>
      %c0_32 = arith.constant 0 : index
      %c0_33 = arith.constant 0 : index
      %45 = vector.load %arg5[%c0_32, %c0_33] : memref<6x64xf32, #tpu.memory_space<vmem>>, vector<6x64xf32>
      tpu.vector_store %arg5[%c0_32, %c0_33], %44 {strides = array<i32>} : memref<6x64xf32, #tpu.memory_space<vmem>>, vector<6x64xf32>,
    } else {
    }
    %c3_i32_28 = arith.constant 3 : i32
    %40 = arith.cmpi eq, %arg1, %c3_i32_28 : i32
    %41 = arith.extui %40 : i1 to i32
    %c0_i32_29 = arith.constant 0 : i32
    %42 = arith.cmpi ne, %41, %c0_i32_29 : i32
    scf.if %42 {
      %c0_30 = arith.constant 0 : index
      %c0_31 = arith.constant 0 : index
      %43 = vector.load %arg5[%c0_30, %c0_31] : memref<6x64xf32, #tpu.memory_space<vmem>>, vector<6x64xf32>
      %44 = arith.addf %43, %31 : vector<6x64xf32>
      %45 = tpu.iota {dimensions = array<i32: 0>} : vector<6x1xi32>
      %c3_i32_32 = arith.constant 3 : i32
      %c0_i32_33 = arith.constant 0 : i32
      %46 = arith.cmpi eq, %c3_i32_32, %c0_i32_33 : i32
      %c1_i32_34 = arith.constant 1 : i32
      %47 = arith.select %46, %c1_i32_34, %c3_i32_32 : i32
      %48 = vector.broadcast %47 : i32 to vector<6x1xi32>
      %49 = arith.remsi %45, %48 : vector<6x1xi32>
      %c0_i32_35 = arith.constant 0 : i32
      %50 = vector.broadcast %c0_i32_35 : i32 to vector<6x1xi32>
      %51 = arith.cmpi ne, %49, %50 : vector<6x1xi32>
      %c0_i32_36 = arith.constant 0 : i32
      %52 = vector.broadcast %c0_i32_36 : i32 to vector<6x1xi32>
      %53 = arith.cmpi slt, %49, %52 : vector<6x1xi32>
      %c0_i32_37 = arith.constant 0 : i32
      %54 = arith.cmpi slt, %47, %c0_i32_37 : i32
      %55 = vector.broadcast %54 : i1 to vector<6x1xi1>
      %56 = vector.broadcast %55 : vector<6x1xi1> to vector<6x1xi1>
      %57 = arith.xori %53, %56 : vector<6x1xi1>
      %58 = arith.andi %57, %51 : vector<6x1xi1>
      %59 = vector.broadcast %47 : i32 to vector<6x1xi32>
      %60 = arith.addi %49, %59 : vector<6x1xi32>
      %61 = arith.select %58, %60, %49 : vector<6x1xi1>, vector<6x1xi32>
      %c2_i32_38 = arith.constant 2 : i32
      %62 = vector.broadcast %c2_i32_38 : i32 to vector<6x1xi32>
      %63 = arith.cmpi slt, %61, %62 : vector<6x1xi32>
      %cst_39 = arith.constant 0.000000e+00 : f32
      %64 = vector.shape_cast %63 : vector<6x1xi1> to vector<6x1xi1>
      %65 = vector.broadcast %64 : vector<6x1xi1> to vector<6x64xi1>
      %66 = vector.broadcast %cst_39 : f32 to vector<6x64xf32>
      %67 = arith.select %65, %44, %66 : vector<6x64xi1>, vector<6x64xf32>
      %cst_40 = arith.constant dense<0.000000e+00> : vector<64xf32>
      %68 = vector.multi_reduction <add>, %67, %cst_40 [0] : vector<6x64xf32> to vector<64xf32>
      %69 = vector.shape_cast %68 : vector<64xf32> to vector<1x64xf32>
      %cst_41 = arith.constant 2.500000e-01 : f32
      %70 = vector.broadcast %cst_41 : f32 to vector<1x64xf32>
      %71 = arith.mulf %69, %70 : vector<1x64xf32>
      %72 = vector.broadcast %71 : vector<1x64xf32> to vector<6x64xf32>
      %73 = arith.subf %44, %72 : vector<6x64xf32>
      %cst_42 = arith.constant 0.000000e+00 : f32
      %74 = vector.shape_cast %63 : vector<6x1xi1> to vector<6x1xi1>
      %75 = vector.broadcast %74 : vector<6x1xi1> to vector<6x64xi1>
      %76 = vector.broadcast %cst_42 : f32 to vector<6x64xf32>
      %77 = arith.select %75, %73, %76 : vector<6x64xi1>, vector<6x64xf32>
      %78 = arith.mulf %77, %77 : vector<6x64xf32>
      %cst_43 = arith.constant dense<0.000000e+00> : vector<64xf32>
      %79 = vector.multi_reduction <add>, %78, %cst_43 [0] : vector<6x64xf32> to vector<64xf32>
      %80 = vector.shape_cast %79 : vector<64xf32> to vector<1x64xf32>
      %cst_44 = arith.constant 2.500000e-01 : f32
      %81 = vector.broadcast %cst_44 : f32 to vector<1x64xf32>
      %82 = arith.mulf %80, %81 : vector<1x64xf32>
      %83 = vector.broadcast %71 : vector<1x64xf32> to vector<6x64xf32>
      %84 = arith.subf %44, %83 : vector<6x64xf32>
      %cst_45 = arith.constant 9.99999974E-6 : f32
      %85 = vector.broadcast %cst_45 : f32 to vector<1x64xf32>
      %86 = arith.addf %82, %85 : vector<1x64xf32>
      %87 = math.rsqrt %86 : vector<1x64xf32>
      %88 = vector.broadcast %87 : vector<1x64xf32> to vector<6x64xf32>
      %89 = arith.mulf %84, %88 : vector<6x64xf32>
      %cst_46 = arith.constant 0.000000e+00 : f32
      %90 = vector.broadcast %cst_46 : f32 to vector<6x64xf32>
      %91 = arith.cmpf oge, %89, %90 : vector<6x64xf32>
      %cst_47 = arith.constant 2.000000e-01 : f32
      %92 = vector.broadcast %cst_47 : f32 to vector<6x64xf32>
      %93 = arith.mulf %92, %89 : vector<6x64xf32>
      %94 = arith.select %91, %89, %93 : vector<6x64xi1>, vector<6x64xf32>
      %95 = arith.truncf %94 : vector<6x64xf32> to vector<6x64xbf16>
      %c0_48 = arith.constant 0 : index
      %c0_49 = arith.constant 0 : index
      %c0_50 = arith.constant 0 : index
      %96 = vector.load %arg4[%c0_48, %c0_49, %c0_50] : memref<1x6x64xbf16, #tpu.memory_space<vmem>>, vector<1x6x64xbf16>
      %97 = vector.shape_cast %96 : vector<1x6x64xbf16> to vector<6x64xbf16>
      %98 = vector.shape_cast %95 : vector<6x64xbf16> to vector<1x6x64xbf16>
      tpu.vector_store %arg4[%c0_48, %c0_49, %c0_50], %98 {strides = array<i32>} : memref<1x6x64xbf16, #tpu.memory_space<vmem>>, vector<1x6x64xbf16>,
    } else {
    }
    return
  }
  func.func @transform_0(%arg0: i32, %arg1: i32) -> (i32, i32, i32, i32) {
    %c0_i32 = arith.constant 0 : i32
    %c0_i32_0 = arith.constant 0 : i32
    %c0_i32_1 = arith.constant 0 : i32
    return %arg0, %arg1, %c0_i32, %c0_i32_0 : i32, i32, i32, i32
  }
  func.func @transform_1(%arg0: i32, %arg1: i32) -> (i32, i32, i32) {
    %c0_i32 = arith.constant 0 : i32
    %c0_i32_0 = arith.constant 0 : i32
    %c0_i32_1 = arith.constant 0 : i32
    %c0_i32_2 = arith.constant 0 : i32
    return %c0_i32, %c0_i32_0, %c0_i32_1 : i32, i32, i32
  }
  func.func @transform_2(%arg0: i32, %arg1: i32) -> (i32, i32, i32) {
    %c0_i32 = arith.constant 0 : i32
    %c0_i32_0 = arith.constant 0 : i32
    %c0_i32_1 = arith.constant 0 : i32
    return %arg0, %c0_i32, %c0_i32_0 : i32, i32, i32
  }
}

module attributes {stable_mosaic.version = 11 : i64} {
  func.func @_conv_phase_kernel(%arg0: i32, %arg1: i32, %arg2: memref<1x1x19x64xbf16, #tpu.memory_space<vmem>>, %arg3: memref<16x64x8xbf16, #tpu.memory_space<vmem>>, %arg4: memref<1x4x8xf32, #tpu.memory_space<vmem>>) attributes {dimension_semantics = [#tpu.dimension_semantics<parallel>, #tpu.dimension_semantics<arbitrary>], iteration_bounds = array<i64: 2, 1>, scalar_prefetch = 0 : i64, scratch_operands = 0 : i64, tpu.core_type = #tpu.core_type<tc>, window_params = [{transform_indices = @transform_0, window_bounds = array<i64: 1, 1, 19, 64>}, {pipeline_mode = #tpu.pipeline_mode<synchronous>, transform_indices = @transform_1, window_bounds = array<i64: 16, 64, 8>}, {transform_indices = @transform_2, window_bounds = array<i64: 1, 4, 8>}]} {
    %c16_i32 = arith.constant 16 : i32
    %0 = arith.muli %arg1, %c16_i32 : i32
    %c0 = arith.constant 0 : index
    %c0_0 = arith.constant 0 : index
    %c0_1 = arith.constant 0 : index
    %c0_2 = arith.constant 0 : index
    %1 = vector.load %arg2[%c0, %c0_0, %c0_1, %c0_2] : memref<1x1x19x64xbf16, #tpu.memory_space<vmem>>, vector<1x1x4x64xbf16>
    %2 = vector.shape_cast %1 : vector<1x1x4x64xbf16> to vector<4x64xbf16>
    %c0_i32 = arith.constant 0 : i32
    %3 = arith.addi %0, %c0_i32 : i32
    %4 = arith.index_cast %3 : i32 to index
    %c0_3 = arith.constant 0 : index
    %c0_4 = arith.constant 0 : index
    %5 = vector.load %arg3[%4, %c0_3, %c0_4] : memref<16x64x8xbf16, #tpu.memory_space<vmem>>, vector<1x64x8xbf16>
    %6 = vector.shape_cast %5 : vector<1x64x8xbf16> to vector<64x8xbf16>
    %cst = arith.constant dense<0.000000e+00> : vector<4x8xf32>
    %7 = tpu.matmul %2, %6, %cst {dimension_numbers = #tpu.dot_dimension_numbers<[1], [0], [0], [1], [0, 0, 1, 1], [], []>} : vector<4x64xbf16>, vector<64x8xbf16>, vector<4x8xf32> -> vector<4x8xf32>
    %c0_5 = arith.constant 0 : index
    %c0_6 = arith.constant 0 : index
    %c1 = arith.constant 1 : index
    %c0_7 = arith.constant 0 : index
    %8 = vector.load %arg2[%c0_5, %c0_6, %c1, %c0_7] : memref<1x1x19x64xbf16, #tpu.memory_space<vmem>>, vector<1x1x4x64xbf16>
    %9 = vector.shape_cast %8 : vector<1x1x4x64xbf16> to vector<4x64xbf16>
    %c1_i32 = arith.constant 1 : i32
    %10 = arith.addi %0, %c1_i32 : i32
    %11 = arith.index_cast %10 : i32 to index
    %c0_8 = arith.constant 0 : index
    %c0_9 = arith.constant 0 : index
    %12 = vector.load %arg3[%11, %c0_8, %c0_9] : memref<16x64x8xbf16, #tpu.memory_space<vmem>>, vector<1x64x8xbf16>
    %13 = vector.shape_cast %12 : vector<1x64x8xbf16> to vector<64x8xbf16>
    %cst_10 = arith.constant dense<0.000000e+00> : vector<4x8xf32>
    %14 = tpu.matmul %9, %13, %cst_10 {dimension_numbers = #tpu.dot_dimension_numbers<[1], [0], [0], [1], [0, 0, 1, 1], [], []>} : vector<4x64xbf16>, vector<64x8xbf16>, vector<4x8xf32> -> vector<4x8xf32>
    %15 = arith.addf %7, %14 : vector<4x8xf32>
    %c0_11 = arith.constant 0 : index
    %c0_12 = arith.constant 0 : index
    %c2 = arith.constant 2 : index
    %c0_13 = arith.constant 0 : index
    %16 = vector.load %arg2[%c0_11, %c0_12, %c2, %c0_13] : memref<1x1x19x64xbf16, #tpu.memory_space<vmem>>, vector<1x1x4x64xbf16>
    %17 = vector.shape_cast %16 : vector<1x1x4x64xbf16> to vector<4x64xbf16>
    %c2_i32 = arith.constant 2 : i32
    %18 = arith.addi %0, %c2_i32 : i32
    %19 = arith.index_cast %18 : i32 to index
    %c0_14 = arith.constant 0 : index
    %c0_15 = arith.constant 0 : index
    %20 = vector.load %arg3[%19, %c0_14, %c0_15] : memref<16x64x8xbf16, #tpu.memory_space<vmem>>, vector<1x64x8xbf16>
    %21 = vector.shape_cast %20 : vector<1x64x8xbf16> to vector<64x8xbf16>
    %cst_16 = arith.constant dense<0.000000e+00> : vector<4x8xf32>
    %22 = tpu.matmul %17, %21, %cst_16 {dimension_numbers = #tpu.dot_dimension_numbers<[1], [0], [0], [1], [0, 0, 1, 1], [], []>} : vector<4x64xbf16>, vector<64x8xbf16>, vector<4x8xf32> -> vector<4x8xf32>
    %23 = arith.addf %15, %22 : vector<4x8xf32>
    %c0_17 = arith.constant 0 : index
    %c0_18 = arith.constant 0 : index
    %c3 = arith.constant 3 : index
    %c0_19 = arith.constant 0 : index
    %24 = vector.load %arg2[%c0_17, %c0_18, %c3, %c0_19] : memref<1x1x19x64xbf16, #tpu.memory_space<vmem>>, vector<1x1x4x64xbf16>
    %25 = vector.shape_cast %24 : vector<1x1x4x64xbf16> to vector<4x64xbf16>
    %c3_i32 = arith.constant 3 : i32
    %26 = arith.addi %0, %c3_i32 : i32
    %27 = arith.index_cast %26 : i32 to index
    %c0_20 = arith.constant 0 : index
    %c0_21 = arith.constant 0 : index
    %28 = vector.load %arg3[%27, %c0_20, %c0_21] : memref<16x64x8xbf16, #tpu.memory_space<vmem>>, vector<1x64x8xbf16>
    %29 = vector.shape_cast %28 : vector<1x64x8xbf16> to vector<64x8xbf16>
    %cst_22 = arith.constant dense<0.000000e+00> : vector<4x8xf32>
    %30 = tpu.matmul %25, %29, %cst_22 {dimension_numbers = #tpu.dot_dimension_numbers<[1], [0], [0], [1], [0, 0, 1, 1], [], []>} : vector<4x64xbf16>, vector<64x8xbf16>, vector<4x8xf32> -> vector<4x8xf32>
    %31 = arith.addf %23, %30 : vector<4x8xf32>
    %c0_23 = arith.constant 0 : index
    %c0_24 = arith.constant 0 : index
    %c4 = arith.constant 4 : index
    %c0_25 = arith.constant 0 : index
    %32 = vector.load %arg2[%c0_23, %c0_24, %c4, %c0_25] : memref<1x1x19x64xbf16, #tpu.memory_space<vmem>>, vector<1x1x4x64xbf16>
    %33 = vector.shape_cast %32 : vector<1x1x4x64xbf16> to vector<4x64xbf16>
    %c4_i32 = arith.constant 4 : i32
    %34 = arith.addi %0, %c4_i32 : i32
    %35 = arith.index_cast %34 : i32 to index
    %c0_26 = arith.constant 0 : index
    %c0_27 = arith.constant 0 : index
    %36 = vector.load %arg3[%35, %c0_26, %c0_27] : memref<16x64x8xbf16, #tpu.memory_space<vmem>>, vector<1x64x8xbf16>
    %37 = vector.shape_cast %36 : vector<1x64x8xbf16> to vector<64x8xbf16>
    %cst_28 = arith.constant dense<0.000000e+00> : vector<4x8xf32>
    %38 = tpu.matmul %33, %37, %cst_28 {dimension_numbers = #tpu.dot_dimension_numbers<[1], [0], [0], [1], [0, 0, 1, 1], [], []>} : vector<4x64xbf16>, vector<64x8xbf16>, vector<4x8xf32> -> vector<4x8xf32>
    %39 = arith.addf %31, %38 : vector<4x8xf32>
    %c0_29 = arith.constant 0 : index
    %c0_30 = arith.constant 0 : index
    %c5 = arith.constant 5 : index
    %c0_31 = arith.constant 0 : index
    %40 = vector.load %arg2[%c0_29, %c0_30, %c5, %c0_31] : memref<1x1x19x64xbf16, #tpu.memory_space<vmem>>, vector<1x1x4x64xbf16>
    %41 = vector.shape_cast %40 : vector<1x1x4x64xbf16> to vector<4x64xbf16>
    %c5_i32 = arith.constant 5 : i32
    %42 = arith.addi %0, %c5_i32 : i32
    %43 = arith.index_cast %42 : i32 to index
    %c0_32 = arith.constant 0 : index
    %c0_33 = arith.constant 0 : index
    %44 = vector.load %arg3[%43, %c0_32, %c0_33] : memref<16x64x8xbf16, #tpu.memory_space<vmem>>, vector<1x64x8xbf16>
    %45 = vector.shape_cast %44 : vector<1x64x8xbf16> to vector<64x8xbf16>
    %cst_34 = arith.constant dense<0.000000e+00> : vector<4x8xf32>
    %46 = tpu.matmul %41, %45, %cst_34 {dimension_numbers = #tpu.dot_dimension_numbers<[1], [0], [0], [1], [0, 0, 1, 1], [], []>} : vector<4x64xbf16>, vector<64x8xbf16>, vector<4x8xf32> -> vector<4x8xf32>
    %47 = arith.addf %39, %46 : vector<4x8xf32>
    %c0_35 = arith.constant 0 : index
    %c0_36 = arith.constant 0 : index
    %c6 = arith.constant 6 : index
    %c0_37 = arith.constant 0 : index
    %48 = vector.load %arg2[%c0_35, %c0_36, %c6, %c0_37] : memref<1x1x19x64xbf16, #tpu.memory_space<vmem>>, vector<1x1x4x64xbf16>
    %49 = vector.shape_cast %48 : vector<1x1x4x64xbf16> to vector<4x64xbf16>
    %c6_i32 = arith.constant 6 : i32
    %50 = arith.addi %0, %c6_i32 : i32
    %51 = arith.index_cast %50 : i32 to index
    %c0_38 = arith.constant 0 : index
    %c0_39 = arith.constant 0 : index
    %52 = vector.load %arg3[%51, %c0_38, %c0_39] : memref<16x64x8xbf16, #tpu.memory_space<vmem>>, vector<1x64x8xbf16>
    %53 = vector.shape_cast %52 : vector<1x64x8xbf16> to vector<64x8xbf16>
    %cst_40 = arith.constant dense<0.000000e+00> : vector<4x8xf32>
    %54 = tpu.matmul %49, %53, %cst_40 {dimension_numbers = #tpu.dot_dimension_numbers<[1], [0], [0], [1], [0, 0, 1, 1], [], []>} : vector<4x64xbf16>, vector<64x8xbf16>, vector<4x8xf32> -> vector<4x8xf32>
    %55 = arith.addf %47, %54 : vector<4x8xf32>
    %c0_41 = arith.constant 0 : index
    %c0_42 = arith.constant 0 : index
    %c7 = arith.constant 7 : index
    %c0_43 = arith.constant 0 : index
    %56 = vector.load %arg2[%c0_41, %c0_42, %c7, %c0_43] : memref<1x1x19x64xbf16, #tpu.memory_space<vmem>>, vector<1x1x4x64xbf16>
    %57 = vector.shape_cast %56 : vector<1x1x4x64xbf16> to vector<4x64xbf16>
    %c7_i32 = arith.constant 7 : i32
    %58 = arith.addi %0, %c7_i32 : i32
    %59 = arith.index_cast %58 : i32 to index
    %c0_44 = arith.constant 0 : index
    %c0_45 = arith.constant 0 : index
    %60 = vector.load %arg3[%59, %c0_44, %c0_45] : memref<16x64x8xbf16, #tpu.memory_space<vmem>>, vector<1x64x8xbf16>
    %61 = vector.shape_cast %60 : vector<1x64x8xbf16> to vector<64x8xbf16>
    %cst_46 = arith.constant dense<0.000000e+00> : vector<4x8xf32>
    %62 = tpu.matmul %57, %61, %cst_46 {dimension_numbers = #tpu.dot_dimension_numbers<[1], [0], [0], [1], [0, 0, 1, 1], [], []>} : vector<4x64xbf16>, vector<64x8xbf16>, vector<4x8xf32> -> vector<4x8xf32>
    %63 = arith.addf %55, %62 : vector<4x8xf32>
    %c0_47 = arith.constant 0 : index
    %c0_48 = arith.constant 0 : index
    %c8 = arith.constant 8 : index
    %c0_49 = arith.constant 0 : index
    %64 = vector.load %arg2[%c0_47, %c0_48, %c8, %c0_49] : memref<1x1x19x64xbf16, #tpu.memory_space<vmem>>, vector<1x1x4x64xbf16>
    %65 = vector.shape_cast %64 : vector<1x1x4x64xbf16> to vector<4x64xbf16>
    %c8_i32 = arith.constant 8 : i32
    %66 = arith.addi %0, %c8_i32 : i32
    %67 = arith.index_cast %66 : i32 to index
    %c0_50 = arith.constant 0 : index
    %c0_51 = arith.constant 0 : index
    %68 = vector.load %arg3[%67, %c0_50, %c0_51] : memref<16x64x8xbf16, #tpu.memory_space<vmem>>, vector<1x64x8xbf16>
    %69 = vector.shape_cast %68 : vector<1x64x8xbf16> to vector<64x8xbf16>
    %cst_52 = arith.constant dense<0.000000e+00> : vector<4x8xf32>
    %70 = tpu.matmul %65, %69, %cst_52 {dimension_numbers = #tpu.dot_dimension_numbers<[1], [0], [0], [1], [0, 0, 1, 1], [], []>} : vector<4x64xbf16>, vector<64x8xbf16>, vector<4x8xf32> -> vector<4x8xf32>
    %71 = arith.addf %63, %70 : vector<4x8xf32>
    %c0_53 = arith.constant 0 : index
    %c0_54 = arith.constant 0 : index
    %c9 = arith.constant 9 : index
    %c0_55 = arith.constant 0 : index
    %72 = vector.load %arg2[%c0_53, %c0_54, %c9, %c0_55] : memref<1x1x19x64xbf16, #tpu.memory_space<vmem>>, vector<1x1x4x64xbf16>
    %73 = vector.shape_cast %72 : vector<1x1x4x64xbf16> to vector<4x64xbf16>
    %c9_i32 = arith.constant 9 : i32
    %74 = arith.addi %0, %c9_i32 : i32
    %75 = arith.index_cast %74 : i32 to index
    %c0_56 = arith.constant 0 : index
    %c0_57 = arith.constant 0 : index
    %76 = vector.load %arg3[%75, %c0_56, %c0_57] : memref<16x64x8xbf16, #tpu.memory_space<vmem>>, vector<1x64x8xbf16>
    %77 = vector.shape_cast %76 : vector<1x64x8xbf16> to vector<64x8xbf16>
    %cst_58 = arith.constant dense<0.000000e+00> : vector<4x8xf32>
    %78 = tpu.matmul %73, %77, %cst_58 {dimension_numbers = #tpu.dot_dimension_numbers<[1], [0], [0], [1], [0, 0, 1, 1], [], []>} : vector<4x64xbf16>, vector<64x8xbf16>, vector<4x8xf32> -> vector<4x8xf32>
    %79 = arith.addf %71, %78 : vector<4x8xf32>
    %c0_59 = arith.constant 0 : index
    %c0_60 = arith.constant 0 : index
    %c10 = arith.constant 10 : index
    %c0_61 = arith.constant 0 : index
    %80 = vector.load %arg2[%c0_59, %c0_60, %c10, %c0_61] : memref<1x1x19x64xbf16, #tpu.memory_space<vmem>>, vector<1x1x4x64xbf16>
    %81 = vector.shape_cast %80 : vector<1x1x4x64xbf16> to vector<4x64xbf16>
    %c10_i32 = arith.constant 10 : i32
    %82 = arith.addi %0, %c10_i32 : i32
    %83 = arith.index_cast %82 : i32 to index
    %c0_62 = arith.constant 0 : index
    %c0_63 = arith.constant 0 : index
    %84 = vector.load %arg3[%83, %c0_62, %c0_63] : memref<16x64x8xbf16, #tpu.memory_space<vmem>>, vector<1x64x8xbf16>
    %85 = vector.shape_cast %84 : vector<1x64x8xbf16> to vector<64x8xbf16>
    %cst_64 = arith.constant dense<0.000000e+00> : vector<4x8xf32>
    %86 = tpu.matmul %81, %85, %cst_64 {dimension_numbers = #tpu.dot_dimension_numbers<[1], [0], [0], [1], [0, 0, 1, 1], [], []>} : vector<4x64xbf16>, vector<64x8xbf16>, vector<4x8xf32> -> vector<4x8xf32>
    %87 = arith.addf %79, %86 : vector<4x8xf32>
    %c0_65 = arith.constant 0 : index
    %c0_66 = arith.constant 0 : index
    %c11 = arith.constant 11 : index
    %c0_67 = arith.constant 0 : index
    %88 = vector.load %arg2[%c0_65, %c0_66, %c11, %c0_67] : memref<1x1x19x64xbf16, #tpu.memory_space<vmem>>, vector<1x1x4x64xbf16>
    %89 = vector.shape_cast %88 : vector<1x1x4x64xbf16> to vector<4x64xbf16>
    %c11_i32 = arith.constant 11 : i32
    %90 = arith.addi %0, %c11_i32 : i32
    %91 = arith.index_cast %90 : i32 to index
    %c0_68 = arith.constant 0 : index
    %c0_69 = arith.constant 0 : index
    %92 = vector.load %arg3[%91, %c0_68, %c0_69] : memref<16x64x8xbf16, #tpu.memory_space<vmem>>, vector<1x64x8xbf16>
    %93 = vector.shape_cast %92 : vector<1x64x8xbf16> to vector<64x8xbf16>
    %cst_70 = arith.constant dense<0.000000e+00> : vector<4x8xf32>
    %94 = tpu.matmul %89, %93, %cst_70 {dimension_numbers = #tpu.dot_dimension_numbers<[1], [0], [0], [1], [0, 0, 1, 1], [], []>} : vector<4x64xbf16>, vector<64x8xbf16>, vector<4x8xf32> -> vector<4x8xf32>
    %95 = arith.addf %87, %94 : vector<4x8xf32>
    %c0_71 = arith.constant 0 : index
    %c0_72 = arith.constant 0 : index
    %c12 = arith.constant 12 : index
    %c0_73 = arith.constant 0 : index
    %96 = vector.load %arg2[%c0_71, %c0_72, %c12, %c0_73] : memref<1x1x19x64xbf16, #tpu.memory_space<vmem>>, vector<1x1x4x64xbf16>
    %97 = vector.shape_cast %96 : vector<1x1x4x64xbf16> to vector<4x64xbf16>
    %c12_i32 = arith.constant 12 : i32
    %98 = arith.addi %0, %c12_i32 : i32
    %99 = arith.index_cast %98 : i32 to index
    %c0_74 = arith.constant 0 : index
    %c0_75 = arith.constant 0 : index
    %100 = vector.load %arg3[%99, %c0_74, %c0_75] : memref<16x64x8xbf16, #tpu.memory_space<vmem>>, vector<1x64x8xbf16>
    %101 = vector.shape_cast %100 : vector<1x64x8xbf16> to vector<64x8xbf16>
    %cst_76 = arith.constant dense<0.000000e+00> : vector<4x8xf32>
    %102 = tpu.matmul %97, %101, %cst_76 {dimension_numbers = #tpu.dot_dimension_numbers<[1], [0], [0], [1], [0, 0, 1, 1], [], []>} : vector<4x64xbf16>, vector<64x8xbf16>, vector<4x8xf32> -> vector<4x8xf32>
    %103 = arith.addf %95, %102 : vector<4x8xf32>
    %c0_77 = arith.constant 0 : index
    %c0_78 = arith.constant 0 : index
    %c13 = arith.constant 13 : index
    %c0_79 = arith.constant 0 : index
    %104 = vector.load %arg2[%c0_77, %c0_78, %c13, %c0_79] : memref<1x1x19x64xbf16, #tpu.memory_space<vmem>>, vector<1x1x4x64xbf16>
    %105 = vector.shape_cast %104 : vector<1x1x4x64xbf16> to vector<4x64xbf16>
    %c13_i32 = arith.constant 13 : i32
    %106 = arith.addi %0, %c13_i32 : i32
    %107 = arith.index_cast %106 : i32 to index
    %c0_80 = arith.constant 0 : index
    %c0_81 = arith.constant 0 : index
    %108 = vector.load %arg3[%107, %c0_80, %c0_81] : memref<16x64x8xbf16, #tpu.memory_space<vmem>>, vector<1x64x8xbf16>
    %109 = vector.shape_cast %108 : vector<1x64x8xbf16> to vector<64x8xbf16>
    %cst_82 = arith.constant dense<0.000000e+00> : vector<4x8xf32>
    %110 = tpu.matmul %105, %109, %cst_82 {dimension_numbers = #tpu.dot_dimension_numbers<[1], [0], [0], [1], [0, 0, 1, 1], [], []>} : vector<4x64xbf16>, vector<64x8xbf16>, vector<4x8xf32> -> vector<4x8xf32>
    %111 = arith.addf %103, %110 : vector<4x8xf32>
    %c0_83 = arith.constant 0 : index
    %c0_84 = arith.constant 0 : index
    %c14 = arith.constant 14 : index
    %c0_85 = arith.constant 0 : index
    %112 = vector.load %arg2[%c0_83, %c0_84, %c14, %c0_85] : memref<1x1x19x64xbf16, #tpu.memory_space<vmem>>, vector<1x1x4x64xbf16>
    %113 = vector.shape_cast %112 : vector<1x1x4x64xbf16> to vector<4x64xbf16>
    %c14_i32 = arith.constant 14 : i32
    %114 = arith.addi %0, %c14_i32 : i32
    %115 = arith.index_cast %114 : i32 to index
    %c0_86 = arith.constant 0 : index
    %c0_87 = arith.constant 0 : index
    %116 = vector.load %arg3[%115, %c0_86, %c0_87] : memref<16x64x8xbf16, #tpu.memory_space<vmem>>, vector<1x64x8xbf16>
    %117 = vector.shape_cast %116 : vector<1x64x8xbf16> to vector<64x8xbf16>
    %cst_88 = arith.constant dense<0.000000e+00> : vector<4x8xf32>
    %118 = tpu.matmul %113, %117, %cst_88 {dimension_numbers = #tpu.dot_dimension_numbers<[1], [0], [0], [1], [0, 0, 1, 1], [], []>} : vector<4x64xbf16>, vector<64x8xbf16>, vector<4x8xf32> -> vector<4x8xf32>
    %119 = arith.addf %111, %118 : vector<4x8xf32>
    %c0_89 = arith.constant 0 : index
    %c0_90 = arith.constant 0 : index
    %c15 = arith.constant 15 : index
    %c0_91 = arith.constant 0 : index
    %120 = vector.load %arg2[%c0_89, %c0_90, %c15, %c0_91] : memref<1x1x19x64xbf16, #tpu.memory_space<vmem>>, vector<1x1x4x64xbf16>
    %121 = vector.shape_cast %120 : vector<1x1x4x64xbf16> to vector<4x64xbf16>
    %c15_i32 = arith.constant 15 : i32
    %122 = arith.addi %0, %c15_i32 : i32
    %123 = arith.index_cast %122 : i32 to index
    %c0_92 = arith.constant 0 : index
    %c0_93 = arith.constant 0 : index
    %124 = vector.load %arg3[%123, %c0_92, %c0_93] : memref<16x64x8xbf16, #tpu.memory_space<vmem>>, vector<1x64x8xbf16>
    %125 = vector.shape_cast %124 : vector<1x64x8xbf16> to vector<64x8xbf16>
    %cst_94 = arith.constant dense<0.000000e+00> : vector<4x8xf32>
    %126 = tpu.matmul %121, %125, %cst_94 {dimension_numbers = #tpu.dot_dimension_numbers<[1], [0], [0], [1], [0, 0, 1, 1], [], []>} : vector<4x64xbf16>, vector<64x8xbf16>, vector<4x8xf32> -> vector<4x8xf32>
    %127 = arith.addf %119, %126 : vector<4x8xf32>
    %c0_i32_95 = arith.constant 0 : i32
    %128 = arith.cmpi eq, %arg1, %c0_i32_95 : i32
    %129 = arith.extui %128 : i1 to i32
    %c0_i32_96 = arith.constant 0 : i32
    %130 = arith.cmpi ne, %129, %c0_i32_96 : i32
    scf.if %130 {
      %c0_97 = arith.constant 0 : index
      %c0_98 = arith.constant 0 : index
      %c0_99 = arith.constant 0 : index
      %131 = vector.load %arg4[%c0_97, %c0_98, %c0_99] : memref<1x4x8xf32, #tpu.memory_space<vmem>>, vector<1x4x8xf32>
      %132 = vector.shape_cast %131 : vector<1x4x8xf32> to vector<4x8xf32>
      %133 = vector.shape_cast %127 : vector<4x8xf32> to vector<1x4x8xf32>
      tpu.vector_store %arg4[%c0_97, %c0_98, %c0_99], %133 {strides = array<i32>} : memref<1x4x8xf32, #tpu.memory_space<vmem>>, vector<1x4x8xf32>,
    } else {
    }
    return
  }
  func.func @transform_0(%arg0: i32, %arg1: i32) -> (i32, i32, i32, i32) {
    %c0_i32 = arith.constant 0 : i32
    %c0_i32_0 = arith.constant 0 : i32
    %c0_i32_1 = arith.constant 0 : i32
    return %arg0, %arg1, %c0_i32, %c0_i32_0 : i32, i32, i32, i32
  }
  func.func @transform_1(%arg0: i32, %arg1: i32) -> (i32, i32, i32) {
    %c0_i32 = arith.constant 0 : i32
    %c0_i32_0 = arith.constant 0 : i32
    %c0_i32_1 = arith.constant 0 : i32
    %c0_i32_2 = arith.constant 0 : i32
    return %c0_i32, %c0_i32_0, %c0_i32_1 : i32, i32, i32
  }
  func.func @transform_2(%arg0: i32, %arg1: i32) -> (i32, i32, i32) {
    %c0_i32 = arith.constant 0 : i32
    %c0_i32_0 = arith.constant 0 : i32
    %c0_i32_1 = arith.constant 0 : i32
    return %arg0, %c0_i32, %c0_i32_0 : i32, i32, i32
  }
}

</mosaic_0001>

<llo_original>
// kernel: discriminator_forward.5
$region0: #{discriminator_forward.5}
  #allocation0 [shape = 'u32[]', space=smem, size = 0x4, offset = 0x4, fixed_abs, tag = 'smem constant byte address 0x4 - core index']
  #allocation1 [shape = 'u32[72,128]{1,0:T(1,128)}', space=vmem, size = 0x9000, scoped, tag = 'internal scratch']
  %s0 = inlined_call_operand.vmem [shape: bf16[2,256,48], index: 0, kind: input, shape index: {}]
  %s1 = inlined_call_operand.vmem [shape: bf16[48,8], index: 1, kind: input, shape index: {}]
  %s2 = inlined_call_operand.vmem [shape: bf16[2,256,8], index: 2, kind: output, shape index: {}]
  %s3 = sld [smem:[#allocation0]]
  $region41: #{discriminator_forward.5} parent=0
    _
  %s5 = ssub.s32 1, %s3
  %s6 = scalar_select 0, %s5, %s3
  loop: start=0, step=1, limit=6
  $region2: #{discriminator_forward.5} parent=0 // loop_pre_header
    _
  $region3: #{discriminator_forward.5} parent=0 // loop_header
    %s8 = sphi 0, %s12
    %p9 = scmp.ge.s32.totalorder %s8, 6
    %s15 = sphi 0, %s27
    %s16 = sphi 0, %s23
    %s17 = sphi 0, %s15
    %s18 = sphi 0, %s16
    %s19 = sphi 0, %s17
    %s20 = sphi 0, %s18
    %s32 = sphi 0, %s34
    %s35 = sphi 0, %s32
    %s36 = sphi 0, %s35
    %s52 = sphi 0, %s36
    %s56 = sphi 0, %s56
    %s58 = sphi 0, %s56
    %s59 = sphi 0, %s58
    %s73 = sphi 0, %s59
    %s81 = sphi 0, %s83
    %s84 = sphi 0, %s81
    %s85 = sphi 0, %s84
    %s101 = sphi 0, %s85
  $region4: #{discriminator_forward.5} parent=0 // loop_header_branch
    %11 = sbr.rel (%p9) target = $region8
  $region5: #{discriminator_forward.5} parent=0 // loop_body
    %s13 = ssub.s32 %s8, 1
    %s14 = ssub.s32 %s8, 2
    %s21 = sadd.s32 1, %s16
    %p22 = scmp.ge.s32.totalorder %s21, 2
    %s23 = scalar_select %p22, 0, %s21
    %s24 = sadd.s32 1, %s15
    %s25 = scalar_select %p22, %s24, %s15
    %p26 = scmp.ge.s32.totalorder %s25, 2
    %s27 = scalar_select %p26, 0, %s25
    %s28 = ssub.s32 %s15, %s27
    %s29 = ssub.s32 %s16, %s23
    %s30 = sor.u32 %s28, %s29
    %p31 = scmp.eq.s32.totalorder %s30, 0
    %s33 = sadd.s32 %s32, 1
    %s34 = scalar_select %p31, %s32, %s33
    %p37 = pneg %p31
    %p38 = scmp.eq.s32.totalorder %s8, 3
    %p39 = por %p37, %p38
    %p40 = scmp.ne.s32.totalorder %s32, %s35
    %p41 = scmp.eq.s32.totalorder %s8, 0
    %p42 = por %p40, %p41
    %p43 = scmp.ne.s32.totalorder %s32, %s35
    %p44 = scmp.eq.s32.totalorder %s13, 3
    %p45 = por %p43, %p44
    %p46 = scmp.ne.s32.totalorder %s35, %s36
    %p47 = scmp.eq.s32.totalorder %s13, 0
    %p48 = por %p46, %p47
    %p49 = scmp.ne.s32.totalorder %s35, %s36
    %p50 = scmp.eq.s32.totalorder %s14, 3
    %p51 = por %p49, %p50
    %p53 = scmp.ne.s32.totalorder %s36, %s52
    %p54 = scmp.eq.s32.totalorder %s14, 0
    %p55 = por %p53, %p54
    %s57 = sadd.s32 %s56, 1
    %p60 = scmp.eq.s32.totalorder %s8, 3
    %p61 = scmp.ne.s32.totalorder %s56, %s58
    %p62 = scmp.eq.s32.totalorder %s8, 0
    %p63 = por %p61, %p62
    %p64 = scmp.ne.s32.totalorder %s56, %s58
    %p65 = scmp.eq.s32.totalorder %s13, 3
    %p66 = por %p64, %p65
    %p67 = scmp.ne.s32.totalorder %s58, %s59
    %p68 = scmp.eq.s32.totalorder %s13, 0
    %p69 = por %p67, %p68
    %p70 = scmp.ne.s32.totalorder %s58, %s59
    %p71 = scmp.eq.s32.totalorder %s14, 3
    %p72 = por %p70, %p71
    %p74 = scmp.ne.s32.totalorder %s59, %s73
    %p75 = scmp.eq.s32.totalorder %s14, 0
    %p76 = por %p74, %p75
    %s77 = ssub.s32 %s15, %s27
    %s78 = ssub.s32 %s16, %s23
    %s79 = sor.u32 %s77, %s78
    %p80 = scmp.eq.s32.totalorder %s79, 0
    %s82 = sadd.s32 %s81, 1
    %s83 = scalar_select %p80, %s81, %s82
    %p86 = pneg %p80
    %p87 = scmp.eq.s32.totalorder %s8, 3
    %p88 = por %p86, %p87
    %p89 = scmp.ne.s32.totalorder %s81, %s84
    %p90 = scmp.eq.s32.totalorder %s8, 0
    %p91 = por %p89, %p90
    %p92 = scmp.ne.s32.totalorder %s81, %s84
    %p93 = scmp.eq.s32.totalorder %s13, 3
    %p94 = por %p92, %p93
    %p95 = scmp.ne.s32.totalorder %s84, %s85
    %p96 = scmp.eq.s32.totalorder %s13, 0
    %p97 = por %p95, %p96
    %p98 = scmp.ne.s32.totalorder %s84, %s85
    %p99 = scmp.eq.s32.totalorder %s14, 3
    %p100 = por %p98, %p99
    %p102 = scmp.ne.s32.totalorder %s85, %s101
    %p103 = scmp.eq.s32.totalorder %s14, 0
    %p104 = por %p102, %p103
    %p105 = scmp.le.s32.totalorder 1, %s8
    %p106 = scmp.lt.s32.totalorder %s8, 5
    %p107 = pnand %p105, %p106
    %p108 = pneg %p107
    // Predicated region
    $region9: #{discriminator_forward.5} parent=5 // pred_check
      _
    $region10: #{discriminator_forward.5} parent=5 // pred_check_branch
      %110 = sbr.rel (%p107) target = $region12
    $region11: #{discriminator_forward.5} parent=5 // pred_region
      %s111 = ssub.s32 %s8, 1
      // Predicated region
      $region13: #{discriminator_forward.5} parent=11 // pred_check
        %p112 = pneg %p69
      $region14: #{discriminator_forward.5} parent=11 // pred_check_branch
        %114 = sbr.rel (%p112) target = $region16
      $region15: #{discriminator_forward.5} parent=11 // pred_region
        _
      $region16: #{discriminator_forward.5} parent=11 // pred_fallthru
        _
    $region12: #{discriminator_forward.5} parent=5 // pred_fallthru
      _
    %p115 = scmp.lt.s32.totalorder %s8, 4
    // Predicated region
    $region17: #{discriminator_forward.5} parent=5 // pred_check
      %p116 = pneg %p115
    $region18: #{discriminator_forward.5} parent=5 // pred_check_branch
      %118 = sbr.rel (%p116) target = $region20
    $region19: #{discriminator_forward.5} parent=5 // pred_region
      // Predicated region
      $region21: #{discriminator_forward.5} parent=19 // pred_check
        %p119 = pneg %p42
      $region22: #{discriminator_forward.5} parent=19 // pred_check_branch
        %121 = sbr.rel (%p119) target = $region24
      $region23: #{discriminator_forward.5} parent=19 // pred_region
        %s122 = smul.u32 16, %s16
        %p123 = scmp.lt.s32.totalorder %s15, 1
        %s124 = scalar_select %p123, %s15, 1
        %p125 = scmp.lt.s32.totalorder %s122, 31
        %s126 = scalar_select %p125, %s122, 31
        %s127 = smul.addr %s124, 32
        %s128 = sadd.s32 %s126, %s127
        %s129 = smul.addr %s128, 4
        %s130 = scalar_lea.vmem %s0, %s129
        %s131 = smul.u32 16, %s16
      $region24: #{discriminator_forward.5} parent=19 // pred_fallthru
        _
    $region20: #{discriminator_forward.5} parent=5 // pred_fallthru
      _
    %p132 = scmp.le.s32.totalorder 1, %s8
    %p133 = scmp.lt.s32.totalorder %s8, 5
    %p134 = pnand %p132, %p133
    %p135 = pneg %p134
    // Predicated region
    $region25: #{discriminator_forward.5} parent=5 // pred_check
      _
    $region26: #{discriminator_forward.5} parent=5 // pred_check_branch
      %137 = sbr.rel (%p134) target = $region28
    $region27: #{discriminator_forward.5} parent=5 // pred_region
      %s138 = ssub.s32 %s8, 1
      %s139 = smul.u32 16, %s18
      %p140 = scmp.lt.s32.totalorder %s17, 1
      %s141 = scalar_select %p140, %s17, 1
      %p142 = scmp.lt.s32.totalorder %s139, 31
      %s143 = scalar_select %p142, %s139, 31
      %s144 = smul.addr %s141, 32
      %s145 = sadd.s32 %s143, %s144
      %s146 = smul.addr %s145, 4
      %s147 = scalar_lea.vmem %s0, %s146
      %p148 = pneg %p48
      %p149 = pneg %p45
      %p150 = pneg %p69
      %p151 = pneg %p66
      %p152 = pneg %p97
      %p153 = pneg %p94
      %s154 = smul.u32 16, %s18
      %p155 = scmp.lt.s32.totalorder %s17, 1
      %s156 = scalar_select %p155, %s17, 1
      %p157 = scmp.lt.s32.totalorder %s154, 31
      %s158 = scalar_select %p157, %s154, 31
      %s159 = smul.addr %s156, 32
      %s160 = sadd.s32 %s158, %s159
      %s161 = smul.addr %s160, 4
      %s162 = scalar_lea.vmem %s2, %s161
      %s163 = smul.u32 16, %s18
      %p164 = scmp.lt.s32.totalorder %s17, 1
      %s165 = scalar_select %p164, %s17, 1
      %p166 = scmp.lt.s32.totalorder %s163, 31
      %s167 = scalar_select %p166, %s163, 31
      %s168 = smul.addr %s165, 32
      %s169 = sadd.s32 %s167, %s168
      %s170 = smul.addr %s169, 4
      %s171 = scalar_lea.vmem %s0, %s170
      %s172 = smul.u32 16, %s18
      %s173 = smul.u32 16, %s18
      %p174 = scmp.lt.s32.totalorder %s17, 1
      %s175 = scalar_select %p174, %s17, 1
      %p176 = scmp.lt.s32.totalorder %s173, 31
      %s177 = scalar_select %p176, %s173, 31
      %s178 = smul.addr %s175, 32
      %s179 = sadd.s32 %s177, %s178
      %s180 = smul.addr %s179, 4
      %s181 = scalar_lea.vmem %s2, %s180
      %s182 = smul.u32 16, %s18
      %v184 = vld [vmem:[%s171] sm:$0xf]
      %v185 = vld [vmem:[%s171 + $0x4] sm:$0xf]
      %v186 = vld [vmem:[%s171 + $0x8] sm:$0xf]
      %v187 = vld [vmem:[%s171 + $0xc] sm:$0xf]
      %v188 = vld [vmem:[%s171 + $0x10] sm:$0xf]
      %v189 = vld [vmem:[%s171 + $0x14] sm:$0xf]
      %v190 = vld [vmem:[%s171 + $0x18] sm:$0xf]
      %v191 = vld [vmem:[%s171 + $0x1c] sm:$0xf]
      %v192 = vld [vmem:[%s171 + $0x20] sm:$0xf]
      %v193 = vld [vmem:[%s171 + $0x24] sm:$0xf]
      %v194 = vld [vmem:[%s171 + $0x28] sm:$0xf]
      %v195 = vld [vmem:[%s171 + $0x2c] sm:$0xf]
      %v196 = vld [vmem:[%s171 + $0x30] sm:$0xf]
      %v197 = vld [vmem:[%s171 + $0x34] sm:$0xf]
      %v198 = vld [vmem:[%s171 + $0x38] sm:$0xf]
      %v199 = vld [vmem:[%s171 + $0x3c] sm:$0xf]
      %v200 = vld [vmem:[%s1] sm:$0xf]
      %v201 = vld [vmem:[%s1 + $0x4] sm:$0xf]
      %v202 = vld [vmem:[%s1 + $0x8] sm:$0xf]
      %v203 = vld [vmem:[%s1 + $0xc] sm:$0xf]
      %v204 = vld [vmem:[%s1 + $0x10] sm:$0xf]
      %v205 = vld [vmem:[%s1 + $0x14] sm:$0xf]
      %v222 = vunpack.c.l.b16 %v184
      %v223 = vunpack.c.l.b16 %v185
      %v224 = vunpack.c.l.b16 %v186
      %v225 = vunpack.c.l.b16 %v187
      %v226 = vunpack.c.l.b16 %v188
      %v227 = vunpack.c.l.b16 %v189
      %v228 = vunpack.c.l.b16 %v190
      %v229 = vunpack.c.l.b16 %v191
      %v230 = vunpack.c.l.b16 %v192
      %v231 = vunpack.c.l.b16 %v193
      %v232 = vunpack.c.l.b16 %v194
      %v233 = vunpack.c.l.b16 %v195
      %v234 = vunpack.c.l.b16 %v196
      %v235 = vunpack.c.l.b16 %v197
      %v236 = vunpack.c.l.b16 %v198
      %v237 = vunpack.c.l.b16 %v199
      %v238 = vpack.c.b16 %v223, %v222
      %v239 = vpack.c.b16 %v225, %v224
      %v240 = vpack.c.b16 %v227, %v226
      %v241 = vpack.c.b16 %v229, %v228
      %v242 = vpack.c.b16 %v231, %v230
      %v243 = vpack.c.b16 %v233, %v232
      %v244 = vpack.c.b16 %v235, %v234
      %v245 = vpack.c.b16 %v237, %v236
      %v252 = vunpack.c.l.b16 %v200
      %v253 = vunpack.c.l.b16 %v201
      %v254 = vunpack.c.l.b16 %v202
      %v255 = vunpack.c.l.b16 %v203
      %v256 = vunpack.c.l.b16 %v204
      %v257 = vunpack.c.l.b16 %v205
      %v258 = vpack.c.b16 %v253, %v252
      %v259 = vpack.c.b16 %v255, %v254
      %v260 = vpack.c.b16 %v257, %v256
      %vm264 = vcmask 392192
      %v266 = vsel %vm264, %v238, 0
      %v269 = vsel %vm264, %v239, 0
      %v272 = vsel %vm264, %v240, 0
      %v275 = vsel %vm264, %v241, 0
      %v278 = vsel %vm264, %v242, 0
      %v281 = vsel %vm264, %v243, 0
      %v284 = vsel %vm264, %v244, 0
      %v287 = vsel %vm264, %v245, 0
      %289 = vmatpush.bf16.msra.mxu0 0
      %290 = vmatpush.bf16.msra.mxu0 0
      %291 = vmatpush.bf16.msra.mxu0 0
      %292 = vmatpush.bf16.msra.mxu0 0
      %293 = vmatpush.bf16.msra.mxu0 0
      %294 = vmatpush.bf16.msra.mxu0 %v260
      %295 = vmatpush.bf16.msra.mxu0 %v259
      %296 = vmatpush.bf16.msra.mxu0 %v258
      %297 = vmatmul.bf16.gmra.mxu0 %v266
      %v298 = vpop.f32.mrf.mxu0
      %v299 = vadd.f32 0.0, %v298
      %v300 = vpop.f32.mrf.mxu0
      %v301 = vadd.f32 0.0, %v300
      %302 = vmatmul.bf16.gmra.mxu0 %v269
      %v303 = vpop.f32.mrf.mxu0
      %v304 = vadd.f32 0.0, %v303
      %v305 = vpop.f32.mrf.mxu0
      %v306 = vadd.f32 0.0, %v305
      %307 = vmatmul.bf16.gmra.mxu0 %v272
      %v308 = vpop.f32.mrf.mxu0
      %v309 = vadd.f32 0.0, %v308
      %v310 = vpop.f32.mrf.mxu0
      %v311 = vadd.f32 0.0, %v310
      %312 = vmatmul.bf16.gmra.mxu0 %v275
      %v313 = vpop.f32.mrf.mxu0
      %v314 = vadd.f32 0.0, %v313
      %v315 = vpop.f32.mrf.mxu0
      %v316 = vadd.f32 0.0, %v315
      %317 = vmatmul.bf16.gmra.mxu0 %v278
      %v318 = vpop.f32.mrf.mxu0
      %v319 = vadd.f32 0.0, %v318
      %v320 = vpop.f32.mrf.mxu0
      %v321 = vadd.f32 0.0, %v320
      %322 = vmatmul.bf16.gmra.mxu0 %v281
      %v323 = vpop.f32.mrf.mxu0
      %v324 = vadd.f32 0.0, %v323
      %v325 = vpop.f32.mrf.mxu0
      %v326 = vadd.f32 0.0, %v325
      %327 = vmatmul.bf16.gmra.mxu0 %v284
      %v328 = vpop.f32.mrf.mxu0
      %v329 = vadd.f32 0.0, %v328
      %v330 = vpop.f32.mrf.mxu0
      %v331 = vadd.f32 0.0, %v330
      %332 = vmatmul.bf16.gmra.mxu0 %v287
      %v333 = vpop.f32.mrf.mxu0
      %v334 = vadd.f32 0.0, %v333
      %v335 = vpop.f32.mrf.mxu0
      %v336 = vadd.f32 0.0, %v335
      %337 = vdwg.mxu0
      %vm338 = vcmp.ge.f32.partialorder %v299, 0.0
      %vm339 = vcmp.ge.f32.partialorder %v301, 0.0
      %vm340 = vcmp.ge.f32.partialorder %v304, 0.0
      %vm341 = vcmp.ge.f32.partialorder %v306, 0.0
      %vm342 = vcmp.ge.f32.partialorder %v309, 0.0
      %vm343 = vcmp.ge.f32.partialorder %v311, 0.0
      %vm344 = vcmp.ge.f32.partialorder %v314, 0.0
      %vm345 = vcmp.ge.f32.partialorder %v316, 0.0
      %vm346 = vcmp.ge.f32.partialorder %v319, 0.0
      %vm347 = vcmp.ge.f32.partialorder %v321, 0.0
      %vm348 = vcmp.ge.f32.partialorder %v324, 0.0
      %vm349 = vcmp.ge.f32.partialorder %v326, 0.0
      %vm350 = vcmp.ge.f32.partialorder %v329, 0.0
      %vm351 = vcmp.ge.f32.partialorder %v331, 0.0
      %vm352 = vcmp.ge.f32.partialorder %v334, 0.0
      %vm353 = vcmp.ge.f32.partialorder %v336, 0.0
      %v354 = vmul.f32 %v299, 0.2
      %v355 = vmul.f32 %v301, 0.2
      %v356 = vmul.f32 %v304, 0.2
      %v357 = vmul.f32 %v306, 0.2
      %v358 = vmul.f32 %v309, 0.2
      %v359 = vmul.f32 %v311, 0.2
      %v360 = vmul.f32 %v314, 0.2
      %v361 = vmul.f32 %v316, 0.2
      %v362 = vmul.f32 %v319, 0.2
      %v363 = vmul.f32 %v321, 0.2
      %v364 = vmul.f32 %v324, 0.2
      %v365 = vmul.f32 %v326, 0.2
      %v366 = vmul.f32 %v329, 0.2
      %v367 = vmul.f32 %v331, 0.2
      %v368 = vmul.f32 %v334, 0.2
      %v369 = vmul.f32 %v336, 0.2
      %v370 = vsel %vm338, %v299, %v354
      %v371 = vsel %vm339, %v301, %v355
      %v372 = vsel %vm340, %v304, %v356
      %v373 = vsel %vm341, %v306, %v357
      %v374 = vsel %vm342, %v309, %v358
      %v375 = vsel %vm343, %v311, %v359
      %v376 = vsel %vm344, %v314, %v360
      %v377 = vsel %vm345, %v316, %v361
      %v378 = vsel %vm346, %v319, %v362
      %v379 = vsel %vm347, %v321, %v363
      %v380 = vsel %vm348, %v324, %v364
      %v381 = vsel %vm349, %v326, %v365
      %v382 = vsel %vm350, %v329, %v366
      %v383 = vsel %vm351, %v331, %v367
      %v384 = vsel %vm352, %v334, %v368
      %v385 = vsel %vm353, %v336, %v369
      %v386 = vpack.c.bf16 %v370, %v370
      %v387 = vpack.c.bf16 %v371, %v371
      %v388 = vpack.c.bf16 %v372, %v372
      %v389 = vpack.c.bf16 %v373, %v373
      %v390 = vpack.c.bf16 %v374, %v374
      %v391 = vpack.c.bf16 %v375, %v375
      %v392 = vpack.c.bf16 %v376, %v376
      %v393 = vpack.c.bf16 %v377, %v377
      %v394 = vpack.c.bf16 %v378, %v378
      %v395 = vpack.c.bf16 %v379, %v379
      %v396 = vpack.c.bf16 %v380, %v380
      %v397 = vpack.c.bf16 %v381, %v381
      %v398 = vpack.c.bf16 %v382, %v382
      %v399 = vpack.c.bf16 %v383, %v383
      %v400 = vpack.c.bf16 %v384, %v384
      %v401 = vpack.c.bf16 %v385, %v385
      %vm402 = vcmask 60416
      %403 = vst.msk [vmem:[%s181] sm:$0xf] %vm402, %v386
      %404 = vst.msk [vmem:[%s181 + $0x4] sm:$0xf] %vm402, %v387
      %405 = vst.msk [vmem:[%s181 + $0x8] sm:$0xf] %vm402, %v388
      %406 = vst.msk [vmem:[%s181 + $0xc] sm:$0xf] %vm402, %v389
      %407 = vst.msk [vmem:[%s181 + $0x10] sm:$0xf] %vm402, %v390
      %408 = vst.msk [vmem:[%s181 + $0x14] sm:$0xf] %vm402, %v391
      %409 = vst.msk [vmem:[%s181 + $0x18] sm:$0xf] %vm402, %v392
      %410 = vst.msk [vmem:[%s181 + $0x1c] sm:$0xf] %vm402, %v393
      %411 = vst.msk [vmem:[%s181 + $0x20] sm:$0xf] %vm402, %v394
      %412 = vst.msk [vmem:[%s181 + $0x24] sm:$0xf] %vm402, %v395
      %413 = vst.msk [vmem:[%s181 + $0x28] sm:$0xf] %vm402, %v396
      %414 = vst.msk [vmem:[%s181 + $0x2c] sm:$0xf] %vm402, %v397
      %415 = vst.msk [vmem:[%s181 + $0x30] sm:$0xf] %vm402, %v398
      %416 = vst.msk [vmem:[%s181 + $0x34] sm:$0xf] %vm402, %v399
      %417 = vst.msk [vmem:[%s181 + $0x38] sm:$0xf] %vm402, %v400
      %418 = vst.msk [vmem:[%s181 + $0x3c] sm:$0xf] %vm402, %v401
      %s419 = smul.u32 16, %s18
      %p420 = scmp.lt.s32.totalorder %s17, 1
      %s421 = scalar_select %p420, %s17, 1
      %p422 = scmp.lt.s32.totalorder %s419, 31
      %s423 = scalar_select %p422, %s419, 31
      %s424 = smul.addr %s421, 32
      %s425 = sadd.s32 %s423, %s424
      %s426 = smul.addr %s425, 4
      %s427 = scalar_lea.vmem %s2, %s426
      // Predicated region
      $region29: #{discriminator_forward.5} parent=27 // pred_check
        %p428 = pneg %p94
      $region30: #{discriminator_forward.5} parent=27 // pred_check_branch
        %430 = sbr.rel (%p428) target = $region32
      $region31: #{discriminator_forward.5} parent=27 // pred_region
        %s431 = smul.u32 16, %s18
      $region32: #{discriminator_forward.5} parent=27 // pred_fallthru
        _
    $region28: #{discriminator_forward.5} parent=5 // pred_fallthru
      _
    %p432 = scmp.le.s32.totalorder 2, %s8
    // Predicated region
    $region33: #{discriminator_forward.5} parent=5 // pred_check
      %p433 = pneg %p432
    $region34: #{discriminator_forward.5} parent=5 // pred_check_branch
      %435 = sbr.rel (%p433) target = $region36
    $region35: #{discriminator_forward.5} parent=5 // pred_region
      %s436 = ssub.s32 %s8, 2
      // Predicated region
      $region37: #{discriminator_forward.5} parent=35 // pred_check
        %p437 = pneg %p100
      $region38: #{discriminator_forward.5} parent=35 // pred_check_branch
        %439 = sbr.rel (%p437) target = $region40
      $region39: #{discriminator_forward.5} parent=35 // pred_region
        %s440 = smul.u32 16, %s20
        %p441 = scmp.lt.s32.totalorder %s19, 1
        %s442 = scalar_select %p441, %s19, 1
        %p443 = scmp.lt.s32.totalorder %s440, 31
        %s444 = scalar_select %p443, %s440, 31
        %s445 = smul.addr %s442, 32
        %s446 = sadd.s32 %s444, %s445
        %s447 = smul.addr %s446, 4
        %s448 = scalar_lea.vmem %s2, %s447
      $region40: #{discriminator_forward.5} parent=35 // pred_fallthru
        _
    $region36: #{discriminator_forward.5} parent=5 // pred_fallthru
      _
  $region6: #{discriminator_forward.5} parent=0 // loop_footer
    %s12 = sadd.s32 1, %s8
  $region7: #{discriminator_forward.5} parent=0 // loop_footer_branch
    %7 = sbr.rel target = $region3
  $region8: #{discriminator_forward.5} parent=0 // loop_exit
    _

// kernel: discriminator_forward.6
$region0: #{discriminator_forward.6}
  #allocation0 [shape = 'u32[]', space=smem, size = 0x4, offset = 0x4, fixed_abs, tag = 'smem constant byte address 0x4 - core index']
  #allocation1 [shape = 'u32[72,128]{1,0:T(1,128)}', space=vmem, size = 0x9000, scoped, tag = 'internal scratch']
  #allocation2 [shape = 'f32[72,16]{1,0:T(8,128)}', space=vmem, size = 0x9000, scoped, tag = 'scratch operand']
  %s0 = inlined_call_operand.vmem [shape: bf16[2,4,82,8], index: 0, kind: input, shape index: {}]
  %s1 = inlined_call_operand.vmem [shape: bf16[16,8,16], index: 1, kind: input, shape index: {}]
  %s2 = inlined_call_operand.vmem [shape: bf16[2,72,16], index: 2, kind: output, shape index: {}]
  %s3 = sld [smem:[#allocation0]]
  $region53: #{discriminator_forward.6} parent=0
    _
  %s5 = ssub.s32 1, %s3
  %s6 = scalar_select 0, %s5, %s3
  loop: start=0, step=1, limit=10
  $region2: #{discriminator_forward.6} parent=0 // loop_pre_header
    _
  $region3: #{discriminator_forward.6} parent=0 // loop_header
    %s8 = sphi 0, %s12
    %p9 = scmp.ge.s32.totalorder %s8, 10
    %s15 = sphi 0, %s27
    %s16 = sphi 0, %s23
    %s17 = sphi 0, %s15
    %s18 = sphi 0, %s16
    %s19 = sphi 0, %s17
    %s20 = sphi 0, %s18
    %s32 = sphi 0, %s34
    %s35 = sphi 0, %s32
    %s36 = sphi 0, %s35
    %s52 = sphi 0, %s36
    %s56 = sphi 0, %s56
    %s58 = sphi 0, %s56
    %s59 = sphi 0, %s58
    %s73 = sphi 0, %s59
    %s79 = sphi 0, %s81
    %s82 = sphi 0, %s79
    %s83 = sphi 0, %s82
    %s99 = sphi 0, %s83
  $region4: #{discriminator_forward.6} parent=0 // loop_header_branch
    %11 = sbr.rel (%p9) target = $region8
  $region5: #{discriminator_forward.6} parent=0 // loop_body
    %s13 = ssub.s32 %s8, 1
    %s14 = ssub.s32 %s8, 2
    %s21 = sadd.s32 1, %s16
    %p22 = scmp.ge.s32.totalorder %s21, 4
    %s23 = scalar_select %p22, 0, %s21
    %s24 = sadd.s32 1, %s15
    %s25 = scalar_select %p22, %s24, %s15
    %p26 = scmp.ge.s32.totalorder %s25, 2
    %s27 = scalar_select %p26, 0, %s25
    %s28 = ssub.s32 %s15, %s27
    %s29 = ssub.s32 %s16, %s23
    %s30 = sor.u32 %s28, %s29
    %p31 = scmp.eq.s32.totalorder %s30, 0
    %s33 = sadd.s32 %s32, 1
    %s34 = scalar_select %p31, %s32, %s33
    %p37 = pneg %p31
    %p38 = scmp.eq.s32.totalorder %s8, 7
    %p39 = por %p37, %p38
    %p40 = scmp.ne.s32.totalorder %s32, %s35
    %p41 = scmp.eq.s32.totalorder %s8, 0
    %p42 = por %p40, %p41
    %p43 = scmp.ne.s32.totalorder %s32, %s35
    %p44 = scmp.eq.s32.totalorder %s13, 7
    %p45 = por %p43, %p44
    %p46 = scmp.ne.s32.totalorder %s35, %s36
    %p47 = scmp.eq.s32.totalorder %s13, 0
    %p48 = por %p46, %p47
    %p49 = scmp.ne.s32.totalorder %s35, %s36
    %p50 = scmp.eq.s32.totalorder %s14, 7
    %p51 = por %p49, %p50
    %p53 = scmp.ne.s32.totalorder %s36, %s52
    %p54 = scmp.eq.s32.totalorder %s14, 0
    %p55 = por %p53, %p54
    %s57 = sadd.s32 %s56, 1
    %p60 = scmp.eq.s32.totalorder %s8, 7
    %p61 = scmp.ne.s32.totalorder %s56, %s58
    %p62 = scmp.eq.s32.totalorder %s8, 0
    %p63 = por %p61, %p62
    %p64 = scmp.ne.s32.totalorder %s56, %s58
    %p65 = scmp.eq.s32.totalorder %s13, 7
    %p66 = por %p64, %p65
    %p67 = scmp.ne.s32.totalorder %s58, %s59
    %p68 = scmp.eq.s32.totalorder %s13, 0
    %p69 = por %p67, %p68
    %p70 = scmp.ne.s32.totalorder %s58, %s59
    %p71 = scmp.eq.s32.totalorder %s14, 7
    %p72 = por %p70, %p71
    %p74 = scmp.ne.s32.totalorder %s59, %s73
    %p75 = scmp.eq.s32.totalorder %s14, 0
    %p76 = por %p74, %p75
    %s77 = ssub.s32 %s15, %s27
    %p78 = scmp.eq.s32.totalorder %s77, 0
    %s80 = sadd.s32 %s79, 1
    %s81 = scalar_select %p78, %s79, %s80
    %p84 = pneg %p78
    %p85 = scmp.eq.s32.totalorder %s8, 7
    %p86 = por %p84, %p85
    %p87 = scmp.ne.s32.totalorder %s79, %s82
    %p88 = scmp.eq.s32.totalorder %s8, 0
    %p89 = por %p87, %p88
    %p90 = scmp.ne.s32.totalorder %s79, %s82
    %p91 = scmp.eq.s32.totalorder %s13, 7
    %p92 = por %p90, %p91
    %p93 = scmp.ne.s32.totalorder %s82, %s83
    %p94 = scmp.eq.s32.totalorder %s13, 0
    %p95 = por %p93, %p94
    %p96 = scmp.ne.s32.totalorder %s82, %s83
    %p97 = scmp.eq.s32.totalorder %s14, 7
    %p98 = por %p96, %p97
    %p100 = scmp.ne.s32.totalorder %s83, %s99
    %p101 = scmp.eq.s32.totalorder %s14, 0
    %p102 = por %p100, %p101
    %p103 = scmp.le.s32.totalorder 1, %s8
    %p104 = scmp.lt.s32.totalorder %s8, 9
    %p105 = pnand %p103, %p104
    %p106 = pneg %p105
    // Predicated region
    $region9: #{discriminator_forward.6} parent=5 // pred_check
      _
    $region10: #{discriminator_forward.6} parent=5 // pred_check_branch
      %108 = sbr.rel (%p105) target = $region12
    $region11: #{discriminator_forward.6} parent=5 // pred_region
      %s109 = ssub.s32 %s8, 1
      // Predicated region
      $region13: #{discriminator_forward.6} parent=11 // pred_check
        %p110 = pneg %p69
      $region14: #{discriminator_forward.6} parent=11 // pred_check_branch
        %112 = sbr.rel (%p110) target = $region16
      $region15: #{discriminator_forward.6} parent=11 // pred_region
        _
      $region16: #{discriminator_forward.6} parent=11 // pred_fallthru
        _
    $region12: #{discriminator_forward.6} parent=5 // pred_fallthru
      _
    %p113 = scmp.lt.s32.totalorder %s8, 8
    // Predicated region
    $region17: #{discriminator_forward.6} parent=5 // pred_check
      %p114 = pneg %p113
    $region18: #{discriminator_forward.6} parent=5 // pred_check_branch
      %116 = sbr.rel (%p114) target = $region20
    $region19: #{discriminator_forward.6} parent=5 // pred_region
      // Predicated region
      $region21: #{discriminator_forward.6} parent=19 // pred_check
        %p117 = pneg %p42
      $region22: #{discriminator_forward.6} parent=19 // pred_check_branch
        %119 = sbr.rel (%p117) target = $region24
      $region23: #{discriminator_forward.6} parent=19 // pred_region
        %p120 = scmp.lt.s32.totalorder %s15, 1
        %s121 = scalar_select %p120, %s15, 1
        %p122 = scmp.lt.s32.totalorder %s16, 3
        %s123 = scalar_select %p122, %s16, 3
        %s124 = smul.addr %s123, 11
        %s125 = smul.addr %s121, 44
        %s126 = sadd.s32 %s124, %s125
        %s127 = smul.addr %s126, 4
        %s128 = scalar_lea.vmem %s0, %s127
      $region24: #{discriminator_forward.6} parent=19 // pred_fallthru
        _
    $region20: #{discriminator_forward.6} parent=5 // pred_fallthru
      _
    %p129 = scmp.le.s32.totalorder 1, %s8
    %p130 = scmp.lt.s32.totalorder %s8, 9
    %p131 = pnand %p129, %p130
    %p132 = pneg %p131
    // Predicated region
    $region25: #{discriminator_forward.6} parent=5 // pred_check
      _
    $region26: #{discriminator_forward.6} parent=5 // pred_check_branch
      %134 = sbr.rel (%p131) target = $region28
    $region27: #{discriminator_forward.6} parent=5 // pred_region
      %s135 = ssub.s32 %s8, 1
      %p136 = scmp.lt.s32.totalorder %s17, 1
      %s137 = scalar_select %p136, %s17, 1
      %p138 = scmp.lt.s32.totalorder %s18, 3
      %s139 = scalar_select %p138, %s18, 3
      %s140 = smul.addr %s139, 11
      %s141 = smul.addr %s137, 44
      %s142 = sadd.s32 %s140, %s141
      %s143 = smul.addr %s142, 4
      %s144 = scalar_lea.vmem %s0, %s143
      %p145 = pneg %p48
      %p146 = pneg %p45
      %p147 = pneg %p69
      %p148 = pneg %p66
      %p149 = pneg %p95
      %p150 = pneg %p92
      %p151 = scmp.lt.s32.totalorder %s17, 1
      %s152 = scalar_select %p151, %s17, 1
      %s153 = smul.addr %s152, 9
      %s154 = smul.addr %s153, 4
      %s155 = scalar_lea.vmem %s2, %s154
      %p156 = scmp.lt.s32.totalorder %s17, 1
      %s157 = scalar_select %p156, %s17, 1
      %p158 = scmp.lt.s32.totalorder %s18, 3
      %s159 = scalar_select %p158, %s18, 3
      %s160 = smul.addr %s159, 11
      %s161 = smul.addr %s157, 44
      %s162 = sadd.s32 %s160, %s161
      %s163 = smul.addr %s162, 4
      %s164 = scalar_lea.vmem %s0, %s163
      %p165 = scmp.lt.s32.totalorder %s17, 1
      %s166 = scalar_select %p165, %s17, 1
      %s167 = smul.addr %s166, 9
      %s168 = smul.addr %s167, 4
      %s169 = scalar_lea.vmem %s2, %s168
      %s171 = smul.u32 %s18, 4
      %v172 = vld [vmem:[%s164] sm:$0xf]
      %v173 = vld [vmem:[%s164 + $0x4] sm:$0xf]
      %v174 = vld [vmem:[%s164 + $0x8] sm:$0xf]
      %v175 = vld [vmem:[%s164 + $0xc] sm:$0xf]
      %v176 = vld [vmem:[%s164 + $0x10] sm:$0xf]
      %v177 = vld [vmem:[%s164 + $0x14] sm:$0xf]
      %v178 = vld [vmem:[%s164 + $0x18] sm:$0xf]
      %v179 = vld [vmem:[%s164 + $0x1c] sm:$0xf]
      %v180 = vld [vmem:[%s164 + $0x20] sm:$0xf]
      %s181 = smul.addr %s171, 4
      %s182 = scalar_lea.vmem %s1, %s181
      %v183 = vld [vmem:[%s182] sm:$0xf]
      %v184 = vld [vmem:[%s164 + $0x24] sm:$0x1]
      %s185 = sadd.s32 %s171, 1
      %s186 = smul.addr %s185, 4
      %s187 = scalar_lea.vmem %s1, %s186
      %v188 = vld [vmem:[%s187] sm:$0xf]
      %v199 = vunpack.c.l.b16 %v172
      %v200 = vunpack.c.l.b16 %v173
      %v201 = vunpack.c.l.b16 %v174
      %v202 = vunpack.c.l.b16 %v175
      %v203 = vunpack.c.l.b16 %v176
      %v204 = vunpack.c.l.b16 %v177
      %v205 = vunpack.c.l.b16 %v178
      %v206 = vunpack.c.l.b16 %v179
      %v207 = vunpack.c.l.b16 %v180
      %v208 = vunpack.c.l.b16 %v184
      %v209 = vpack.c.b16 %v200, %v199
      %v210 = vpack.c.b16 %v202, %v201
      %v211 = vpack.c.b16 %v204, %v203
      %v212 = vpack.c.b16 %v206, %v205
      %v213 = vpack.c.b16 %v208, %v207
      %vm214 = vsmask.f32 7424
      %v216 = vshrl.u32 %v209, 16
      %v218 = vshll.u32 %v209, 16
      %v220 = vrot.slane %v218, 1
      %v221 = vor.u32 %v216, %v220
      %v223 = vshll.u32 %v210, 16
      %v225 = vrot.slane %v223, 1
      %v226 = vsel %vm214, %v221, %v225
      %v227 = vshrl.u32 %v210, 16
      %v229 = vor.u32 %v227, %v225
      %v231 = vshll.u32 %v211, 16
      %v233 = vrot.slane %v231, 1
      %v234 = vsel %vm214, %v229, %v233
      %v235 = vshrl.u32 %v211, 16
      %v237 = vor.u32 %v235, %v233
      %v239 = vshll.u32 %v212, 16
      %v241 = vrot.slane %v239, 1
      %v242 = vsel %vm214, %v237, %v241
      %v243 = vshrl.u32 %v212, 16
      %v245 = vor.u32 %v243, %v241
      %v247 = vshll.u32 %v213, 16
      %v249 = vrot.slane %v247, 1
      %v250 = vsel %vm214, %v245, %v249
      %v251 = vshrl.u32 %v213, 16
      %v253 = vor.u32 %v251, %v249
      %vm254 = vcmask 64512
      %v256 = vsel %vm254, %v226, 0
      %v259 = vsel %vm254, %v234, 0
      %v262 = vsel %vm254, %v242, 0
      %v265 = vsel %vm254, %v250, 0
      %v268 = vsel %vm254, %v253, 0
      %vm270 = vcmask 1043456
      %v272 = vsel %vm270, %v188, 0
      %274 = vmatpush.bf16.msra.mxu0 0
      %275 = vmatpush.bf16.msra.mxu0 0
      %276 = vmatpush.bf16.msra.mxu0 0
      %277 = vmatpush.bf16.msra.mxu0 0
      %278 = vmatpush.bf16.msra.mxu0 0
      %279 = vmatpush.bf16.msra.mxu0 0
      %280 = vmatpush.bf16.msra.mxu0 0
      %281 = vmatpush.bf16.msra.mxu0 %v272
      %282 = vmatmul.bf16.gmra.mxu0 %v256
      %v283 = vpop.f32.mrf.mxu0
      %v284 = vadd.f32 0.0, %v283
      %v285 = vpop.f32.mrf.mxu0
      %v286 = vadd.f32 0.0, %v285
      %287 = vmatmul.bf16.gmra.mxu0 %v259
      %v288 = vpop.f32.mrf.mxu0
      %v289 = vadd.f32 0.0, %v288
      %v290 = vpop.f32.mrf.mxu0
      %v291 = vadd.f32 0.0, %v290
      %292 = vmatmul.bf16.gmra.mxu0 %v262
      %v293 = vpop.f32.mrf.mxu0
      %v294 = vadd.f32 0.0, %v293
      %v295 = vpop.f32.mrf.mxu0
      %v296 = vadd.f32 0.0, %v295
      %297 = vmatmul.bf16.gmra.mxu0 %v265
      %v298 = vpop.f32.mrf.mxu0
      %v299 = vadd.f32 0.0, %v298
      %v300 = vpop.f32.mrf.mxu0
      %v301 = vadd.f32 0.0, %v300
      %302 = vmatmul.bf16.gmra.mxu0 %v268
      %v303 = vpop.f32.mrf.mxu0
      %v304 = vadd.f32 0.0, %v303
      %v305 = vpop.f32.mrf.mxu0
      %306 = vdwg.mxu0
      %v307 = vpack.c.b16 %v207, %v207
      %v308 = vsel %vm254, %v209, 0
      %v310 = vsel %vm254, %v210, 0
      %v312 = vsel %vm254, %v211, 0
      %v314 = vsel %vm254, %v212, 0
      %v317 = vsel %vm254, %v307, 0
      %v320 = vsel %vm270, %v183, 0
      %322 = vmatpush.bf16.msra.mxu0 0
      %323 = vmatpush.bf16.msra.mxu0 0
      %324 = vmatpush.bf16.msra.mxu0 0
      %325 = vmatpush.bf16.msra.mxu0 0
      %326 = vmatpush.bf16.msra.mxu0 0
      %327 = vmatpush.bf16.msra.mxu0 0
      %328 = vmatpush.bf16.msra.mxu0 0
      %329 = vmatpush.bf16.msra.mxu0 %v320
      %330 = vmatmul.bf16.gmra.mxu0 %v308
      %v331 = vpop.f32.mrf.mxu0
      %v332 = vadd.f32 %v284, %v331
      %v333 = vpop.f32.mrf.mxu0
      %v334 = vadd.f32 %v286, %v333
      %335 = vmatmul.bf16.gmra.mxu0 %v310
      %v336 = vpop.f32.mrf.mxu0
      %v337 = vadd.f32 %v289, %v336
      %v338 = vpop.f32.mrf.mxu0
      %v339 = vadd.f32 %v291, %v338
      %340 = vmatmul.bf16.gmra.mxu0 %v312
      %v341 = vpop.f32.mrf.mxu0
      %v342 = vadd.f32 %v294, %v341
      %v343 = vpop.f32.mrf.mxu0
      %v344 = vadd.f32 %v296, %v343
      %345 = vmatmul.bf16.gmra.mxu0 %v314
      %v346 = vpop.f32.mrf.mxu0
      %v347 = vadd.f32 %v299, %v346
      %v348 = vpop.f32.mrf.mxu0
      %v349 = vadd.f32 %v301, %v348
      %350 = vmatmul.bf16.gmra.mxu0 %v317
      %v351 = vpop.f32.mrf.mxu0
      %v352 = vadd.f32 %v304, %v351
      %v353 = vpop.f32.mrf.mxu0
      %354 = vdwg.mxu0
      %v355 = vld [vmem:[%s164 + $0x4] sm:$0xf]
      %v356 = vld [vmem:[%s164 + $0x8] sm:$0xf]
      %v357 = vld [vmem:[%s164 + $0xc] sm:$0xf]
      %v358 = vld [vmem:[%s164 + $0x10] sm:$0xf]
      %v359 = vld [vmem:[%s164 + $0x14] sm:$0xf]
      %v360 = vld [vmem:[%s164 + $0x18] sm:$0xf]
      %v361 = vld [vmem:[%s164 + $0x1c] sm:$0xf]
      %v362 = vld [vmem:[%s164 + $0x20] sm:$0xf]
      %v363 = vld [vmem:[%s164 + $0x24] sm:$0xf]
      %v364 = vld [vmem:[%s164 + $0x28] sm:$0x1]
      %s365 = sadd.s32 %s171, 2
      %s366 = smul.addr %s365, 4
      %s367 = scalar_lea.vmem %s1, %s366
      %v368 = vld [vmem:[%s367] sm:$0xf]
      %v379 = vunpack.c.l.b16 %v355
      %v380 = vunpack.c.l.b16 %v356
      %v381 = vunpack.c.l.b16 %v357
      %v382 = vunpack.c.l.b16 %v358
      %v383 = vunpack.c.l.b16 %v359
      %v384 = vunpack.c.l.b16 %v360
      %v385 = vunpack.c.l.b16 %v361
      %v386 = vunpack.c.l.b16 %v362
      %v387 = vunpack.c.l.b16 %v363
      %v388 = vunpack.c.l.b16 %v364
      %v389 = vpack.c.b16 %v380, %v379
      %v390 = vpack.c.b16 %v382, %v381
      %v391 = vpack.c.b16 %v384, %v383
      %v392 = vpack.c.b16 %v386, %v385
      %v393 = vpack.c.b16 %v388, %v387
      %v395 = vshrl.u32 %v389, 16
      %v397 = vshll.u32 %v389, 16
      %v399 = vrot.slane %v397, 1
      %v400 = vor.u32 %v395, %v399
      %v402 = vshll.u32 %v390, 16
      %v404 = vrot.slane %v402, 1
      %v405 = vsel %vm214, %v400, %v404
      %v406 = vshrl.u32 %v390, 16
      %v408 = vor.u32 %v406, %v404
      %v410 = vshll.u32 %v391, 16
      %v412 = vrot.slane %v410, 1
      %v413 = vsel %vm214, %v408, %v412
      %v414 = vshrl.u32 %v391, 16
      %v416 = vor.u32 %v414, %v412
      %v418 = vshll.u32 %v392, 16
      %v420 = vrot.slane %v418, 1
      %v421 = vsel %vm214, %v416, %v420
      %v422 = vshrl.u32 %v392, 16
      %v424 = vor.u32 %v422, %v420
      %v426 = vshll.u32 %v393, 16
      %v428 = vrot.slane %v426, 1
      %v429 = vsel %vm214, %v424, %v428
      %v430 = vshrl.u32 %v393, 16
      %v432 = vor.u32 %v430, %v428
      %v434 = vsel %vm254, %v405, 0
      %v437 = vsel %vm254, %v413, 0
      %v440 = vsel %vm254, %v421, 0
      %v443 = vsel %vm254, %v429, 0
      %v446 = vsel %vm254, %v432, 0
      %v449 = vsel %vm270, %v368, 0
      %451 = vmatpush.bf16.msra.mxu0 0
      %452 = vmatpush.bf16.msra.mxu0 0
      %453 = vmatpush.bf16.msra.mxu0 0
      %454 = vmatpush.bf16.msra.mxu0 0
      %455 = vmatpush.bf16.msra.mxu0 0
      %456 = vmatpush.bf16.msra.mxu0 0
      %457 = vmatpush.bf16.msra.mxu0 0
      %458 = vmatpush.bf16.msra.mxu0 %v449
      %459 = vmatmul.bf16.gmra.mxu0 %v434
      %v460 = vpop.f32.mrf.mxu0
      %v461 = vadd.f32 0.0, %v460
      %v462 = vpop.f32.mrf.mxu0
      %v463 = vadd.f32 0.0, %v462
      %464 = vmatmul.bf16.gmra.mxu0 %v437
      %v465 = vpop.f32.mrf.mxu0
      %v466 = vadd.f32 0.0, %v465
      %v467 = vpop.f32.mrf.mxu0
      %v468 = vadd.f32 0.0, %v467
      %469 = vmatmul.bf16.gmra.mxu0 %v440
      %v470 = vpop.f32.mrf.mxu0
      %v471 = vadd.f32 0.0, %v470
      %v472 = vpop.f32.mrf.mxu0
      %v473 = vadd.f32 0.0, %v472
      %474 = vmatmul.bf16.gmra.mxu0 %v443
      %v475 = vpop.f32.mrf.mxu0
      %v476 = vadd.f32 0.0, %v475
      %v477 = vpop.f32.mrf.mxu0
      %v478 = vadd.f32 0.0, %v477
      %479 = vmatmul.bf16.gmra.mxu0 %v446
      %v480 = vpop.f32.mrf.mxu0
      %v481 = vadd.f32 0.0, %v480
      %v482 = vpop.f32.mrf.mxu0
      %483 = vdwg.mxu0
      %v484 = vadd.f32 %v332, %v461
      %v485 = vadd.f32 %v334, %v463
      %v486 = vadd.f32 %v337, %v466
      %v487 = vadd.f32 %v339, %v468
      %v488 = vadd.f32 %v342, %v471
      %v489 = vadd.f32 %v344, %v473
      %v490 = vadd.f32 %v347, %v476
      %v491 = vadd.f32 %v349, %v478
      %v492 = vadd.f32 %v352, %v481
      %v493 = vld [vmem:[%s164 + $0x4] sm:$0xe]
      %s494 = sadd.s32 %s171, 3
      %s495 = smul.addr %s494, 4
      %s496 = scalar_lea.vmem %s1, %s495
      %v497 = vld [vmem:[%s496] sm:$0xf]
      %v499 = vunpack.c.l.b16 %v493
      %v500 = vpack.c.b16 %v380, %v499
      %vm501 = vcmask 1046528
      %v502 = vrot.slane %v500, 1
      %v503 = vrot.slane %v390, 1
      %v504 = vsel %vm501, %v502, %v503
      %v505 = vrot.slane %v391, 1
      %v506 = vsel %vm501, %v503, %v505
      %v507 = vrot.slane %v392, 1
      %v508 = vsel %vm501, %v505, %v507
      %v509 = vrot.slane %v393, 1
      %v510 = vsel %vm501, %v507, %v509
      %v512 = vsel %vm254, %v504, 0
      %v515 = vsel %vm254, %v506, 0
      %v518 = vsel %vm254, %v508, 0
      %v521 = vsel %vm254, %v510, 0
      %v524 = vsel %vm254, %v509, 0
      %v527 = vsel %vm270, %v497, 0
      %529 = vmatpush.bf16.msra.mxu0 0
      %530 = vmatpush.bf16.msra.mxu0 0
      %531 = vmatpush.bf16.msra.mxu0 0
      %532 = vmatpush.bf16.msra.mxu0 0
      %533 = vmatpush.bf16.msra.mxu0 0
      %534 = vmatpush.bf16.msra.mxu0 0
      %535 = vmatpush.bf16.msra.mxu0 0
      %536 = vmatpush.bf16.msra.mxu0 %v527
      %537 = vmatmul.bf16.gmra.mxu0 %v512
      %v538 = vpop.f32.mrf.mxu0
      %v539 = vadd.f32 0.0, %v538
      %v540 = vpop.f32.mrf.mxu0
      %v541 = vadd.f32 0.0, %v540
      %542 = vmatmul.bf16.gmra.mxu0 %v515
      %v543 = vpop.f32.mrf.mxu0
      %v544 = vadd.f32 0.0, %v543
      %v545 = vpop.f32.mrf.mxu0
      %v546 = vadd.f32 0.0, %v545
      %547 = vmatmul.bf16.gmra.mxu0 %v518
      %v548 = vpop.f32.mrf.mxu0
      %v549 = vadd.f32 0.0, %v548
      %v550 = vpop.f32.mrf.mxu0
      %v551 = vadd.f32 0.0, %v550
      %552 = vmatmul.bf16.gmra.mxu0 %v521
      %v553 = vpop.f32.mrf.mxu0
      %v554 = vadd.f32 0.0, %v553
      %v555 = vpop.f32.mrf.mxu0
      %v556 = vadd.f32 0.0, %v555
      %557 = vmatmul.bf16.gmra.mxu0 %v524
      %v558 = vpop.f32.mrf.mxu0
      %v559 = vadd.f32 0.0, %v558
      %v560 = vpop.f32.mrf.mxu0
      %561 = vdwg.mxu0
      %v562 = vadd.f32 %v484, %v539
      %v563 = vadd.f32 %v485, %v541
      %v564 = vadd.f32 %v486, %v544
      %v565 = vadd.f32 %v487, %v546
      %v566 = vadd.f32 %v488, %v549
      %v567 = vadd.f32 %v489, %v551
      %v568 = vadd.f32 %v490, %v554
      %v569 = vadd.f32 %v491, %v556
      %v570 = vadd.f32 %v492, %v559
      %p571 = scmp.eq.s32.totalorder %s18, 0
      // Predicated region
      $region29: #{discriminator_forward.6} parent=27 // pred_check
        %p572 = pneg %p571
      $region30: #{discriminator_forward.6} parent=27 // pred_check_branch
        %574 = sbr.rel (%p572) target = $region32
      $region31: #{discriminator_forward.6} parent=27 // pred_region
        %vm575 = vcmask 130048
        %576 = vst.msk [vmem:[#allocation2] sm:$0xff] %vm575, %v562
        %577 = vst.msk [vmem:[#allocation2 + $0x8] sm:$0xff] %vm575, %v563
        %578 = vst.msk [vmem:[#allocation2 + $0x10] sm:$0xff] %vm575, %v564
        %579 = vst.msk [vmem:[#allocation2 + $0x18] sm:$0xff] %vm575, %v565
        %580 = vst.msk [vmem:[#allocation2 + $0x20] sm:$0xff] %vm575, %v566
        %581 = vst.msk [vmem:[#allocation2 + $0x28] sm:$0xff] %vm575, %v567
        %582 = vst.msk [vmem:[#allocation2 + $0x30] sm:$0xff] %vm575, %v568
        %583 = vst.msk [vmem:[#allocation2 + $0x38] sm:$0xff] %vm575, %v569
        %584 = vst.msk [vmem:[#allocation2 + $0x40] sm:$0xff] %vm575, %v570
      $region32: #{discriminator_forward.6} parent=27 // pred_fallthru
        _
      %p585 = scmp.gt.s32.totalorder %s18, 0
      %p586 = scmp.lt.s32.totalorder %s18, 3
      %p587 = pnand %p585, %p586
      %p588 = pneg %p587
      // Predicated region
      $region33: #{discriminator_forward.6} parent=27 // pred_check
        _
      $region34: #{discriminator_forward.6} parent=27 // pred_check_branch
        %590 = sbr.rel (%p587) target = $region36
      $region35: #{discriminator_forward.6} parent=27 // pred_region
        %v591 = vld [vmem:[#allocation2] sm:$0xff]
        %v592 = vld [vmem:[#allocation2 + $0x8] sm:$0xff]
        %v593 = vld [vmem:[#allocation2 + $0x10] sm:$0xff]
        %v594 = vld [vmem:[#allocation2 + $0x18] sm:$0xff]
        %v595 = vld [vmem:[#allocation2 + $0x20] sm:$0xff]
        %v596 = vld [vmem:[#allocation2 + $0x28] sm:$0xff]
        %v597 = vld [vmem:[#allocation2 + $0x30] sm:$0xff]
        %v598 = vld [vmem:[#allocation2 + $0x38] sm:$0xff]
        %v599 = vld [vmem:[#allocation2 + $0x40] sm:$0xff]
        %v600 = vadd.f32 %v591, %v562
        %v601 = vadd.f32 %v592, %v563
        %v602 = vadd.f32 %v593, %v564
        %v603 = vadd.f32 %v594, %v565
        %v604 = vadd.f32 %v595, %v566
        %v605 = vadd.f32 %v596, %v567
        %v606 = vadd.f32 %v597, %v568
        %v607 = vadd.f32 %v598, %v569
        %v608 = vadd.f32 %v599, %v570
        %vm609 = vcmask 130048
        %610 = vst.msk [vmem:[#allocation2] sm:$0xff] %vm609, %v600
        %611 = vst.msk [vmem:[#allocation2 + $0x8] sm:$0xff] %vm609, %v601
        %612 = vst.msk [vmem:[#allocation2 + $0x10] sm:$0xff] %vm609, %v602
        %613 = vst.msk [vmem:[#allocation2 + $0x18] sm:$0xff] %vm609, %v603
        %614 = vst.msk [vmem:[#allocation2 + $0x20] sm:$0xff] %vm609, %v604
        %615 = vst.msk [vmem:[#allocation2 + $0x28] sm:$0xff] %vm609, %v605
        %616 = vst.msk [vmem:[#allocation2 + $0x30] sm:$0xff] %vm609, %v606
        %617 = vst.msk [vmem:[#allocation2 + $0x38] sm:$0xff] %vm609, %v607
        %618 = vst.msk [vmem:[#allocation2 + $0x40] sm:$0xff] %vm609, %v608
      $region36: #{discriminator_forward.6} parent=27 // pred_fallthru
        _
      %p619 = scmp.eq.s32.totalorder %s18, 3
      // Predicated region
      $region37: #{discriminator_forward.6} parent=27 // pred_check
        %p620 = pneg %p619
      $region38: #{discriminator_forward.6} parent=27 // pred_check_branch
        %622 = sbr.rel (%p620) target = $region40
      $region39: #{discriminator_forward.6} parent=27 // pred_region
        %v623 = vld [vmem:[#allocation2] sm:$0xff]
        %v624 = vld [vmem:[#allocation2 + $0x8] sm:$0xff]
        %v625 = vld [vmem:[#allocation2 + $0x10] sm:$0xff]
        %v626 = vld [vmem:[#allocation2 + $0x18] sm:$0xff]
        %v627 = vld [vmem:[#allocation2 + $0x20] sm:$0xff]
        %v628 = vld [vmem:[#allocation2 + $0x28] sm:$0xff]
        %v629 = vld [vmem:[#allocation2 + $0x30] sm:$0xff]
        %v630 = vld [vmem:[#allocation2 + $0x38] sm:$0xff]
        %v631 = vld [vmem:[#allocation2 + $0x40] sm:$0xff]
        %v632 = vadd.f32 %v623, %v562
        %v633 = vadd.f32 %v624, %v563
        %v634 = vadd.f32 %v625, %v564
        %v635 = vadd.f32 %v626, %v565
        %v636 = vadd.f32 %v627, %v566
        %v637 = vadd.f32 %v628, %v567
        %v638 = vadd.f32 %v629, %v568
        %v639 = vadd.f32 %v630, %v569
        %v640 = vadd.f32 %v631, %v570
        %v641 = vlaneseq
        %v642 = vshrl.u32 %v641, 7
        %v643 = vadd.s32 %v642, 8
        %v644 = vadd.s32 %v642, 16
        %v645 = vadd.s32 %v642, 24
        %v646 = vadd.s32 %v642, 32
        %v647 = vadd.s32 %v642, 40
        %v648 = vadd.s32 %v642, 48
        %v649 = vadd.s32 %v642, 56
        %v650 = vadd.s32 %v642, 64
        %vm651 = vcmp.lt.s32.totalorder %v642, 0
        %v652 = vsub.s32 0, %v642
        %v653 = vsel %vm651, %v652, %v642
        %v654 = vand.u32 %v653, 65535
        %v655 = vshrl.u32 %v653, 16
        %v657 = vmul.u32 %v654, 14564
        %v658 = vmul.u32 %v654, 58254
        %v659 = vmul.u32 %v655, 14564
        %v660 = vmul.u32 %v655, 58254
        %v661 = vshll.u32 %v658, 16
        %v662 = vshrl.u32 %v658, 16
        %v663 = vshll.u32 %v659, 16
        %v664 = vshrl.u32 %v659, 16
        %vm665 = vc.u32 %v657, %v661
        %v666 = vsel %vm665, 1, 0
        %v667 = vadd.s32 %v657, %v661
        %v668 = vadd.s32 %v660, %v666
        %vm669 = vc.u32 %v667, %v663
        %v670 = vsel %vm669, 1, 0
        %v671 = vadd.s32 %v667, %v663
        %v672 = vadd.s32 %v668, %v670
        %v673 = vadd.s32 %v672, %v662
        %v674 = vadd.s32 %v673, %v664
        %v675 = vshrl.u32 %v674, 3
        %v676 = vmul.u32 %v675, 9
        %v677 = vsub.s32 %v653, %v676
        %v678 = vsub.s32 0, %v677
        %v679 = vsel %vm651, %v678, %v677
        %vm680 = vcmp.lt.s32.totalorder %v643, 0
        %v681 = vsub.s32 0, %v643
        %v682 = vsel %vm680, %v681, %v643
        %v683 = vand.u32 %v682, 65535
        %v684 = vshrl.u32 %v682, 16
        %v686 = vmul.u32 %v683, 14564
        %v687 = vmul.u32 %v683, 58254
        %v688 = vmul.u32 %v684, 14564
        %v689 = vmul.u32 %v684, 58254
        %v690 = vshll.u32 %v687, 16
        %v691 = vshrl.u32 %v687, 16
        %v692 = vshll.u32 %v688, 16
        %v693 = vshrl.u32 %v688, 16
        %vm694 = vc.u32 %v686, %v690
        %v695 = vsel %vm694, 1, 0
        %v696 = vadd.s32 %v686, %v690
        %v697 = vadd.s32 %v689, %v695
        %vm698 = vc.u32 %v696, %v692
        %v699 = vsel %vm698, 1, 0
        %v700 = vadd.s32 %v696, %v692
        %v701 = vadd.s32 %v697, %v699
        %v702 = vadd.s32 %v701, %v691
        %v703 = vadd.s32 %v702, %v693
        %v704 = vshrl.u32 %v703, 3
        %v705 = vmul.u32 %v704, 9
        %v706 = vsub.s32 %v682, %v705
        %v707 = vsub.s32 0, %v706
        %v708 = vsel %vm680, %v707, %v706
        %vm709 = vcmp.lt.s32.totalorder %v644, 0
        %v710 = vsub.s32 0, %v644
        %v711 = vsel %vm709, %v710, %v644
        %v712 = vand.u32 %v711, 65535
        %v713 = vshrl.u32 %v711, 16
        %v715 = vmul.u32 %v712, 14564
        %v716 = vmul.u32 %v712, 58254
        %v717 = vmul.u32 %v713, 14564
        %v718 = vmul.u32 %v713, 58254
        %v719 = vshll.u32 %v716, 16
        %v720 = vshrl.u32 %v716, 16
        %v721 = vshll.u32 %v717, 16
        %v722 = vshrl.u32 %v717, 16
        %vm723 = vc.u32 %v715, %v719
        %v724 = vsel %vm723, 1, 0
        %v725 = vadd.s32 %v715, %v719
        %v726 = vadd.s32 %v718, %v724
        %vm727 = vc.u32 %v725, %v721
        %v728 = vsel %vm727, 1, 0
        %v729 = vadd.s32 %v725, %v721
        %v730 = vadd.s32 %v726, %v728
        %v731 = vadd.s32 %v730, %v720
        %v732 = vadd.s32 %v731, %v722
        %v733 = vshrl.u32 %v732, 3
        %v734 = vmul.u32 %v733, 9
        %v735 = vsub.s32 %v711, %v734
        %v736 = vsub.s32 0, %v735
        %v737 = vsel %vm709, %v736, %v735
        %vm738 = vcmp.lt.s32.totalorder %v645, 0
        %v739 = vsub.s32 0, %v645
        %v740 = vsel %vm738, %v739, %v645
        %v741 = vand.u32 %v740, 65535
        %v742 = vshrl.u32 %v740, 16
        %v744 = vmul.u32 %v741, 14564
        %v745 = vmul.u32 %v741, 58254
        %v746 = vmul.u32 %v742, 14564
        %v747 = vmul.u32 %v742, 58254
        %v748 = vshll.u32 %v745, 16
        %v749 = vshrl.u32 %v745, 16
        %v750 = vshll.u32 %v746, 16
        %v751 = vshrl.u32 %v746, 16
        %vm752 = vc.u32 %v744, %v748
        %v753 = vsel %vm752, 1, 0
        %v754 = vadd.s32 %v744, %v748
        %v755 = vadd.s32 %v747, %v753
        %vm756 = vc.u32 %v754, %v750
        %v757 = vsel %vm756, 1, 0
        %v758 = vadd.s32 %v754, %v750
        %v759 = vadd.s32 %v755, %v757
        %v760 = vadd.s32 %v759, %v749
        %v761 = vadd.s32 %v760, %v751
        %v762 = vshrl.u32 %v761, 3
        %v763 = vmul.u32 %v762, 9
        %v764 = vsub.s32 %v740, %v763
        %v765 = vsub.s32 0, %v764
        %v766 = vsel %vm738, %v765, %v764
        %vm767 = vcmp.lt.s32.totalorder %v646, 0
        %v768 = vsub.s32 0, %v646
        %v769 = vsel %vm767, %v768, %v646
        %v770 = vand.u32 %v769, 65535
        %v771 = vshrl.u32 %v769, 16
        %v773 = vmul.u32 %v770, 14564
        %v774 = vmul.u32 %v770, 58254
        %v775 = vmul.u32 %v771, 14564
        %v776 = vmul.u32 %v771, 58254
        %v777 = vshll.u32 %v774, 16
        %v778 = vshrl.u32 %v774, 16
        %v779 = vshll.u32 %v775, 16
        %v780 = vshrl.u32 %v775, 16
        %vm781 = vc.u32 %v773, %v777
        %v782 = vsel %vm781, 1, 0
        %v783 = vadd.s32 %v773, %v777
        %v784 = vadd.s32 %v776, %v782
        %vm785 = vc.u32 %v783, %v779
        %v786 = vsel %vm785, 1, 0
        %v787 = vadd.s32 %v783, %v779
        %v788 = vadd.s32 %v784, %v786
        %v789 = vadd.s32 %v788, %v778
        %v790 = vadd.s32 %v789, %v780
        %v791 = vshrl.u32 %v790, 3
        %v792 = vmul.u32 %v791, 9
        %v793 = vsub.s32 %v769, %v792
        %v794 = vsub.s32 0, %v793
        %v795 = vsel %vm767, %v794, %v793
        %vm796 = vcmp.lt.s32.totalorder %v647, 0
        %v797 = vsub.s32 0, %v647
        %v798 = vsel %vm796, %v797, %v647
        %v799 = vand.u32 %v798, 65535
        %v800 = vshrl.u32 %v798, 16
        %v802 = vmul.u32 %v799, 14564
        %v803 = vmul.u32 %v799, 58254
        %v804 = vmul.u32 %v800, 14564
        %v805 = vmul.u32 %v800, 58254
        %v806 = vshll.u32 %v803, 16
        %v807 = vshrl.u32 %v803, 16
        %v808 = vshll.u32 %v804, 16
        %v809 = vshrl.u32 %v804, 16
        %vm810 = vc.u32 %v802, %v806
        %v811 = vsel %vm810, 1, 0
        %v812 = vadd.s32 %v802, %v806
        %v813 = vadd.s32 %v805, %v811
        %vm814 = vc.u32 %v812, %v808
        %v815 = vsel %vm814, 1, 0
        %v816 = vadd.s32 %v812, %v808
        %v817 = vadd.s32 %v813, %v815
        %v818 = vadd.s32 %v817, %v807
        %v819 = vadd.s32 %v818, %v809
        %v820 = vshrl.u32 %v819, 3
        %v821 = vmul.u32 %v820, 9
        %v822 = vsub.s32 %v798, %v821
        %v823 = vsub.s32 0, %v822
        %v824 = vsel %vm796, %v823, %v822
        %vm825 = vcmp.lt.s32.totalorder %v648, 0
        %v826 = vsub.s32 0, %v648
        %v827 = vsel %vm825, %v826, %v648
        %v828 = vand.u32 %v827, 65535
        %v829 = vshrl.u32 %v827, 16
        %v831 = vmul.u32 %v828, 14564
        %v832 = vmul.u32 %v828, 58254
        %v833 = vmul.u32 %v829, 14564
        %v834 = vmul.u32 %v829, 58254
        %v835 = vshll.u32 %v832, 16
        %v836 = vshrl.u32 %v832, 16
        %v837 = vshll.u32 %v833, 16
        %v838 = vshrl.u32 %v833, 16
        %vm839 = vc.u32 %v831, %v835
        %v840 = vsel %vm839, 1, 0
        %v841 = vadd.s32 %v831, %v835
        %v842 = vadd.s32 %v834, %v840
        %vm843 = vc.u32 %v841, %v837
        %v844 = vsel %vm843, 1, 0
        %v845 = vadd.s32 %v841, %v837
        %v846 = vadd.s32 %v842, %v844
        %v847 = vadd.s32 %v846, %v836
        %v848 = vadd.s32 %v847, %v838
        %v849 = vshrl.u32 %v848, 3
        %v850 = vmul.u32 %v849, 9
        %v851 = vsub.s32 %v827, %v850
        %v852 = vsub.s32 0, %v851
        %v853 = vsel %vm825, %v852, %v851
        %vm854 = vcmp.lt.s32.totalorder %v649, 0
        %v855 = vsub.s32 0, %v649
        %v856 = vsel %vm854, %v855, %v649
        %v857 = vand.u32 %v856, 65535
        %v858 = vshrl.u32 %v856, 16
        %v860 = vmul.u32 %v857, 14564
        %v861 = vmul.u32 %v857, 58254
        %v862 = vmul.u32 %v858, 14564
        %v863 = vmul.u32 %v858, 58254
        %v864 = vshll.u32 %v861, 16
        %v865 = vshrl.u32 %v861, 16
        %v866 = vshll.u32 %v862, 16
        %v867 = vshrl.u32 %v862, 16
        %vm868 = vc.u32 %v860, %v864
        %v869 = vsel %vm868, 1, 0
        %v870 = vadd.s32 %v860, %v864
        %v871 = vadd.s32 %v863, %v869
        %vm872 = vc.u32 %v870, %v866
        %v873 = vsel %vm872, 1, 0
        %v874 = vadd.s32 %v870, %v866
        %v875 = vadd.s32 %v871, %v873
        %v876 = vadd.s32 %v875, %v865
        %v877 = vadd.s32 %v876, %v867
        %v878 = vshrl.u32 %v877, 3
        %v879 = vmul.u32 %v878, 9
        %v880 = vsub.s32 %v856, %v879
        %v881 = vsub.s32 0, %v880
        %v882 = vsel %vm854, %v881, %v880
        %vm883 = vcmp.lt.s32.totalorder %v650, 0
        %v884 = vsub.s32 0, %v650
        %v885 = vsel %vm883, %v884, %v650
        %v886 = vand.u32 %v885, 65535
        %v887 = vshrl.u32 %v885, 16
        %v889 = vmul.u32 %v886, 14564
        %v890 = vmul.u32 %v886, 58254
        %v891 = vmul.u32 %v887, 14564
        %v892 = vmul.u32 %v887, 58254
        %v893 = vshll.u32 %v890, 16
        %v894 = vshrl.u32 %v890, 16
        %v895 = vshll.u32 %v891, 16
        %v896 = vshrl.u32 %v891, 16
        %vm897 = vc.u32 %v889, %v893
        %v898 = vsel %vm897, 1, 0
        %v899 = vadd.s32 %v889, %v893
        %v900 = vadd.s32 %v892, %v898
        %vm901 = vc.u32 %v899, %v895
        %v902 = vsel %vm901, 1, 0
        %v903 = vadd.s32 %v899, %v895
        %v904 = vadd.s32 %v900, %v902
        %v905 = vadd.s32 %v904, %v894
        %v906 = vadd.s32 %v905, %v896
        %v907 = vshrl.u32 %v906, 3
        %v908 = vmul.u32 %v907, 9
        %v909 = vsub.s32 %v885, %v908
        %v910 = vsub.s32 0, %v909
        %v911 = vsel %vm883, %v910, %v909
        %vm912 = vcmp.ne.s32.totalorder %v679, 0
        %vm913 = vcmp.ne.s32.totalorder %v708, 0
        %vm914 = vcmp.ne.s32.totalorder %v737, 0
        %vm915 = vcmp.ne.s32.totalorder %v766, 0
        %vm916 = vcmp.ne.s32.totalorder %v795, 0
        %vm917 = vcmp.ne.s32.totalorder %v824, 0
        %vm918 = vcmp.ne.s32.totalorder %v853, 0
        %vm919 = vcmp.ne.s32.totalorder %v882, 0
        %vm920 = vcmp.ne.s32.totalorder %v911, 0
        %vm921 = vcmp.lt.s32.totalorder %v679, 0
        %vm922 = vcmp.lt.s32.totalorder %v708, 0
        %vm923 = vcmp.lt.s32.totalorder %v737, 0
        %vm924 = vcmp.lt.s32.totalorder %v766, 0
        %vm925 = vcmp.lt.s32.totalorder %v795, 0
        %vm926 = vcmp.lt.s32.totalorder %v824, 0
        %vm927 = vcmp.lt.s32.totalorder %v853, 0
        %vm928 = vcmp.lt.s32.totalorder %v882, 0
        %vm929 = vcmp.lt.s32.totalorder %v911, 0
        %vm930 = vmand %vm921, %vm912
        %vm931 = vmand %vm922, %vm913
        %vm932 = vmand %vm923, %vm914
        %vm933 = vmand %vm924, %vm915
        %vm934 = vmand %vm925, %vm916
        %vm935 = vmand %vm926, %vm917
        %vm936 = vmand %vm927, %vm918
        %vm937 = vmand %vm928, %vm919
        %vm938 = vmand %vm929, %vm920
        %v939 = vadd.s32 %v679, 9
        %v940 = vadd.s32 %v708, 9
        %v941 = vadd.s32 %v737, 9
        %v942 = vadd.s32 %v766, 9
        %v943 = vadd.s32 %v795, 9
        %v944 = vadd.s32 %v824, 9
        %v945 = vadd.s32 %v853, 9
        %v946 = vadd.s32 %v882, 9
        %v947 = vadd.s32 %v911, 9
        %v948 = vsel %vm930, %v939, %v679
        %v949 = vsel %vm931, %v940, %v708
        %v950 = vsel %vm932, %v941, %v737
        %v951 = vsel %vm933, %v942, %v766
        %v952 = vsel %vm934, %v943, %v795
        %v953 = vsel %vm935, %v944, %v824
        %v954 = vsel %vm936, %v945, %v853
        %v955 = vsel %vm937, %v946, %v882
        %v956 = vsel %vm938, %v947, %v911
        %vm957 = vcmp.lt.s32.totalorder %v948, 8
        %vm958 = vcmp.lt.s32.totalorder %v949, 8
        %vm959 = vcmp.lt.s32.totalorder %v950, 8
        %vm960 = vcmp.lt.s32.totalorder %v951, 8
        %vm961 = vcmp.lt.s32.totalorder %v952, 8
        %vm962 = vcmp.lt.s32.totalorder %v953, 8
        %vm963 = vcmp.lt.s32.totalorder %v954, 8
        %vm964 = vcmp.lt.s32.totalorder %v955, 8
        %vm965 = vcmp.lt.s32.totalorder %v956, 8
        %v966 = vsel %vm957, 1, 0
        %v967 = vsel %vm958, 1, 0
        %v968 = vsel %vm959, 1, 0
        %v969 = vsel %vm960, 1, 0
        %v970 = vsel %vm961, 1, 0
        %v971 = vsel %vm962, 1, 0
        %v972 = vsel %vm963, 1, 0
        %v973 = vsel %vm964, 1, 0
        %v974 = vsel %vm965, 1, 0
        %vm975 = vcmp.eq.s32.totalorder %v966, 1
        %vm976 = vcmp.eq.s32.totalorder %v967, 1
        %vm977 = vcmp.eq.s32.totalorder %v968, 1
        %vm978 = vcmp.eq.s32.totalorder %v969, 1
        %vm979 = vcmp.eq.s32.totalorder %v970, 1
        %vm980 = vcmp.eq.s32.totalorder %v971, 1
        %vm981 = vcmp.eq.s32.totalorder %v972, 1
        %vm982 = vcmp.eq.s32.totalorder %v973, 1
        %vm983 = vcmp.eq.s32.totalorder %v974, 1
        %v984 = vsel %vm975, %v632, 0.0
        %v985 = vsel %vm976, %v633, 0.0
        %v986 = vsel %vm977, %v634, 0.0
        %v987 = vsel %vm978, %v635, 0.0
        %v988 = vsel %vm979, %v636, 0.0
        %v989 = vsel %vm980, %v637, 0.0
        %v990 = vsel %vm981, %v638, 0.0
        %v991 = vsel %vm982, %v639, 0.0
        %v992 = vsel %vm983, %v640, 0.0
        %vm993 = vcmask 130048
        %v994 = vsel %vm993, %v984, 0.0
        %v995 = vsel %vm993, %v985, 0.0
        %v996 = vadd.f32 %v994, %v995
        %v997 = vsel %vm993, %v986, 0.0
        %v998 = vadd.f32 %v996, %v997
        %v999 = vsel %vm993, %v987, 0.0
        %v1000 = vadd.f32 %v998, %v999
        %v1001 = vsel %vm993, %v988, 0.0
        %v1002 = vadd.f32 %v1000, %v1001
        %v1003 = vsel %vm993, %v989, 0.0
        %v1004 = vadd.f32 %v1002, %v1003
        %v1005 = vsel %vm993, %v990, 0.0
        %v1006 = vadd.f32 %v1004, %v1005
        %v1007 = vsel %vm993, %v991, 0.0
        %v1008 = vadd.f32 %v1006, %v1007
        %v1009 = vsel %vm993, %v992, 0.0
        %v1010 = vadd.f32 %v1008, %v1009
        %v1011 = vrot.slane %v1010, 4
        %v1012 = vadd.f32 %v1010, %v1011
        %v1013 = vrot.slane %v1012, 2
        %v1014 = vadd.f32 %v1012, %v1013
        %v1015 = vrot.slane %v1014, 1
        %v1016 = vadd.f32 %v1014, %v1015
        %v1017 = vmul.f32 %v1016, 0.015625
        %v1018 = vsub.f32 %v632, %v1017
        %v1019 = vsub.f32 %v633, %v1017
        %v1020 = vsub.f32 %v634, %v1017
        %v1021 = vsub.f32 %v635, %v1017
        %v1022 = vsub.f32 %v636, %v1017
        %v1023 = vsub.f32 %v637, %v1017
        %v1024 = vsub.f32 %v638, %v1017
        %v1025 = vsub.f32 %v639, %v1017
        %v1026 = vsub.f32 %v640, %v1017
        %v1027 = vsel %vm975, %v1018, 0.0
        %v1028 = vsel %vm976, %v1019, 0.0
        %v1029 = vsel %vm977, %v1020, 0.0
        %v1030 = vsel %vm978, %v1021, 0.0
        %v1031 = vsel %vm979, %v1022, 0.0
        %v1032 = vsel %vm980, %v1023, 0.0
        %v1033 = vsel %vm981, %v1024, 0.0
        %v1034 = vsel %vm982, %v1025, 0.0
        %v1035 = vsel %vm983, %v1026, 0.0
        %v1036 = vmul.f32 %v1027, %v1027
        %v1037 = vmul.f32 %v1028, %v1028
        %v1038 = vmul.f32 %v1029, %v1029
        %v1039 = vmul.f32 %v1030, %v1030
        %v1040 = vmul.f32 %v1031, %v1031
        %v1041 = vmul.f32 %v1032, %v1032
        %v1042 = vmul.f32 %v1033, %v1033
        %v1043 = vmul.f32 %v1034, %v1034
        %v1044 = vmul.f32 %v1035, %v1035
        %v1045 = vsel %vm993, %v1036, 0.0
        %v1046 = vsel %vm993, %v1037, 0.0
        %v1047 = vadd.f32 %v1045, %v1046
        %v1048 = vsel %vm993, %v1038, 0.0
        %v1049 = vadd.f32 %v1047, %v1048
        %v1050 = vsel %vm993, %v1039, 0.0
        %v1051 = vadd.f32 %v1049, %v1050
        %v1052 = vsel %vm993, %v1040, 0.0
        %v1053 = vadd.f32 %v1051, %v1052
        %v1054 = vsel %vm993, %v1041, 0.0
        %v1055 = vadd.f32 %v1053, %v1054
        %v1056 = vsel %vm993, %v1042, 0.0
        %v1057 = vadd.f32 %v1055, %v1056
        %v1058 = vsel %vm993, %v1043, 0.0
        %v1059 = vadd.f32 %v1057, %v1058
        %v1060 = vsel %vm993, %v1044, 0.0
        %v1061 = vadd.f32 %v1059, %v1060
        %v1062 = vrot.slane %v1061, 4
        %v1063 = vadd.f32 %v1061, %v1062
        %v1064 = vrot.slane %v1063, 2
        %v1065 = vadd.f32 %v1063, %v1064
        %v1066 = vrot.slane %v1065, 1
        %v1067 = vadd.f32 %v1065, %v1066
        %v1068 = vmul.f32 %v1067, 0.015625
        %v1069 = vadd.f32 %v1068, 1e-05
        %v1070 = vrsqrt.pop %v1069
        %v1071 = vmul.f32 %v1070, %v1069
        %v1072 = vmul.f32 %v1071, %v1070
        %v1073 = vmul.f32 0.5, %v1072
        %v1074 = vsub.f32 1.5, %v1073
        %v1075 = vmul.f32 %v1070, %v1074
        %vm1076 = vweird.f32 %v1069
        %vm1077 = vweird.f32 %v1070
        %vm1078 = vmor %vm1076, %vm1077
        %v1079 = vsel %vm1078, %v1070, %v1075
        %v1080 = vmul.f32 %v1018, %v1079
        %v1081 = vmul.f32 %v1019, %v1079
        %v1082 = vmul.f32 %v1020, %v1079
        %v1083 = vmul.f32 %v1021, %v1079
        %v1084 = vmul.f32 %v1022, %v1079
        %v1085 = vmul.f32 %v1023, %v1079
        %v1086 = vmul.f32 %v1024, %v1079
        %v1087 = vmul.f32 %v1025, %v1079
        %v1088 = vmul.f32 %v1026, %v1079
        %vm1089 = vcmp.ge.f32.partialorder %v1080, 0.0
        %vm1090 = vcmp.ge.f32.partialorder %v1081, 0.0
        %vm1091 = vcmp.ge.f32.partialorder %v1082, 0.0
        %vm1092 = vcmp.ge.f32.partialorder %v1083, 0.0
        %vm1093 = vcmp.ge.f32.partialorder %v1084, 0.0
        %vm1094 = vcmp.ge.f32.partialorder %v1085, 0.0
        %vm1095 = vcmp.ge.f32.partialorder %v1086, 0.0
        %vm1096 = vcmp.ge.f32.partialorder %v1087, 0.0
        %vm1097 = vcmp.ge.f32.partialorder %v1088, 0.0
        %v1098 = vmul.f32 %v1080, 0.2
        %v1099 = vmul.f32 %v1081, 0.2
        %v1100 = vmul.f32 %v1082, 0.2
        %v1101 = vmul.f32 %v1083, 0.2
        %v1102 = vmul.f32 %v1084, 0.2
        %v1103 = vmul.f32 %v1085, 0.2
        %v1104 = vmul.f32 %v1086, 0.2
        %v1105 = vmul.f32 %v1087, 0.2
        %v1106 = vmul.f32 %v1088, 0.2
        %v1107 = vsel %vm1089, %v1080, %v1098
        %v1108 = vsel %vm1090, %v1081, %v1099
        %v1109 = vsel %vm1091, %v1082, %v1100
        %v1110 = vsel %vm1092, %v1083, %v1101
        %v1111 = vsel %vm1093, %v1084, %v1102
        %v1112 = vsel %vm1094, %v1085, %v1103
        %v1113 = vsel %vm1095, %v1086, %v1104
        %v1114 = vsel %vm1096, %v1087, %v1105
        %v1115 = vsel %vm1097, %v1088, %v1106
        %v1116 = vpack.c.bf16 %v1107, %v1107
        %v1117 = vpack.c.bf16 %v1108, %v1108
        %v1118 = vpack.c.bf16 %v1109, %v1109
        %v1119 = vpack.c.bf16 %v1110, %v1110
        %v1120 = vpack.c.bf16 %v1111, %v1111
        %v1121 = vpack.c.bf16 %v1112, %v1112
        %v1122 = vpack.c.bf16 %v1113, %v1113
        %v1123 = vpack.c.bf16 %v1114, %v1114
        %v1124 = vpack.c.bf16 %v1115, %v1115
        %vm1125 = vcmask 125952
        %1126 = vst.msk [vmem:[%s169] sm:$0xf] %vm1125, %v1116
        %1127 = vst.msk [vmem:[%s169 + $0x4] sm:$0xf] %vm1125, %v1117
        %1128 = vst.msk [vmem:[%s169 + $0x8] sm:$0xf] %vm1125, %v1118
        %1129 = vst.msk [vmem:[%s169 + $0xc] sm:$0xf] %vm1125, %v1119
        %1130 = vst.msk [vmem:[%s169 + $0x10] sm:$0xf] %vm1125, %v1120
        %1131 = vst.msk [vmem:[%s169 + $0x14] sm:$0xf] %vm1125, %v1121
        %1132 = vst.msk [vmem:[%s169 + $0x18] sm:$0xf] %vm1125, %v1122
        %1133 = vst.msk [vmem:[%s169 + $0x1c] sm:$0xf] %vm1125, %v1123
        %1134 = vst.msk [vmem:[%s169 + $0x20] sm:$0xf] %vm1125, %v1124
      $region40: #{discriminator_forward.6} parent=27 // pred_fallthru
        _
      %p1135 = scmp.lt.s32.totalorder %s17, 1
      %s1136 = scalar_select %p1135, %s17, 1
      %s1137 = smul.addr %s1136, 9
      %s1138 = smul.addr %s1137, 4
      %s1139 = scalar_lea.vmem %s2, %s1138
      // Predicated region
      $region41: #{discriminator_forward.6} parent=27 // pred_check
        %p1140 = pneg %p92
      $region42: #{discriminator_forward.6} parent=27 // pred_check_branch
        %1142 = sbr.rel (%p1140) target = $region44
      $region43: #{discriminator_forward.6} parent=27 // pred_region
        _
      $region44: #{discriminator_forward.6} parent=27 // pred_fallthru
        _
    $region28: #{discriminator_forward.6} parent=5 // pred_fallthru
      _
    %p1143 = scmp.le.s32.totalorder 2, %s8
    // Predicated region
    $region45: #{discriminator_forward.6} parent=5 // pred_check
      %p1144 = pneg %p1143
    $region46: #{discriminator_forward.6} parent=5 // pred_check_branch
      %1146 = sbr.rel (%p1144) target = $region48
    $region47: #{discriminator_forward.6} parent=5 // pred_region
      %s1147 = ssub.s32 %s8, 2
      // Predicated region
      $region49: #{discriminator_forward.6} parent=47 // pred_check
        %p1148 = pneg %p98
      $region50: #{discriminator_forward.6} parent=47 // pred_check_branch
        %1150 = sbr.rel (%p1148) target = $region52
      $region51: #{discriminator_forward.6} parent=47 // pred_region
        %p1151 = scmp.lt.s32.totalorder %s19, 1
        %s1152 = scalar_select %p1151, %s19, 1
        %s1153 = smul.addr %s1152, 9
        %s1154 = smul.addr %s1153, 4
        %s1155 = scalar_lea.vmem %s2, %s1154
      $region52: #{discriminator_forward.6} parent=47 // pred_fallthru
        _
    $region48: #{discriminator_forward.6} parent=5 // pred_fallthru
      _
  $region6: #{discriminator_forward.6} parent=0 // loop_footer
    %s12 = sadd.s32 1, %s8
  $region7: #{discriminator_forward.6} parent=0 // loop_footer_branch
    %7 = sbr.rel target = $region3
  $region8: #{discriminator_forward.6} parent=0 // loop_exit
    _

// kernel: discriminator_forward.7
$region0: #{discriminator_forward.7}
  #allocation0 [shape = 'u32[]', space=smem, size = 0x4, offset = 0x4, fixed_abs, tag = 'smem constant byte address 0x4 - core index']
  #allocation1 [shape = 'u32[72,128]{1,0:T(1,128)}', space=vmem, size = 0x9000, scoped, tag = 'internal scratch']
  #allocation2 [shape = 'f32[20,32]{1,0:T(8,128)}', space=vmem, size = 0x3000, scoped, tag = 'scratch operand']
  %s0 = inlined_call_operand.vmem [shape: bf16[2,4,26,16], index: 0, kind: input, shape index: {}]
  %s1 = inlined_call_operand.vmem [shape: bf16[16,16,32], index: 1, kind: input, shape index: {}]
  %s2 = inlined_call_operand.vmem [shape: bf16[2,20,32], index: 2, kind: output, shape index: {}]
  %s3 = sld [smem:[#allocation0]]
  $region53: #{discriminator_forward.7} parent=0
    _
  %s5 = ssub.s32 1, %s3
  %s6 = scalar_select 0, %s5, %s3
  loop: start=0, step=1, limit=10
  $region2: #{discriminator_forward.7} parent=0 // loop_pre_header
    _
  $region3: #{discriminator_forward.7} parent=0 // loop_header
    %s8 = sphi 0, %s12
    %p9 = scmp.ge.s32.totalorder %s8, 10
    %s15 = sphi 0, %s27
    %s16 = sphi 0, %s23
    %s17 = sphi 0, %s15
    %s18 = sphi 0, %s16
    %s19 = sphi 0, %s17
    %s20 = sphi 0, %s18
    %s32 = sphi 0, %s34
    %s35 = sphi 0, %s32
    %s36 = sphi 0, %s35
    %s52 = sphi 0, %s36
    %s56 = sphi 0, %s56
    %s58 = sphi 0, %s56
    %s59 = sphi 0, %s58
    %s73 = sphi 0, %s59
    %s79 = sphi 0, %s81
    %s82 = sphi 0, %s79
    %s83 = sphi 0, %s82
    %s99 = sphi 0, %s83
  $region4: #{discriminator_forward.7} parent=0 // loop_header_branch
    %11 = sbr.rel (%p9) target = $region8
  $region5: #{discriminator_forward.7} parent=0 // loop_body
    %s13 = ssub.s32 %s8, 1
    %s14 = ssub.s32 %s8, 2
    %s21 = sadd.s32 1, %s16
    %p22 = scmp.ge.s32.totalorder %s21, 4
    %s23 = scalar_select %p22, 0, %s21
    %s24 = sadd.s32 1, %s15
    %s25 = scalar_select %p22, %s24, %s15
    %p26 = scmp.ge.s32.totalorder %s25, 2
    %s27 = scalar_select %p26, 0, %s25
    %s28 = ssub.s32 %s15, %s27
    %s29 = ssub.s32 %s16, %s23
    %s30 = sor.u32 %s28, %s29
    %p31 = scmp.eq.s32.totalorder %s30, 0
    %s33 = sadd.s32 %s32, 1
    %s34 = scalar_select %p31, %s32, %s33
    %p37 = pneg %p31
    %p38 = scmp.eq.s32.totalorder %s8, 7
    %p39 = por %p37, %p38
    %p40 = scmp.ne.s32.totalorder %s32, %s35
    %p41 = scmp.eq.s32.totalorder %s8, 0
    %p42 = por %p40, %p41
    %p43 = scmp.ne.s32.totalorder %s32, %s35
    %p44 = scmp.eq.s32.totalorder %s13, 7
    %p45 = por %p43, %p44
    %p46 = scmp.ne.s32.totalorder %s35, %s36
    %p47 = scmp.eq.s32.totalorder %s13, 0
    %p48 = por %p46, %p47
    %p49 = scmp.ne.s32.totalorder %s35, %s36
    %p50 = scmp.eq.s32.totalorder %s14, 7
    %p51 = por %p49, %p50
    %p53 = scmp.ne.s32.totalorder %s36, %s52
    %p54 = scmp.eq.s32.totalorder %s14, 0
    %p55 = por %p53, %p54
    %s57 = sadd.s32 %s56, 1
    %p60 = scmp.eq.s32.totalorder %s8, 7
    %p61 = scmp.ne.s32.totalorder %s56, %s58
    %p62 = scmp.eq.s32.totalorder %s8, 0
    %p63 = por %p61, %p62
    %p64 = scmp.ne.s32.totalorder %s56, %s58
    %p65 = scmp.eq.s32.totalorder %s13, 7
    %p66 = por %p64, %p65
    %p67 = scmp.ne.s32.totalorder %s58, %s59
    %p68 = scmp.eq.s32.totalorder %s13, 0
    %p69 = por %p67, %p68
    %p70 = scmp.ne.s32.totalorder %s58, %s59
    %p71 = scmp.eq.s32.totalorder %s14, 7
    %p72 = por %p70, %p71
    %p74 = scmp.ne.s32.totalorder %s59, %s73
    %p75 = scmp.eq.s32.totalorder %s14, 0
    %p76 = por %p74, %p75
    %s77 = ssub.s32 %s15, %s27
    %p78 = scmp.eq.s32.totalorder %s77, 0
    %s80 = sadd.s32 %s79, 1
    %s81 = scalar_select %p78, %s79, %s80
    %p84 = pneg %p78
    %p85 = scmp.eq.s32.totalorder %s8, 7
    %p86 = por %p84, %p85
    %p87 = scmp.ne.s32.totalorder %s79, %s82
    %p88 = scmp.eq.s32.totalorder %s8, 0
    %p89 = por %p87, %p88
    %p90 = scmp.ne.s32.totalorder %s79, %s82
    %p91 = scmp.eq.s32.totalorder %s13, 7
    %p92 = por %p90, %p91
    %p93 = scmp.ne.s32.totalorder %s82, %s83
    %p94 = scmp.eq.s32.totalorder %s13, 0
    %p95 = por %p93, %p94
    %p96 = scmp.ne.s32.totalorder %s82, %s83
    %p97 = scmp.eq.s32.totalorder %s14, 7
    %p98 = por %p96, %p97
    %p100 = scmp.ne.s32.totalorder %s83, %s99
    %p101 = scmp.eq.s32.totalorder %s14, 0
    %p102 = por %p100, %p101
    %p103 = scmp.le.s32.totalorder 1, %s8
    %p104 = scmp.lt.s32.totalorder %s8, 9
    %p105 = pnand %p103, %p104
    %p106 = pneg %p105
    // Predicated region
    $region9: #{discriminator_forward.7} parent=5 // pred_check
      _
    $region10: #{discriminator_forward.7} parent=5 // pred_check_branch
      %108 = sbr.rel (%p105) target = $region12
    $region11: #{discriminator_forward.7} parent=5 // pred_region
      %s109 = ssub.s32 %s8, 1
      // Predicated region
      $region13: #{discriminator_forward.7} parent=11 // pred_check
        %p110 = pneg %p69
      $region14: #{discriminator_forward.7} parent=11 // pred_check_branch
        %112 = sbr.rel (%p110) target = $region16
      $region15: #{discriminator_forward.7} parent=11 // pred_region
        _
      $region16: #{discriminator_forward.7} parent=11 // pred_fallthru
        _
    $region12: #{discriminator_forward.7} parent=5 // pred_fallthru
      _
    %p113 = scmp.lt.s32.totalorder %s8, 8
    // Predicated region
    $region17: #{discriminator_forward.7} parent=5 // pred_check
      %p114 = pneg %p113
    $region18: #{discriminator_forward.7} parent=5 // pred_check_branch
      %116 = sbr.rel (%p114) target = $region20
    $region19: #{discriminator_forward.7} parent=5 // pred_region
      // Predicated region
      $region21: #{discriminator_forward.7} parent=19 // pred_check
        %p117 = pneg %p42
      $region22: #{discriminator_forward.7} parent=19 // pred_check_branch
        %119 = sbr.rel (%p117) target = $region24
      $region23: #{discriminator_forward.7} parent=19 // pred_region
        %p120 = scmp.lt.s32.totalorder %s15, 1
        %s121 = scalar_select %p120, %s15, 1
        %p122 = scmp.lt.s32.totalorder %s16, 3
        %s123 = scalar_select %p122, %s16, 3
        %s124 = smul.addr %s123, 4
        %s125 = smul.addr %s121, 16
        %s126 = sadd.s32 %s124, %s125
        %s127 = smul.addr %s126, 4
        %s128 = scalar_lea.vmem %s0, %s127
      $region24: #{discriminator_forward.7} parent=19 // pred_fallthru
        _
    $region20: #{discriminator_forward.7} parent=5 // pred_fallthru
      _
    %p129 = scmp.le.s32.totalorder 1, %s8
    %p130 = scmp.lt.s32.totalorder %s8, 9
    %p131 = pnand %p129, %p130
    %p132 = pneg %p131
    // Predicated region
    $region25: #{discriminator_forward.7} parent=5 // pred_check
      _
    $region26: #{discriminator_forward.7} parent=5 // pred_check_branch
      %134 = sbr.rel (%p131) target = $region28
    $region27: #{discriminator_forward.7} parent=5 // pred_region
      %s135 = ssub.s32 %s8, 1
      %p136 = scmp.lt.s32.totalorder %s17, 1
      %s137 = scalar_select %p136, %s17, 1
      %p138 = scmp.lt.s32.totalorder %s18, 3
      %s139 = scalar_select %p138, %s18, 3
      %s140 = smul.addr %s139, 4
      %s141 = smul.addr %s137, 16
      %s142 = sadd.s32 %s140, %s141
      %s143 = smul.addr %s142, 4
      %s144 = scalar_lea.vmem %s0, %s143
      %p145 = pneg %p48
      %p146 = pneg %p45
      %p147 = pneg %p69
      %p148 = pneg %p66
      %p149 = pneg %p95
      %p150 = pneg %p92
      %p151 = scmp.lt.s32.totalorder %s17, 1
      %s152 = scalar_select %p151, %s17, 1
      %s153 = smul.addr %s152, 3
      %s154 = smul.addr %s153, 4
      %s155 = scalar_lea.vmem %s2, %s154
      %p156 = scmp.lt.s32.totalorder %s17, 1
      %s157 = scalar_select %p156, %s17, 1
      %p158 = scmp.lt.s32.totalorder %s18, 3
      %s159 = scalar_select %p158, %s18, 3
      %s160 = smul.addr %s159, 4
      %s161 = smul.addr %s157, 16
      %s162 = sadd.s32 %s160, %s161
      %s163 = smul.addr %s162, 4
      %s164 = scalar_lea.vmem %s0, %s163
      %p165 = scmp.lt.s32.totalorder %s17, 1
      %s166 = scalar_select %p165, %s17, 1
      %s167 = smul.addr %s166, 3
      %s168 = smul.addr %s167, 4
      %s169 = scalar_lea.vmem %s2, %s168
      %s171 = smul.u32 %s18, 4
      %v172 = vld [vmem:[%s164] sm:$0xf]
      %v173 = vld [vmem:[%s164 + $0x4] sm:$0xf]
      %v174 = vld [vmem:[%s164 + $0x8] sm:$0x3]
      %s175 = smul.u32 %s171, 2
      %s176 = smul.addr %s175, 4
      %s177 = scalar_lea.vmem %s1, %s176
      %v178 = vld [vmem:[%s177] sm:$0xf]
      %v179 = vld [vmem:[%s177 + $0x4] sm:$0xf]
      %v180 = vld [vmem:[%s164 + $0x8] sm:$0x7]
      %s181 = sadd.s32 %s171, 1
      %s182 = smul.u32 %s181, 2
      %s183 = smul.addr %s182, 4
      %s184 = scalar_lea.vmem %s1, %s183
      %v185 = vld [vmem:[%s184] sm:$0xf]
      %v186 = vld [vmem:[%s184 + $0x4] sm:$0xf]
      %v190 = vunpack.c.l.b16 %v172
      %v191 = vunpack.c.l.b16 %v173
      %v192 = vunpack.c.l.b16 %v180
      %v193 = vpack.c.b16 %v191, %v190
      %v194 = vpack.c.b16 %v192, %v192
      %vm195 = vsmask.f32 7424
      %v197 = vshrl.u32 %v193, 16
      %v199 = vshll.u32 %v193, 16
      %v201 = vrot.slane %v199, 1
      %v202 = vor.u32 %v197, %v201
      %v204 = vshll.u32 %v194, 16
      %v206 = vrot.slane %v204, 1
      %v207 = vsel %vm195, %v202, %v206
      %v208 = vshrl.u32 %v194, 16
      %v210 = vor.u32 %v208, %v206
      %v213 = vunpack.c.l.b16 %v185
      %v214 = vunpack.c.l.b16 %v186
      %v215 = vpack.c.b16 %v214, %v213
      %vm217 = vcmask 130048
      %v219 = vsel %vm217, %v207, 0
      %v222 = vsel %vm217, %v210, 0
      %224 = vmatpush.bf16.msra.mxu0 0
      %225 = vmatpush.bf16.msra.mxu0 0
      %226 = vmatpush.bf16.msra.mxu0 0
      %227 = vmatpush.bf16.msra.mxu0 0
      %228 = vmatpush.bf16.msra.mxu0 0
      %229 = vmatpush.bf16.msra.mxu0 0
      %230 = vmatpush.bf16.msra.mxu0 0
      %231 = vmatpush.bf16.msra.mxu0 %v215
      %232 = vmatmul.bf16.gmra.mxu0 %v219
      %v233 = vpop.f32.mrf.mxu0
      %v234 = vadd.f32 0.0, %v233
      %v235 = vpop.f32.mrf.mxu0
      %v236 = vadd.f32 0.0, %v235
      %237 = vmatmul.bf16.gmra.mxu0 %v222
      %v238 = vpop.f32.mrf.mxu0
      %v239 = vadd.f32 0.0, %v238
      %v240 = vpop.f32.mrf.mxu0
      %241 = vdwg.mxu0
      %v243 = vunpack.c.l.b16 %v174
      %v244 = vpack.c.b16 %v243, %v243
      %v247 = vunpack.c.l.b16 %v178
      %v248 = vunpack.c.l.b16 %v179
      %v249 = vpack.c.b16 %v248, %v247
      %v251 = vsel %vm217, %v193, 0
      %v254 = vsel %vm217, %v244, 0
      %256 = vmatpush.bf16.msra.mxu0 0
      %257 = vmatpush.bf16.msra.mxu0 0
      %258 = vmatpush.bf16.msra.mxu0 0
      %259 = vmatpush.bf16.msra.mxu0 0
      %260 = vmatpush.bf16.msra.mxu0 0
      %261 = vmatpush.bf16.msra.mxu0 0
      %262 = vmatpush.bf16.msra.mxu0 0
      %263 = vmatpush.bf16.msra.mxu0 %v249
      %264 = vmatmul.bf16.gmra.mxu0 %v251
      %v265 = vpop.f32.mrf.mxu0
      %v266 = vadd.f32 %v234, %v265
      %v267 = vpop.f32.mrf.mxu0
      %v268 = vadd.f32 %v236, %v267
      %269 = vmatmul.bf16.gmra.mxu0 %v254
      %v270 = vpop.f32.mrf.mxu0
      %v271 = vadd.f32 %v239, %v270
      %v272 = vpop.f32.mrf.mxu0
      %273 = vdwg.mxu0
      %v274 = vld [vmem:[%s164] sm:$0xc]
      %v275 = vld [vmem:[%s164 + $0x4] sm:$0xf]
      %v276 = vld [vmem:[%s164 + $0x8] sm:$0xf]
      %v277 = vld [vmem:[%s164 + $0xc] sm:$0x1]
      %s278 = sadd.s32 %s171, 2
      %s279 = smul.u32 %s278, 2
      %s280 = smul.addr %s279, 4
      %s281 = scalar_lea.vmem %s1, %s280
      %v282 = vld [vmem:[%s281] sm:$0xf]
      %v283 = vld [vmem:[%s281 + $0x4] sm:$0xf]
      %v288 = vunpack.c.l.b16 %v274
      %v289 = vunpack.c.l.b16 %v275
      %v290 = vunpack.c.l.b16 %v276
      %v291 = vunpack.c.l.b16 %v277
      %v292 = vpack.c.b16 %v289, %v288
      %v293 = vpack.c.b16 %v291, %v290
      %vm294 = vsmask.f32 5376
      %v296 = vshrl.u32 %v292, 16
      %v298 = vrot.slane %v296, 2
      %v299 = vshll.u32 %v292, 16
      %v301 = vrot.slane %v299, 3
      %v302 = vor.u32 %v298, %v301
      %v304 = vshrl.u32 %v293, 16
      %v306 = vrot.slane %v304, 2
      %v307 = vshll.u32 %v293, 16
      %v309 = vrot.slane %v307, 3
      %v310 = vor.u32 %v306, %v309
      %v311 = vsel %vm294, %v302, %v310
      %v314 = vunpack.c.l.b16 %v282
      %v315 = vunpack.c.l.b16 %v283
      %v316 = vpack.c.b16 %v315, %v314
      %v319 = vsel %vm217, %v311, 0
      %v322 = vsel %vm217, %v310, 0
      %324 = vmatpush.bf16.msra.mxu0 0
      %325 = vmatpush.bf16.msra.mxu0 0
      %326 = vmatpush.bf16.msra.mxu0 0
      %327 = vmatpush.bf16.msra.mxu0 0
      %328 = vmatpush.bf16.msra.mxu0 0
      %329 = vmatpush.bf16.msra.mxu0 0
      %330 = vmatpush.bf16.msra.mxu0 0
      %331 = vmatpush.bf16.msra.mxu0 %v316
      %332 = vmatmul.bf16.gmra.mxu0 %v319
      %v333 = vpop.f32.mrf.mxu0
      %v334 = vadd.f32 0.0, %v333
      %v335 = vpop.f32.mrf.mxu0
      %v336 = vadd.f32 0.0, %v335
      %337 = vmatmul.bf16.gmra.mxu0 %v322
      %v338 = vpop.f32.mrf.mxu0
      %v339 = vadd.f32 0.0, %v338
      %v340 = vpop.f32.mrf.mxu0
      %341 = vdwg.mxu0
      %v342 = vadd.f32 %v266, %v334
      %v343 = vadd.f32 %v268, %v336
      %v344 = vadd.f32 %v271, %v339
      %v345 = vld [vmem:[%s164] sm:$0x8]
      %s346 = sadd.s32 %s171, 3
      %s347 = smul.u32 %s346, 2
      %s348 = smul.addr %s347, 4
      %s349 = scalar_lea.vmem %s1, %s348
      %v350 = vld [vmem:[%s349] sm:$0xf]
      %v351 = vld [vmem:[%s349 + $0x4] sm:$0xf]
      %v353 = vunpack.c.l.b16 %v345
      %v354 = vpack.c.b16 %v289, %v353
      %vm355 = vcmask 1044480
      %v356 = vrot.slane %v354, 3
      %v357 = vrot.slane %v293, 3
      %v358 = vsel %vm355, %v356, %v357
      %v361 = vunpack.c.l.b16 %v350
      %v362 = vunpack.c.l.b16 %v351
      %v363 = vpack.c.b16 %v362, %v361
      %v366 = vsel %vm217, %v358, 0
      %v369 = vsel %vm217, %v357, 0
      %371 = vmatpush.bf16.msra.mxu0 0
      %372 = vmatpush.bf16.msra.mxu0 0
      %373 = vmatpush.bf16.msra.mxu0 0
      %374 = vmatpush.bf16.msra.mxu0 0
      %375 = vmatpush.bf16.msra.mxu0 0
      %376 = vmatpush.bf16.msra.mxu0 0
      %377 = vmatpush.bf16.msra.mxu0 0
      %378 = vmatpush.bf16.msra.mxu0 %v363
      %379 = vmatmul.bf16.gmra.mxu0 %v366
      %v380 = vpop.f32.mrf.mxu0
      %v381 = vadd.f32 0.0, %v380
      %v382 = vpop.f32.mrf.mxu0
      %v383 = vadd.f32 0.0, %v382
      %384 = vmatmul.bf16.gmra.mxu0 %v369
      %v385 = vpop.f32.mrf.mxu0
      %v386 = vadd.f32 0.0, %v385
      %v387 = vpop.f32.mrf.mxu0
      %388 = vdwg.mxu0
      %v389 = vadd.f32 %v342, %v381
      %v390 = vadd.f32 %v343, %v383
      %v391 = vadd.f32 %v344, %v386
      %p392 = scmp.eq.s32.totalorder %s18, 0
      // Predicated region
      $region29: #{discriminator_forward.7} parent=27 // pred_check
        %p393 = pneg %p392
      $region30: #{discriminator_forward.7} parent=27 // pred_check_branch
        %395 = sbr.rel (%p393) target = $region32
      $region31: #{discriminator_forward.7} parent=27 // pred_region
        %vm396 = vcmask 261120
        %397 = vst.msk [vmem:[#allocation2] sm:$0xff] %vm396, %v389
        %398 = vst.msk [vmem:[#allocation2 + $0x8] sm:$0xff] %vm396, %v390
        %vm399 = vcmask 257024
        %400 = vst.msk [vmem:[#allocation2 + $0x10] sm:$0xf] %vm399, %v391
      $region32: #{discriminator_forward.7} parent=27 // pred_fallthru
        _
      %p401 = scmp.gt.s32.totalorder %s18, 0
      %p402 = scmp.lt.s32.totalorder %s18, 3
      %p403 = pnand %p401, %p402
      %p404 = pneg %p403
      // Predicated region
      $region33: #{discriminator_forward.7} parent=27 // pred_check
        _
      $region34: #{discriminator_forward.7} parent=27 // pred_check_branch
        %406 = sbr.rel (%p403) target = $region36
      $region35: #{discriminator_forward.7} parent=27 // pred_region
        %v407 = vld [vmem:[#allocation2] sm:$0xff]
        %v408 = vld [vmem:[#allocation2 + $0x8] sm:$0xff]
        %v409 = vld [vmem:[#allocation2 + $0x10] sm:$0xf]
        %v410 = vadd.f32 %v407, %v389
        %v411 = vadd.f32 %v408, %v390
        %v412 = vadd.f32 %v409, %v391
        %vm413 = vcmask 261120
        %414 = vst.msk [vmem:[#allocation2] sm:$0xff] %vm413, %v410
        %415 = vst.msk [vmem:[#allocation2 + $0x8] sm:$0xff] %vm413, %v411
        %vm416 = vcmask 257024
        %417 = vst.msk [vmem:[#allocation2 + $0x10] sm:$0xf] %vm416, %v412
      $region36: #{discriminator_forward.7} parent=27 // pred_fallthru
        _
      %p418 = scmp.eq.s32.totalorder %s18, 3
      // Predicated region
      $region37: #{discriminator_forward.7} parent=27 // pred_check
        %p419 = pneg %p418
      $region38: #{discriminator_forward.7} parent=27 // pred_check_branch
        %421 = sbr.rel (%p419) target = $region40
      $region39: #{discriminator_forward.7} parent=27 // pred_region
        %v422 = vld [vmem:[#allocation2] sm:$0xff]
        %v423 = vld [vmem:[#allocation2 + $0x8] sm:$0xff]
        %v424 = vld [vmem:[#allocation2 + $0x10] sm:$0xf]
        %v425 = vadd.f32 %v422, %v389
        %v426 = vadd.f32 %v423, %v390
        %v427 = vadd.f32 %v424, %v391
        %v428 = vlaneseq
        %v429 = vshrl.u32 %v428, 7
        %v430 = vadd.s32 %v429, 8
        %v431 = vadd.s32 %v429, 16
        %vm432 = vcmp.lt.s32.totalorder %v429, 0
        %v433 = vsub.s32 0, %v429
        %v434 = vsel %vm432, %v433, %v429
        %v435 = vand.u32 %v434, 65535
        %v436 = vshrl.u32 %v434, 16
        %v438 = vmul.u32 %v435, 52429
        %v439 = vmul.u32 %v435, 52428
        %v440 = vmul.u32 %v436, 52429
        %v441 = vmul.u32 %v436, 52428
        %v442 = vshll.u32 %v439, 16
        %v443 = vshrl.u32 %v439, 16
        %v444 = vshll.u32 %v440, 16
        %v445 = vshrl.u32 %v440, 16
        %vm446 = vc.u32 %v438, %v442
        %v447 = vsel %vm446, 1, 0
        %v448 = vadd.s32 %v438, %v442
        %v449 = vadd.s32 %v441, %v447
        %vm450 = vc.u32 %v448, %v444
        %v451 = vsel %vm450, 1, 0
        %v452 = vadd.s32 %v448, %v444
        %v453 = vadd.s32 %v449, %v451
        %v454 = vadd.s32 %v453, %v443
        %v455 = vadd.s32 %v454, %v445
        %v456 = vshrl.u32 %v455, 2
        %v457 = vmul.u32 %v456, 5
        %v458 = vsub.s32 %v434, %v457
        %v459 = vsub.s32 0, %v458
        %v460 = vsel %vm432, %v459, %v458
        %vm461 = vcmp.lt.s32.totalorder %v430, 0
        %v462 = vsub.s32 0, %v430
        %v463 = vsel %vm461, %v462, %v430
        %v464 = vand.u32 %v463, 65535
        %v465 = vshrl.u32 %v463, 16
        %v467 = vmul.u32 %v464, 52429
        %v468 = vmul.u32 %v464, 52428
        %v469 = vmul.u32 %v465, 52429
        %v470 = vmul.u32 %v465, 52428
        %v471 = vshll.u32 %v468, 16
        %v472 = vshrl.u32 %v468, 16
        %v473 = vshll.u32 %v469, 16
        %v474 = vshrl.u32 %v469, 16
        %vm475 = vc.u32 %v467, %v471
        %v476 = vsel %vm475, 1, 0
        %v477 = vadd.s32 %v467, %v471
        %v478 = vadd.s32 %v470, %v476
        %vm479 = vc.u32 %v477, %v473
        %v480 = vsel %vm479, 1, 0
        %v481 = vadd.s32 %v477, %v473
        %v482 = vadd.s32 %v478, %v480
        %v483 = vadd.s32 %v482, %v472
        %v484 = vadd.s32 %v483, %v474
        %v485 = vshrl.u32 %v484, 2
        %v486 = vmul.u32 %v485, 5
        %v487 = vsub.s32 %v463, %v486
        %v488 = vsub.s32 0, %v487
        %v489 = vsel %vm461, %v488, %v487
        %vm490 = vcmp.lt.s32.totalorder %v431, 0
        %v491 = vsub.s32 0, %v431
        %v492 = vsel %vm490, %v491, %v431
        %v493 = vand.u32 %v492, 65535
        %v494 = vshrl.u32 %v492, 16
        %v496 = vmul.u32 %v493, 52429
        %v497 = vmul.u32 %v493, 52428
        %v498 = vmul.u32 %v494, 52429
        %v499 = vmul.u32 %v494, 52428
        %v500 = vshll.u32 %v497, 16
        %v501 = vshrl.u32 %v497, 16
        %v502 = vshll.u32 %v498, 16
        %v503 = vshrl.u32 %v498, 16
        %vm504 = vc.u32 %v496, %v500
        %v505 = vsel %vm504, 1, 0
        %v506 = vadd.s32 %v496, %v500
        %v507 = vadd.s32 %v499, %v505
        %vm508 = vc.u32 %v506, %v502
        %v509 = vsel %vm508, 1, 0
        %v510 = vadd.s32 %v506, %v502
        %v511 = vadd.s32 %v507, %v509
        %v512 = vadd.s32 %v511, %v501
        %v513 = vadd.s32 %v512, %v503
        %v514 = vshrl.u32 %v513, 2
        %v515 = vmul.u32 %v514, 5
        %v516 = vsub.s32 %v492, %v515
        %v517 = vsub.s32 0, %v516
        %v518 = vsel %vm490, %v517, %v516
        %vm519 = vcmp.ne.s32.totalorder %v460, 0
        %vm520 = vcmp.ne.s32.totalorder %v489, 0
        %vm521 = vcmp.ne.s32.totalorder %v518, 0
        %vm522 = vcmp.lt.s32.totalorder %v460, 0
        %vm523 = vcmp.lt.s32.totalorder %v489, 0
        %vm524 = vcmp.lt.s32.totalorder %v518, 0
        %vm525 = vmand %vm522, %vm519
        %vm526 = vmand %vm523, %vm520
        %vm527 = vmand %vm524, %vm521
        %v528 = vadd.s32 %v460, 5
        %v529 = vadd.s32 %v489, 5
        %v530 = vadd.s32 %v518, 5
        %v531 = vsel %vm525, %v528, %v460
        %v532 = vsel %vm526, %v529, %v489
        %v533 = vsel %vm527, %v530, %v518
        %vm534 = vcmp.lt.s32.totalorder %v531, 4
        %vm535 = vcmp.lt.s32.totalorder %v532, 4
        %vm536 = vcmp.lt.s32.totalorder %v533, 4
        %v537 = vsel %vm534, 1, 0
        %v538 = vsel %vm535, 1, 0
        %v539 = vsel %vm536, 1, 0
        %vm540 = vcmp.eq.s32.totalorder %v537, 1
        %vm541 = vcmp.eq.s32.totalorder %v538, 1
        %vm542 = vcmp.eq.s32.totalorder %v539, 1
        %v543 = vsel %vm540, %v425, 0.0
        %v544 = vsel %vm541, %v426, 0.0
        %v545 = vsel %vm542, %v427, 0.0
        %vm546 = vcmask 261120
        %v547 = vsel %vm546, %v543, 0.0
        %v548 = vsel %vm546, %v544, 0.0
        %v549 = vadd.f32 %v547, %v548
        %vm550 = vcmask 257024
        %v551 = vsel %vm550, %v545, 0.0
        %v552 = vadd.f32 %v549, %v551
        %v553 = vrot.slane %v552, 4
        %v554 = vadd.f32 %v552, %v553
        %v555 = vrot.slane %v554, 2
        %v556 = vadd.f32 %v554, %v555
        %v557 = vrot.slane %v556, 1
        %v558 = vadd.f32 %v556, %v557
        %v559 = vmul.f32 %v558, 0.0625
        %v560 = vsub.f32 %v425, %v559
        %v561 = vsub.f32 %v426, %v559
        %v562 = vsub.f32 %v427, %v559
        %v563 = vsel %vm540, %v560, 0.0
        %v564 = vsel %vm541, %v561, 0.0
        %v565 = vsel %vm542, %v562, 0.0
        %v566 = vmul.f32 %v563, %v563
        %v567 = vmul.f32 %v564, %v564
        %v568 = vmul.f32 %v565, %v565
        %v569 = vsel %vm546, %v566, 0.0
        %v570 = vsel %vm546, %v567, 0.0
        %v571 = vadd.f32 %v569, %v570
        %v572 = vsel %vm550, %v568, 0.0
        %v573 = vadd.f32 %v571, %v572
        %v574 = vrot.slane %v573, 4
        %v575 = vadd.f32 %v573, %v574
        %v576 = vrot.slane %v575, 2
        %v577 = vadd.f32 %v575, %v576
        %v578 = vrot.slane %v577, 1
        %v579 = vadd.f32 %v577, %v578
        %v580 = vmul.f32 %v579, 0.0625
        %v581 = vadd.f32 %v580, 1e-05
        %v582 = vrsqrt.pop %v581
        %v583 = vmul.f32 %v582, %v581
        %v584 = vmul.f32 %v583, %v582
        %v585 = vmul.f32 0.5, %v584
        %v586 = vsub.f32 1.5, %v585
        %v587 = vmul.f32 %v582, %v586
        %vm588 = vweird.f32 %v581
        %vm589 = vweird.f32 %v582
        %vm590 = vmor %vm588, %vm589
        %v591 = vsel %vm590, %v582, %v587
        %v592 = vmul.f32 %v560, %v591
        %v593 = vmul.f32 %v561, %v591
        %v594 = vmul.f32 %v562, %v591
        %vm595 = vcmp.ge.f32.partialorder %v592, 0.0
        %vm596 = vcmp.ge.f32.partialorder %v593, 0.0
        %vm597 = vcmp.ge.f32.partialorder %v594, 0.0
        %v598 = vmul.f32 %v592, 0.2
        %v599 = vmul.f32 %v593, 0.2
        %v600 = vmul.f32 %v594, 0.2
        %v601 = vsel %vm595, %v592, %v598
        %v602 = vsel %vm596, %v593, %v599
        %v603 = vsel %vm597, %v594, %v600
        %v604 = vpack.c.bf16 %v601, %v601
        %v605 = vpack.c.bf16 %v602, %v602
        %v606 = vpack.c.bf16 %v603, %v603
        %607 = vst.msk [vmem:[%s169] sm:$0xf] %vm550, %v604
        %608 = vst.msk [vmem:[%s169 + $0x4] sm:$0xf] %vm550, %v605
        %vm609 = vcmask 254976
        %610 = vst.msk [vmem:[%s169 + $0x8] sm:$0x3] %vm609, %v606
      $region40: #{discriminator_forward.7} parent=27 // pred_fallthru
        _
      %p611 = scmp.lt.s32.totalorder %s17, 1
      %s612 = scalar_select %p611, %s17, 1
      %s613 = smul.addr %s612, 3
      %s614 = smul.addr %s613, 4
      %s615 = scalar_lea.vmem %s2, %s614
      // Predicated region
      $region41: #{discriminator_forward.7} parent=27 // pred_check
        %p616 = pneg %p92
      $region42: #{discriminator_forward.7} parent=27 // pred_check_branch
        %618 = sbr.rel (%p616) target = $region44
      $region43: #{discriminator_forward.7} parent=27 // pred_region
        _
      $region44: #{discriminator_forward.7} parent=27 // pred_fallthru
        _
    $region28: #{discriminator_forward.7} parent=5 // pred_fallthru
      _
    %p619 = scmp.le.s32.totalorder 2, %s8
    // Predicated region
    $region45: #{discriminator_forward.7} parent=5 // pred_check
      %p620 = pneg %p619
    $region46: #{discriminator_forward.7} parent=5 // pred_check_branch
      %622 = sbr.rel (%p620) target = $region48
    $region47: #{discriminator_forward.7} parent=5 // pred_region
      %s623 = ssub.s32 %s8, 2
      // Predicated region
      $region49: #{discriminator_forward.7} parent=47 // pred_check
        %p624 = pneg %p98
      $region50: #{discriminator_forward.7} parent=47 // pred_check_branch
        %626 = sbr.rel (%p624) target = $region52
      $region51: #{discriminator_forward.7} parent=47 // pred_region
        %p627 = scmp.lt.s32.totalorder %s19, 1
        %s628 = scalar_select %p627, %s19, 1
        %s629 = smul.addr %s628, 3
        %s630 = smul.addr %s629, 4
        %s631 = scalar_lea.vmem %s2, %s630
      $region52: #{discriminator_forward.7} parent=47 // pred_fallthru
        _
    $region48: #{discriminator_forward.7} parent=5 // pred_fallthru
      _
  $region6: #{discriminator_forward.7} parent=0 // loop_footer
    %s12 = sadd.s32 1, %s8
  $region7: #{discriminator_forward.7} parent=0 // loop_footer_branch
    %7 = sbr.rel target = $region3
  $region8: #{discriminator_forward.7} parent=0 // loop_exit
    _

// kernel: discriminator_forward.8
$region0: #{discriminator_forward.8}
  #allocation0 [shape = 'u32[]', space=smem, size = 0x4, offset = 0x4, fixed_abs, tag = 'smem constant byte address 0x4 - core index']
  #allocation1 [shape = 'u32[72,128]{1,0:T(1,128)}', space=vmem, size = 0x9000, scoped, tag = 'internal scratch']
  #allocation2 [shape = 'f32[6,64]{1,0:T(8,128)}', space=vmem, size = 0x1000, scoped, tag = 'scratch operand']
  %s0 = inlined_call_operand.vmem [shape: bf16[2,4,10,32], index: 0, kind: input, shape index: {}]
  %s1 = inlined_call_operand.vmem [shape: bf16[16,32,64], index: 1, kind: input, shape index: {}]
  %s2 = inlined_call_operand.vmem [shape: bf16[2,6,64], index: 2, kind: output, shape index: {}]
  %s3 = sld [smem:[#allocation0]]
  $region53: #{discriminator_forward.8} parent=0
    _
  %s5 = ssub.s32 1, %s3
  %s6 = scalar_select 0, %s5, %s3
  loop: start=0, step=1, limit=10
  $region2: #{discriminator_forward.8} parent=0 // loop_pre_header
    _
  $region3: #{discriminator_forward.8} parent=0 // loop_header
    %s8 = sphi 0, %s12
    %p9 = scmp.ge.s32.totalorder %s8, 10
    %s15 = sphi 0, %s27
    %s16 = sphi 0, %s23
    %s17 = sphi 0, %s15
    %s18 = sphi 0, %s16
    %s19 = sphi 0, %s17
    %s20 = sphi 0, %s18
    %s32 = sphi 0, %s34
    %s35 = sphi 0, %s32
    %s36 = sphi 0, %s35
    %s52 = sphi 0, %s36
    %s56 = sphi 0, %s56
    %s58 = sphi 0, %s56
    %s59 = sphi 0, %s58
    %s73 = sphi 0, %s59
    %s79 = sphi 0, %s81
    %s82 = sphi 0, %s79
    %s83 = sphi 0, %s82
    %s99 = sphi 0, %s83
  $region4: #{discriminator_forward.8} parent=0 // loop_header_branch
    %11 = sbr.rel (%p9) target = $region8
  $region5: #{discriminator_forward.8} parent=0 // loop_body
    %s13 = ssub.s32 %s8, 1
    %s14 = ssub.s32 %s8, 2
    %s21 = sadd.s32 1, %s16
    %p22 = scmp.ge.s32.totalorder %s21, 4
    %s23 = scalar_select %p22, 0, %s21
    %s24 = sadd.s32 1, %s15
    %s25 = scalar_select %p22, %s24, %s15
    %p26 = scmp.ge.s32.totalorder %s25, 2
    %s27 = scalar_select %p26, 0, %s25
    %s28 = ssub.s32 %s15, %s27
    %s29 = ssub.s32 %s16, %s23
    %s30 = sor.u32 %s28, %s29
    %p31 = scmp.eq.s32.totalorder %s30, 0
    %s33 = sadd.s32 %s32, 1
    %s34 = scalar_select %p31, %s32, %s33
    %p37 = pneg %p31
    %p38 = scmp.eq.s32.totalorder %s8, 7
    %p39 = por %p37, %p38
    %p40 = scmp.ne.s32.totalorder %s32, %s35
    %p41 = scmp.eq.s32.totalorder %s8, 0
    %p42 = por %p40, %p41
    %p43 = scmp.ne.s32.totalorder %s32, %s35
    %p44 = scmp.eq.s32.totalorder %s13, 7
    %p45 = por %p43, %p44
    %p46 = scmp.ne.s32.totalorder %s35, %s36
    %p47 = scmp.eq.s32.totalorder %s13, 0
    %p48 = por %p46, %p47
    %p49 = scmp.ne.s32.totalorder %s35, %s36
    %p50 = scmp.eq.s32.totalorder %s14, 7
    %p51 = por %p49, %p50
    %p53 = scmp.ne.s32.totalorder %s36, %s52
    %p54 = scmp.eq.s32.totalorder %s14, 0
    %p55 = por %p53, %p54
    %s57 = sadd.s32 %s56, 1
    %p60 = scmp.eq.s32.totalorder %s8, 7
    %p61 = scmp.ne.s32.totalorder %s56, %s58
    %p62 = scmp.eq.s32.totalorder %s8, 0
    %p63 = por %p61, %p62
    %p64 = scmp.ne.s32.totalorder %s56, %s58
    %p65 = scmp.eq.s32.totalorder %s13, 7
    %p66 = por %p64, %p65
    %p67 = scmp.ne.s32.totalorder %s58, %s59
    %p68 = scmp.eq.s32.totalorder %s13, 0
    %p69 = por %p67, %p68
    %p70 = scmp.ne.s32.totalorder %s58, %s59
    %p71 = scmp.eq.s32.totalorder %s14, 7
    %p72 = por %p70, %p71
    %p74 = scmp.ne.s32.totalorder %s59, %s73
    %p75 = scmp.eq.s32.totalorder %s14, 0
    %p76 = por %p74, %p75
    %s77 = ssub.s32 %s15, %s27
    %p78 = scmp.eq.s32.totalorder %s77, 0
    %s80 = sadd.s32 %s79, 1
    %s81 = scalar_select %p78, %s79, %s80
    %p84 = pneg %p78
    %p85 = scmp.eq.s32.totalorder %s8, 7
    %p86 = por %p84, %p85
    %p87 = scmp.ne.s32.totalorder %s79, %s82
    %p88 = scmp.eq.s32.totalorder %s8, 0
    %p89 = por %p87, %p88
    %p90 = scmp.ne.s32.totalorder %s79, %s82
    %p91 = scmp.eq.s32.totalorder %s13, 7
    %p92 = por %p90, %p91
    %p93 = scmp.ne.s32.totalorder %s82, %s83
    %p94 = scmp.eq.s32.totalorder %s13, 0
    %p95 = por %p93, %p94
    %p96 = scmp.ne.s32.totalorder %s82, %s83
    %p97 = scmp.eq.s32.totalorder %s14, 7
    %p98 = por %p96, %p97
    %p100 = scmp.ne.s32.totalorder %s83, %s99
    %p101 = scmp.eq.s32.totalorder %s14, 0
    %p102 = por %p100, %p101
    %p103 = scmp.le.s32.totalorder 1, %s8
    %p104 = scmp.lt.s32.totalorder %s8, 9
    %p105 = pnand %p103, %p104
    %p106 = pneg %p105
    // Predicated region
    $region9: #{discriminator_forward.8} parent=5 // pred_check
      _
    $region10: #{discriminator_forward.8} parent=5 // pred_check_branch
      %108 = sbr.rel (%p105) target = $region12
    $region11: #{discriminator_forward.8} parent=5 // pred_region
      %s109 = ssub.s32 %s8, 1
      // Predicated region
      $region13: #{discriminator_forward.8} parent=11 // pred_check
        %p110 = pneg %p69
      $region14: #{discriminator_forward.8} parent=11 // pred_check_branch
        %112 = sbr.rel (%p110) target = $region16
      $region15: #{discriminator_forward.8} parent=11 // pred_region
        _
      $region16: #{discriminator_forward.8} parent=11 // pred_fallthru
        _
    $region12: #{discriminator_forward.8} parent=5 // pred_fallthru
      _
    %p113 = scmp.lt.s32.totalorder %s8, 8
    // Predicated region
    $region17: #{discriminator_forward.8} parent=5 // pred_check
      %p114 = pneg %p113
    $region18: #{discriminator_forward.8} parent=5 // pred_check_branch
      %116 = sbr.rel (%p114) target = $region20
    $region19: #{discriminator_forward.8} parent=5 // pred_region
      // Predicated region
      $region21: #{discriminator_forward.8} parent=19 // pred_check
        %p117 = pneg %p42
      $region22: #{discriminator_forward.8} parent=19 // pred_check_branch
        %119 = sbr.rel (%p117) target = $region24
      $region23: #{discriminator_forward.8} parent=19 // pred_region
        %p120 = scmp.lt.s32.totalorder %s15, 1
        %s121 = scalar_select %p120, %s15, 1
        %p122 = scmp.lt.s32.totalorder %s16, 3
        %s123 = scalar_select %p122, %s16, 3
        %s124 = smul.addr %s123, 2
        %s125 = smul.addr %s121, 8
        %s126 = sadd.s32 %s124, %s125
        %s127 = smul.addr %s126, 4
        %s128 = scalar_lea.vmem %s0, %s127
      $region24: #{discriminator_forward.8} parent=19 // pred_fallthru
        _
    $region20: #{discriminator_forward.8} parent=5 // pred_fallthru
      _
    %p129 = scmp.le.s32.totalorder 1, %s8
    %p130 = scmp.lt.s32.totalorder %s8, 9
    %p131 = pnand %p129, %p130
    %p132 = pneg %p131
    // Predicated region
    $region25: #{discriminator_forward.8} parent=5 // pred_check
      _
    $region26: #{discriminator_forward.8} parent=5 // pred_check_branch
      %134 = sbr.rel (%p131) target = $region28
    $region27: #{discriminator_forward.8} parent=5 // pred_region
      %s135 = ssub.s32 %s8, 1
      %p136 = scmp.lt.s32.totalorder %s17, 1
      %s137 = scalar_select %p136, %s17, 1
      %p138 = scmp.lt.s32.totalorder %s18, 3
      %s139 = scalar_select %p138, %s18, 3
      %s140 = smul.addr %s139, 2
      %s141 = smul.addr %s137, 8
      %s142 = sadd.s32 %s140, %s141
      %s143 = smul.addr %s142, 4
      %s144 = scalar_lea.vmem %s0, %s143
      %p145 = pneg %p48
      %p146 = pneg %p45
      %p147 = pneg %p69
      %p148 = pneg %p66
      %p149 = pneg %p95
      %p150 = pneg %p92
      %p151 = scmp.lt.s32.totalorder %s17, 1
      %s152 = scalar_select %p151, %s17, 1
      %s153 = smul.addr %s152, 4
      %s154 = scalar_lea.vmem %s2, %s153
      %p155 = scmp.lt.s32.totalorder %s17, 1
      %s156 = scalar_select %p155, %s17, 1
      %p157 = scmp.lt.s32.totalorder %s18, 3
      %s158 = scalar_select %p157, %s18, 3
      %s159 = smul.addr %s158, 2
      %s160 = smul.addr %s156, 8
      %s161 = sadd.s32 %s159, %s160
      %s162 = smul.addr %s161, 4
      %s163 = scalar_lea.vmem %s0, %s162
      %p164 = scmp.lt.s32.totalorder %s17, 1
      %s165 = scalar_select %p164, %s17, 1
      %s166 = smul.addr %s165, 4
      %s167 = scalar_lea.vmem %s2, %s166
      %s169 = smul.u32 %s18, 4
      %v170 = vld [vmem:[%s163] sm:$0x7]
      %s171 = smul.u32 %s169, 4
      %s172 = smul.addr %s171, 4
      %s173 = scalar_lea.vmem %s1, %s172
      %v174 = vld [vmem:[%s173] sm:$0xf]
      %v175 = vld [vmem:[%s173 + $0x4] sm:$0xf]
      %v176 = vld [vmem:[%s173 + $0x8] sm:$0xf]
      %v177 = vld [vmem:[%s173 + $0xc] sm:$0xf]
      %v178 = vld [vmem:[%s163] sm:$0xf]
      %s179 = sadd.s32 %s169, 1
      %s180 = smul.u32 %s179, 4
      %s181 = smul.addr %s180, 4
      %s182 = scalar_lea.vmem %s1, %s181
      %v183 = vld [vmem:[%s182] sm:$0xf]
      %v184 = vld [vmem:[%s182 + $0x4] sm:$0xf]
      %v185 = vld [vmem:[%s182 + $0x8] sm:$0xf]
      %v186 = vld [vmem:[%s182 + $0xc] sm:$0xf]
      %v188 = vunpack.c.l.b16 %v178
      %v189 = vpack.c.b16 %v188, %v188
      %v191 = vshrl.u32 %v189, 16
      %v193 = vshll.u32 %v189, 16
      %v195 = vrot.slane %v193, 1
      %v196 = vor.u32 %v191, %v195
      %v201 = vunpack.c.l.b16 %v183
      %v202 = vunpack.c.l.b16 %v184
      %v203 = vunpack.c.l.b16 %v185
      %v204 = vunpack.c.l.b16 %v186
      %v205 = vpack.c.b16 %v202, %v201
      %v206 = vpack.c.b16 %v204, %v203
      %vm209 = vcmask 261120
      %v211 = vsel %vm209, %v196, 0
      %213 = vmatpush.bf16.msra.mxu0 0
      %214 = vmatpush.bf16.msra.mxu0 0
      %215 = vmatpush.bf16.msra.mxu0 0
      %216 = vmatpush.bf16.msra.mxu0 0
      %217 = vmatpush.bf16.msra.mxu0 0
      %218 = vmatpush.bf16.msra.mxu0 0
      %219 = vmatpush.bf16.msra.mxu0 %v206
      %220 = vmatpush.bf16.msra.mxu0 %v205
      %221 = vmatmul.bf16.gmra.mxu0 %v211
      %v222 = vpop.f32.mrf.mxu0
      %v223 = vadd.f32 0.0, %v222
      %v224 = vpop.f32.mrf.mxu0
      %225 = vdwg.mxu0
      %v230 = vunpack.c.l.b16 %v174
      %v231 = vunpack.c.l.b16 %v175
      %v232 = vunpack.c.l.b16 %v176
      %v233 = vunpack.c.l.b16 %v177
      %v234 = vpack.c.b16 %v231, %v230
      %v235 = vpack.c.b16 %v233, %v232
      %v239 = vsel %vm209, %v170, 0
      %241 = vmatpush.bf16.msra.mxu0 0
      %242 = vmatpush.bf16.msra.mxu0 0
      %243 = vmatpush.bf16.msra.mxu0 0
      %244 = vmatpush.bf16.msra.mxu0 0
      %245 = vmatpush.bf16.msra.mxu0 0
      %246 = vmatpush.bf16.msra.mxu0 0
      %247 = vmatpush.bf16.msra.mxu0 %v235
      %248 = vmatpush.bf16.msra.mxu0 %v234
      %249 = vmatmul.bf16.gmra.mxu0 %v239
      %v250 = vpop.f32.mrf.mxu0
      %v251 = vadd.f32 %v223, %v250
      %v252 = vpop.f32.mrf.mxu0
      %253 = vdwg.mxu0
      %v254 = vld [vmem:[%s163] sm:$0xe]
      %v255 = vld [vmem:[%s163 + $0x4] sm:$0x1]
      %s256 = sadd.s32 %s169, 2
      %s257 = smul.u32 %s256, 4
      %s258 = smul.addr %s257, 4
      %s259 = scalar_lea.vmem %s1, %s258
      %v260 = vld [vmem:[%s259] sm:$0xf]
      %v261 = vld [vmem:[%s259 + $0x4] sm:$0xf]
      %v262 = vld [vmem:[%s259 + $0x8] sm:$0xf]
      %v263 = vld [vmem:[%s259 + $0xc] sm:$0xf]
      %v266 = vunpack.c.l.b16 %v254
      %v267 = vunpack.c.l.b16 %v255
      %v268 = vpack.c.b16 %v267, %v266
      %v270 = vshrl.u32 %v268, 16
      %v272 = vrot.slane %v270, 1
      %v273 = vshll.u32 %v268, 16
      %v275 = vrot.slane %v273, 2
      %v276 = vor.u32 %v272, %v275
      %v281 = vunpack.c.l.b16 %v260
      %v282 = vunpack.c.l.b16 %v261
      %v283 = vunpack.c.l.b16 %v262
      %v284 = vunpack.c.l.b16 %v263
      %v285 = vpack.c.b16 %v282, %v281
      %v286 = vpack.c.b16 %v284, %v283
      %v290 = vsel %vm209, %v276, 0
      %292 = vmatpush.bf16.msra.mxu0 0
      %293 = vmatpush.bf16.msra.mxu0 0
      %294 = vmatpush.bf16.msra.mxu0 0
      %295 = vmatpush.bf16.msra.mxu0 0
      %296 = vmatpush.bf16.msra.mxu0 0
      %297 = vmatpush.bf16.msra.mxu0 0
      %298 = vmatpush.bf16.msra.mxu0 %v286
      %299 = vmatpush.bf16.msra.mxu0 %v285
      %300 = vmatmul.bf16.gmra.mxu0 %v290
      %v301 = vpop.f32.mrf.mxu0
      %v302 = vadd.f32 0.0, %v301
      %v303 = vpop.f32.mrf.mxu0
      %304 = vdwg.mxu0
      %v305 = vadd.f32 %v251, %v302
      %v306 = vld [vmem:[%s163] sm:$0xc]
      %s307 = sadd.s32 %s169, 3
      %s308 = smul.u32 %s307, 4
      %s309 = smul.addr %s308, 4
      %s310 = scalar_lea.vmem %s1, %s309
      %v311 = vld [vmem:[%s310] sm:$0xf]
      %v312 = vld [vmem:[%s310 + $0x4] sm:$0xf]
      %v313 = vld [vmem:[%s310 + $0x8] sm:$0xf]
      %v314 = vld [vmem:[%s310 + $0xc] sm:$0xf]
      %v316 = vunpack.c.l.b16 %v306
      %v317 = vpack.c.b16 %v267, %v316
      %v318 = vrot.slane %v317, 2
      %v323 = vunpack.c.l.b16 %v311
      %v324 = vunpack.c.l.b16 %v312
      %v325 = vunpack.c.l.b16 %v313
      %v326 = vunpack.c.l.b16 %v314
      %v327 = vpack.c.b16 %v324, %v323
      %v328 = vpack.c.b16 %v326, %v325
      %v332 = vsel %vm209, %v318, 0
      %334 = vmatpush.bf16.msra.mxu0 0
      %335 = vmatpush.bf16.msra.mxu0 0
      %336 = vmatpush.bf16.msra.mxu0 0
      %337 = vmatpush.bf16.msra.mxu0 0
      %338 = vmatpush.bf16.msra.mxu0 0
      %339 = vmatpush.bf16.msra.mxu0 0
      %340 = vmatpush.bf16.msra.mxu0 %v328
      %341 = vmatpush.bf16.msra.mxu0 %v327
      %342 = vmatmul.bf16.gmra.mxu0 %v332
      %v343 = vpop.f32.mrf.mxu0
      %v344 = vadd.f32 0.0, %v343
      %v345 = vpop.f32.mrf.mxu0
      %346 = vdwg.mxu0
      %v347 = vadd.f32 %v305, %v344
      %p348 = scmp.eq.s32.totalorder %s18, 0
      // Predicated region
      $region29: #{discriminator_forward.8} parent=27 // pred_check
        %p349 = pneg %p348
      $region30: #{discriminator_forward.8} parent=27 // pred_check_branch
        %351 = sbr.rel (%p349) target = $region32
      $region31: #{discriminator_forward.8} parent=27 // pred_region
        %vm352 = vcmask 521216
        %353 = vst.msk [vmem:[#allocation2] sm:$0x3f] %vm352, %v347
      $region32: #{discriminator_forward.8} parent=27 // pred_fallthru
        _
      %p354 = scmp.gt.s32.totalorder %s18, 0
      %p355 = scmp.lt.s32.totalorder %s18, 3
      %p356 = pnand %p354, %p355
      %p357 = pneg %p356
      // Predicated region
      $region33: #{discriminator_forward.8} parent=27 // pred_check
        _
      $region34: #{discriminator_forward.8} parent=27 // pred_check_branch
        %359 = sbr.rel (%p356) target = $region36
      $region35: #{discriminator_forward.8} parent=27 // pred_region
        %v360 = vld [vmem:[#allocation2] sm:$0x3f]
        %v361 = vadd.f32 %v360, %v347
        %vm362 = vcmask 521216
        %363 = vst.msk [vmem:[#allocation2] sm:$0x3f] %vm362, %v361
      $region36: #{discriminator_forward.8} parent=27 // pred_fallthru
        _
      %p364 = scmp.eq.s32.totalorder %s18, 3
      // Predicated region
      $region37: #{discriminator_forward.8} parent=27 // pred_check
        %p365 = pneg %p364
      $region38: #{discriminator_forward.8} parent=27 // pred_check_branch
        %367 = sbr.rel (%p365) target = $region40
      $region39: #{discriminator_forward.8} parent=27 // pred_region
        %v368 = vld [vmem:[#allocation2] sm:$0x3f]
        %v369 = vadd.f32 %v368, %v347
        %v370 = vlaneseq
        %v371 = vshrl.u32 %v370, 7
        %vm372 = vcmp.lt.s32.totalorder %v371, 0
        %v373 = vsub.s32 0, %v371
        %v374 = vsel %vm372, %v373, %v371
        %v375 = vand.u32 %v374, 65535
        %v376 = vshrl.u32 %v374, 16
        %v378 = vmul.u32 %v375, 43691
        %v379 = vmul.u32 %v375, 43690
        %v380 = vmul.u32 %v376, 43691
        %v381 = vmul.u32 %v376, 43690
        %v382 = vshll.u32 %v379, 16
        %v383 = vshrl.u32 %v379, 16
        %v384 = vshll.u32 %v380, 16
        %v385 = vshrl.u32 %v380, 16
        %vm386 = vc.u32 %v378, %v382
        %v387 = vsel %vm386, 1, 0
        %v388 = vadd.s32 %v378, %v382
        %v389 = vadd.s32 %v381, %v387
        %vm390 = vc.u32 %v388, %v384
        %v391 = vsel %vm390, 1, 0
        %v392 = vadd.s32 %v388, %v384
        %v393 = vadd.s32 %v389, %v391
        %v394 = vadd.s32 %v393, %v383
        %v395 = vadd.s32 %v394, %v385
        %v396 = vshrl.u32 %v395, 1
        %v397 = vmul.u32 %v396, 3
        %v398 = vsub.s32 %v374, %v397
        %v399 = vsub.s32 0, %v398
        %v400 = vsel %vm372, %v399, %v398
        %vm401 = vcmp.ne.s32.totalorder %v400, 0
        %vm402 = vcmp.lt.s32.totalorder %v400, 0
        %vm403 = vmand %vm402, %vm401
        %v404 = vadd.s32 %v400, 3
        %v405 = vsel %vm403, %v404, %v400
        %vm406 = vcmp.lt.s32.totalorder %v405, 2
        %v407 = vsel %vm406, 1, 0
        %vm408 = vcmp.eq.s32.totalorder %v407, 1
        %v409 = vsel %vm408, %v369, 0.0
        %vm410 = vcmask 521216
        %v411 = vsel %vm410, %v409, 0.0
        %v412 = vrot.slane %v411, 4
        %v413 = vadd.f32 %v411, %v412
        %v414 = vrot.slane %v413, 2
        %v415 = vadd.f32 %v413, %v414
        %v416 = vrot.slane %v415, 1
        %v417 = vadd.f32 %v415, %v416
        %v418 = vmul.f32 %v417, 0.25
        %v419 = vsub.f32 %v369, %v418
        %v420 = vsel %vm408, %v419, 0.0
        %v421 = vmul.f32 %v420, %v420
        %v422 = vsel %vm410, %v421, 0.0
        %v423 = vrot.slane %v422, 4
        %v424 = vadd.f32 %v422, %v423
        %v425 = vrot.slane %v424, 2
        %v426 = vadd.f32 %v424, %v425
        %v427 = vrot.slane %v426, 1
        %v428 = vadd.f32 %v426, %v427
        %v429 = vmul.f32 %v428, 0.25
        %v430 = vadd.f32 %v429, 1e-05
        %v431 = vrsqrt.pop %v430
        %v432 = vmul.f32 %v431, %v430
        %v433 = vmul.f32 %v432, %v431
        %v434 = vmul.f32 0.5, %v433
        %v435 = vsub.f32 1.5, %v434
        %v436 = vmul.f32 %v431, %v435
        %vm437 = vweird.f32 %v430
        %vm438 = vweird.f32 %v431
        %vm439 = vmor %vm437, %vm438
        %v440 = vsel %vm439, %v431, %v436
        %v441 = vmul.f32 %v419, %v440
        %vm442 = vcmp.ge.f32.partialorder %v441, 0.0
        %v443 = vmul.f32 %v441, 0.2
        %v444 = vsel %vm442, %v441, %v443
        %v445 = vpack.c.bf16 %v444, %v444
        %vm446 = vcmask 518144
        %447 = vst.msk [vmem:[%s167] sm:$0x7] %vm446, %v445
      $region40: #{discriminator_forward.8} parent=27 // pred_fallthru
        _
      %p448 = scmp.lt.s32.totalorder %s17, 1
      %s449 = scalar_select %p448, %s17, 1
      %s450 = smul.addr %s449, 4
      %s451 = scalar_lea.vmem %s2, %s450
      // Predicated region
      $region41: #{discriminator_forward.8} parent=27 // pred_check
        %p452 = pneg %p92
      $region42: #{discriminator_forward.8} parent=27 // pred_check_branch
        %454 = sbr.rel (%p452) target = $region44
      $region43: #{discriminator_forward.8} parent=27 // pred_region
        _
      $region44: #{discriminator_forward.8} parent=27 // pred_fallthru
        _
    $region28: #{discriminator_forward.8} parent=5 // pred_fallthru
      _
    %p455 = scmp.le.s32.totalorder 2, %s8
    // Predicated region
    $region45: #{discriminator_forward.8} parent=5 // pred_check
      %p456 = pneg %p455
    $region46: #{discriminator_forward.8} parent=5 // pred_check_branch
      %458 = sbr.rel (%p456) target = $region48
    $region47: #{discriminator_forward.8} parent=5 // pred_region
      %s459 = ssub.s32 %s8, 2
      // Predicated region
      $region49: #{discriminator_forward.8} parent=47 // pred_check
        %p460 = pneg %p98
      $region50: #{discriminator_forward.8} parent=47 // pred_check_branch
        %462 = sbr.rel (%p460) target = $region52
      $region51: #{discriminator_forward.8} parent=47 // pred_region
        %p463 = scmp.lt.s32.totalorder %s19, 1
        %s464 = scalar_select %p463, %s19, 1
        %s465 = smul.addr %s464, 4
        %s466 = scalar_lea.vmem %s2, %s465
      $region52: #{discriminator_forward.8} parent=47 // pred_fallthru
        _
    $region48: #{discriminator_forward.8} parent=5 // pred_fallthru
      _
  $region6: #{discriminator_forward.8} parent=0 // loop_footer
    %s12 = sadd.s32 1, %s8
  $region7: #{discriminator_forward.8} parent=0 // loop_footer_branch
    %7 = sbr.rel target = $region3
  $region8: #{discriminator_forward.8} parent=0 // loop_exit
    _

// kernel: discriminator_forward.9
$region0: #{discriminator_forward.9}
  #allocation0 [shape = 'u32[]', space=smem, size = 0x4, offset = 0x4, fixed_abs, tag = 'smem constant byte address 0x4 - core index']
  #allocation1 [shape = 'u32[72,128]{1,0:T(1,128)}', space=vmem, size = 0x9000, scoped, tag = 'internal scratch']
  %s0 = inlined_call_operand.vmem [shape: bf16[2,1,19,64], index: 0, kind: input, shape index: {}]
  %s1 = inlined_call_operand.vmem [shape: bf16[16,64,8], index: 1, kind: input, shape index: {}]
  %s2 = inlined_call_operand.vmem [shape: f32[2,4,8], index: 2, kind: output, shape index: {}]
  %s3 = sld [smem:[#allocation0]]
  $region45: #{discriminator_forward.9} parent=0
    _
  %s5 = ssub.s32 1, %s3
  %s6 = scalar_select 0, %s5, %s3
  loop: start=0, step=1, limit=4
  $region2: #{discriminator_forward.9} parent=0 // loop_pre_header
    _
  $region3: #{discriminator_forward.9} parent=0 // loop_header
    %s8 = sphi 0, %s12
    %p9 = scmp.ge.s32.totalorder %s8, 4
    %s15 = sphi 0, %s27
    %s16 = sphi 0, %s23
    %s17 = sphi 0, %s15
    %s18 = sphi 0, %s16
    %s19 = sphi 0, %s17
    %s20 = sphi 0, %s18
    %s32 = sphi 0, %s34
    %s35 = sphi 0, %s32
    %s36 = sphi 0, %s35
    %s52 = sphi 0, %s36
    %s56 = sphi 0, %s56
    %s58 = sphi 0, %s56
    %s59 = sphi 0, %s58
    %s73 = sphi 0, %s59
    %s79 = sphi 0, %s81
    %s82 = sphi 0, %s79
    %s83 = sphi 0, %s82
    %s99 = sphi 0, %s83
  $region4: #{discriminator_forward.9} parent=0 // loop_header_branch
    %11 = sbr.rel (%p9) target = $region8
  $region5: #{discriminator_forward.9} parent=0 // loop_body
    %s13 = ssub.s32 %s8, 1
    %s14 = ssub.s32 %s8, 2
    %s21 = sadd.s32 1, %s16
    %p22 = scmp.ge.s32.totalorder %s21, 1
    %s23 = scalar_select %p22, 0, %s21
    %s24 = sadd.s32 1, %s15
    %s25 = scalar_select %p22, %s24, %s15
    %p26 = scmp.ge.s32.totalorder %s25, 2
    %s27 = scalar_select %p26, 0, %s25
    %s28 = ssub.s32 %s15, %s27
    %s29 = ssub.s32 %s16, %s23
    %s30 = sor.u32 %s28, %s29
    %p31 = scmp.eq.s32.totalorder %s30, 0
    %s33 = sadd.s32 %s32, 1
    %s34 = scalar_select %p31, %s32, %s33
    %p37 = pneg %p31
    %p38 = scmp.eq.s32.totalorder %s8, 1
    %p39 = por %p37, %p38
    %p40 = scmp.ne.s32.totalorder %s32, %s35
    %p41 = scmp.eq.s32.totalorder %s8, 0
    %p42 = por %p40, %p41
    %p43 = scmp.ne.s32.totalorder %s32, %s35
    %p44 = scmp.eq.s32.totalorder %s13, 1
    %p45 = por %p43, %p44
    %p46 = scmp.ne.s32.totalorder %s35, %s36
    %p47 = scmp.eq.s32.totalorder %s13, 0
    %p48 = por %p46, %p47
    %p49 = scmp.ne.s32.totalorder %s35, %s36
    %p50 = scmp.eq.s32.totalorder %s14, 1
    %p51 = por %p49, %p50
    %p53 = scmp.ne.s32.totalorder %s36, %s52
    %p54 = scmp.eq.s32.totalorder %s14, 0
    %p55 = por %p53, %p54
    %s57 = sadd.s32 %s56, 1
    %p60 = scmp.eq.s32.totalorder %s8, 1
    %p61 = scmp.ne.s32.totalorder %s56, %s58
    %p62 = scmp.eq.s32.totalorder %s8, 0
    %p63 = por %p61, %p62
    %p64 = scmp.ne.s32.totalorder %s56, %s58
    %p65 = scmp.eq.s32.totalorder %s13, 1
    %p66 = por %p64, %p65
    %p67 = scmp.ne.s32.totalorder %s58, %s59
    %p68 = scmp.eq.s32.totalorder %s13, 0
    %p69 = por %p67, %p68
    %p70 = scmp.ne.s32.totalorder %s58, %s59
    %p71 = scmp.eq.s32.totalorder %s14, 1
    %p72 = por %p70, %p71
    %p74 = scmp.ne.s32.totalorder %s59, %s73
    %p75 = scmp.eq.s32.totalorder %s14, 0
    %p76 = por %p74, %p75
    %s77 = ssub.s32 %s15, %s27
    %p78 = scmp.eq.s32.totalorder %s77, 0
    %s80 = sadd.s32 %s79, 1
    %s81 = scalar_select %p78, %s79, %s80
    %p84 = pneg %p78
    %p85 = scmp.eq.s32.totalorder %s8, 1
    %p86 = por %p84, %p85
    %p87 = scmp.ne.s32.totalorder %s79, %s82
    %p88 = scmp.eq.s32.totalorder %s8, 0
    %p89 = por %p87, %p88
    %p90 = scmp.ne.s32.totalorder %s79, %s82
    %p91 = scmp.eq.s32.totalorder %s13, 1
    %p92 = por %p90, %p91
    %p93 = scmp.ne.s32.totalorder %s82, %s83
    %p94 = scmp.eq.s32.totalorder %s13, 0
    %p95 = por %p93, %p94
    %p96 = scmp.ne.s32.totalorder %s82, %s83
    %p97 = scmp.eq.s32.totalorder %s14, 1
    %p98 = por %p96, %p97
    %p100 = scmp.ne.s32.totalorder %s83, %s99
    %p101 = scmp.eq.s32.totalorder %s14, 0
    %p102 = por %p100, %p101
    %p103 = scmp.le.s32.totalorder 1, %s8
    %p104 = scmp.lt.s32.totalorder %s8, 3
    %p105 = pnand %p103, %p104
    %p106 = pneg %p105
    // Predicated region
    $region9: #{discriminator_forward.9} parent=5 // pred_check
      _
    $region10: #{discriminator_forward.9} parent=5 // pred_check_branch
      %108 = sbr.rel (%p105) target = $region12
    $region11: #{discriminator_forward.9} parent=5 // pred_region
      %s109 = ssub.s32 %s8, 1
      // Predicated region
      $region13: #{discriminator_forward.9} parent=11 // pred_check
        %p110 = pneg %p69
      $region14: #{discriminator_forward.9} parent=11 // pred_check_branch
        %112 = sbr.rel (%p110) target = $region16
      $region15: #{discriminator_forward.9} parent=11 // pred_region
        _
      $region16: #{discriminator_forward.9} parent=11 // pred_fallthru
        _
    $region12: #{discriminator_forward.9} parent=5 // pred_fallthru
      _
    %p113 = scmp.lt.s32.totalorder %s8, 2
    // Predicated region
    $region17: #{discriminator_forward.9} parent=5 // pred_check
      %p114 = pneg %p113
    $region18: #{discriminator_forward.9} parent=5 // pred_check_branch
      %116 = sbr.rel (%p114) target = $region20
    $region19: #{discriminator_forward.9} parent=5 // pred_region
      // Predicated region
      $region21: #{discriminator_forward.9} parent=19 // pred_check
        %p117 = pneg %p42
      $region22: #{discriminator_forward.9} parent=19 // pred_check_branch
        %119 = sbr.rel (%p117) target = $region24
      $region23: #{discriminator_forward.9} parent=19 // pred_region
        %p120 = scmp.lt.s32.totalorder %s15, 1
        %s121 = scalar_select %p120, %s15, 1
        %p122 = scmp.lt.s32.totalorder %s16, 0
        %s123 = scalar_select %p122, %s16, 0
        %s124 = smul.addr %s123, 3
        %s125 = smul.addr %s121, 3
        %s126 = sadd.s32 %s124, %s125
        %s127 = smul.addr %s126, 4
        %s128 = scalar_lea.vmem %s0, %s127
      $region24: #{discriminator_forward.9} parent=19 // pred_fallthru
        _
    $region20: #{discriminator_forward.9} parent=5 // pred_fallthru
      _
    %p129 = scmp.le.s32.totalorder 1, %s8
    %p130 = scmp.lt.s32.totalorder %s8, 3
    %p131 = pnand %p129, %p130
    %p132 = pneg %p131
    // Predicated region
    $region25: #{discriminator_forward.9} parent=5 // pred_check
      _
    $region26: #{discriminator_forward.9} parent=5 // pred_check_branch
      %134 = sbr.rel (%p131) target = $region28
    $region27: #{discriminator_forward.9} parent=5 // pred_region
      %s135 = ssub.s32 %s8, 1
      %p136 = scmp.lt.s32.totalorder %s17, 1
      %s137 = scalar_select %p136, %s17, 1
      %p138 = scmp.lt.s32.totalorder %s18, 0
      %s139 = scalar_select %p138, %s18, 0
      %s140 = smul.addr %s139, 3
      %s141 = smul.addr %s137, 3
      %s142 = sadd.s32 %s140, %s141
      %s143 = smul.addr %s142, 4
      %s144 = scalar_lea.vmem %s0, %s143
      %p145 = pneg %p48
      %p146 = pneg %p45
      %p147 = pneg %p69
      %p148 = pneg %p66
      %p149 = pneg %p95
      %p150 = pneg %p92
      %p151 = scmp.lt.s32.totalorder %s17, 1
      %s152 = scalar_select %p151, %s17, 1
      %s153 = smul.addr %s152, 4
      %s154 = scalar_lea.vmem %s2, %s153
      %p155 = scmp.lt.s32.totalorder %s17, 1
      %s156 = scalar_select %p155, %s17, 1
      %p157 = scmp.lt.s32.totalorder %s18, 0
      %s158 = scalar_select %p157, %s18, 0
      %s159 = smul.addr %s158, 3
      %s160 = smul.addr %s156, 3
      %s161 = sadd.s32 %s159, %s160
      %s162 = smul.addr %s161, 4
      %s163 = scalar_lea.vmem %s0, %s162
      %p164 = scmp.lt.s32.totalorder %s17, 1
      %s165 = scalar_select %p164, %s17, 1
      %s166 = smul.addr %s165, 4
      %s167 = scalar_lea.vmem %s2, %s166
      %s169 = smul.u32 %s18, 16
      %v170 = vld [vmem:[%s163] sm:$0x3]
      %s171 = smul.u32 %s169, 8
      %s172 = smul.addr %s171, 4
      %s173 = scalar_lea.vmem %s1, %s172
      %v174 = vld [vmem:[%s173] sm:$0xf]
      %v175 = vld [vmem:[%s173 + $0x4] sm:$0xf]
      %v176 = vld [vmem:[%s173 + $0x8] sm:$0xf]
      %v177 = vld [vmem:[%s173 + $0xc] sm:$0xf]
      %v178 = vld [vmem:[%s173 + $0x10] sm:$0xf]
      %v179 = vld [vmem:[%s173 + $0x14] sm:$0xf]
      %v180 = vld [vmem:[%s173 + $0x18] sm:$0xf]
      %v181 = vld [vmem:[%s173 + $0x1c] sm:$0xf]
      %v182 = vld [vmem:[%s163] sm:$0x7]
      %s183 = sadd.s32 %s169, 1
      %s184 = smul.u32 %s183, 8
      %s185 = smul.addr %s184, 4
      %s186 = scalar_lea.vmem %s1, %s185
      %v187 = vld [vmem:[%s186] sm:$0xf]
      %v188 = vld [vmem:[%s186 + $0x4] sm:$0xf]
      %v189 = vld [vmem:[%s186 + $0x8] sm:$0xf]
      %v190 = vld [vmem:[%s186 + $0xc] sm:$0xf]
      %v191 = vld [vmem:[%s186 + $0x10] sm:$0xf]
      %v192 = vld [vmem:[%s186 + $0x14] sm:$0xf]
      %v193 = vld [vmem:[%s186 + $0x18] sm:$0xf]
      %v194 = vld [vmem:[%s186 + $0x1c] sm:$0xf]
      %v196 = vunpack.c.l.b16 %v182
      %v197 = vpack.c.b16 %v196, %v196
      %v199 = vshrl.u32 %v197, 16
      %v201 = vshll.u32 %v197, 16
      %v203 = vrot.slane %v201, 1
      %v204 = vor.u32 %v199, %v203
      %v213 = vunpack.c.l.b16 %v187
      %v214 = vunpack.c.l.b16 %v188
      %v215 = vunpack.c.l.b16 %v189
      %v216 = vunpack.c.l.b16 %v190
      %v217 = vunpack.c.l.b16 %v191
      %v218 = vunpack.c.l.b16 %v192
      %v219 = vunpack.c.l.b16 %v193
      %v220 = vunpack.c.l.b16 %v194
      %v221 = vpack.c.b16 %v214, %v213
      %v222 = vpack.c.b16 %v216, %v215
      %v223 = vpack.c.b16 %v218, %v217
      %v224 = vpack.c.b16 %v220, %v219
      %vm229 = vcmask 523264
      %v231 = vsel %vm229, %v204, 0
      %233 = vmatpush.bf16.msra.mxu0 0
      %234 = vmatpush.bf16.msra.mxu0 0
      %235 = vmatpush.bf16.msra.mxu0 0
      %236 = vmatpush.bf16.msra.mxu0 0
      %237 = vmatpush.bf16.msra.mxu0 %v224
      %238 = vmatpush.bf16.msra.mxu0 %v223
      %239 = vmatpush.bf16.msra.mxu0 %v222
      %240 = vmatpush.bf16.msra.mxu0 %v221
      %241 = vmatmul.bf16.gmra.mxu0 %v231
      %v242 = vpop.f32.mrf.mxu0
      %v243 = vadd.f32 0.0, %v242
      %v244 = vpop.f32.mrf.mxu0
      %245 = vdwg.mxu0
      %v254 = vunpack.c.l.b16 %v174
      %v255 = vunpack.c.l.b16 %v175
      %v256 = vunpack.c.l.b16 %v176
      %v257 = vunpack.c.l.b16 %v177
      %v258 = vunpack.c.l.b16 %v178
      %v259 = vunpack.c.l.b16 %v179
      %v260 = vunpack.c.l.b16 %v180
      %v261 = vunpack.c.l.b16 %v181
      %v262 = vpack.c.b16 %v255, %v254
      %v263 = vpack.c.b16 %v257, %v256
      %v264 = vpack.c.b16 %v259, %v258
      %v265 = vpack.c.b16 %v261, %v260
      %v271 = vsel %vm229, %v170, 0
      %273 = vmatpush.bf16.msra.mxu0 0
      %274 = vmatpush.bf16.msra.mxu0 0
      %275 = vmatpush.bf16.msra.mxu0 0
      %276 = vmatpush.bf16.msra.mxu0 0
      %277 = vmatpush.bf16.msra.mxu0 %v265
      %278 = vmatpush.bf16.msra.mxu0 %v264
      %279 = vmatpush.bf16.msra.mxu0 %v263
      %280 = vmatpush.bf16.msra.mxu0 %v262
      %281 = vmatmul.bf16.gmra.mxu0 %v271
      %v282 = vpop.f32.mrf.mxu0
      %v283 = vadd.f32 %v243, %v282
      %v284 = vpop.f32.mrf.mxu0
      %285 = vdwg.mxu0
      %v286 = vld [vmem:[%s163] sm:$0x6]
      %s287 = sadd.s32 %s169, 2
      %s288 = smul.u32 %s287, 8
      %s289 = smul.addr %s288, 4
      %s290 = scalar_lea.vmem %s1, %s289
      %v291 = vld [vmem:[%s290] sm:$0xf]
      %v292 = vld [vmem:[%s290 + $0x4] sm:$0xf]
      %v293 = vld [vmem:[%s290 + $0x8] sm:$0xf]
      %v294 = vld [vmem:[%s290 + $0xc] sm:$0xf]
      %v295 = vld [vmem:[%s290 + $0x10] sm:$0xf]
      %v296 = vld [vmem:[%s290 + $0x14] sm:$0xf]
      %v297 = vld [vmem:[%s290 + $0x18] sm:$0xf]
      %v298 = vld [vmem:[%s290 + $0x1c] sm:$0xf]
      %v300 = vunpack.c.l.b16 %v286
      %v301 = vpack.c.b16 %v300, %v300
      %v302 = vrot.slane %v301, 1
      %v311 = vunpack.c.l.b16 %v291
      %v312 = vunpack.c.l.b16 %v292
      %v313 = vunpack.c.l.b16 %v293
      %v314 = vunpack.c.l.b16 %v294
      %v315 = vunpack.c.l.b16 %v295
      %v316 = vunpack.c.l.b16 %v296
      %v317 = vunpack.c.l.b16 %v297
      %v318 = vunpack.c.l.b16 %v298
      %v319 = vpack.c.b16 %v312, %v311
      %v320 = vpack.c.b16 %v314, %v313
      %v321 = vpack.c.b16 %v316, %v315
      %v322 = vpack.c.b16 %v318, %v317
      %v328 = vsel %vm229, %v302, 0
      %330 = vmatpush.bf16.msra.mxu0 0
      %331 = vmatpush.bf16.msra.mxu0 0
      %332 = vmatpush.bf16.msra.mxu0 0
      %333 = vmatpush.bf16.msra.mxu0 0
      %334 = vmatpush.bf16.msra.mxu0 %v322
      %335 = vmatpush.bf16.msra.mxu0 %v321
      %336 = vmatpush.bf16.msra.mxu0 %v320
      %337 = vmatpush.bf16.msra.mxu0 %v319
      %338 = vmatmul.bf16.gmra.mxu0 %v328
      %v339 = vpop.f32.mrf.mxu0
      %v340 = vadd.f32 0.0, %v339
      %v341 = vpop.f32.mrf.mxu0
      %342 = vdwg.mxu0
      %v343 = vadd.f32 %v283, %v340
      %v344 = vld [vmem:[%s163] sm:$0xe]
      %s345 = sadd.s32 %s169, 3
      %s346 = smul.u32 %s345, 8
      %s347 = smul.addr %s346, 4
      %s348 = scalar_lea.vmem %s1, %s347
      %v349 = vld [vmem:[%s348] sm:$0xf]
      %v350 = vld [vmem:[%s348 + $0x4] sm:$0xf]
      %v351 = vld [vmem:[%s348 + $0x8] sm:$0xf]
      %v352 = vld [vmem:[%s348 + $0xc] sm:$0xf]
      %v353 = vld [vmem:[%s348 + $0x10] sm:$0xf]
      %v354 = vld [vmem:[%s348 + $0x14] sm:$0xf]
      %v355 = vld [vmem:[%s348 + $0x18] sm:$0xf]
      %v356 = vld [vmem:[%s348 + $0x1c] sm:$0xf]
      %v358 = vunpack.c.l.b16 %v344
      %v359 = vpack.c.b16 %v358, %v358
      %v361 = vshrl.u32 %v359, 16
      %v363 = vrot.slane %v361, 1
      %v364 = vshll.u32 %v359, 16
      %v366 = vrot.slane %v364, 2
      %v367 = vor.u32 %v363, %v366
      %v376 = vunpack.c.l.b16 %v349
      %v377 = vunpack.c.l.b16 %v350
      %v378 = vunpack.c.l.b16 %v351
      %v379 = vunpack.c.l.b16 %v352
      %v380 = vunpack.c.l.b16 %v353
      %v381 = vunpack.c.l.b16 %v354
      %v382 = vunpack.c.l.b16 %v355
      %v383 = vunpack.c.l.b16 %v356
      %v384 = vpack.c.b16 %v377, %v376
      %v385 = vpack.c.b16 %v379, %v378
      %v386 = vpack.c.b16 %v381, %v380
      %v387 = vpack.c.b16 %v383, %v382
      %v393 = vsel %vm229, %v367, 0
      %395 = vmatpush.bf16.msra.mxu0 0
      %396 = vmatpush.bf16.msra.mxu0 0
      %397 = vmatpush.bf16.msra.mxu0 0
      %398 = vmatpush.bf16.msra.mxu0 0
      %399 = vmatpush.bf16.msra.mxu0 %v387
      %400 = vmatpush.bf16.msra.mxu0 %v386
      %401 = vmatpush.bf16.msra.mxu0 %v385
      %402 = vmatpush.bf16.msra.mxu0 %v384
      %403 = vmatmul.bf16.gmra.mxu0 %v393
      %v404 = vpop.f32.mrf.mxu0
      %v405 = vadd.f32 0.0, %v404
      %v406 = vpop.f32.mrf.mxu0
      %407 = vdwg.mxu0
      %v408 = vadd.f32 %v343, %v405
      %v409 = vld [vmem:[%s163] sm:$0xc]
      %s410 = sadd.s32 %s169, 4
      %s411 = smul.u32 %s410, 8
      %s412 = smul.addr %s411, 4
      %s413 = scalar_lea.vmem %s1, %s412
      %v414 = vld [vmem:[%s413] sm:$0xf]
      %v415 = vld [vmem:[%s413 + $0x4] sm:$0xf]
      %v416 = vld [vmem:[%s413 + $0x8] sm:$0xf]
      %v417 = vld [vmem:[%s413 + $0xc] sm:$0xf]
      %v418 = vld [vmem:[%s413 + $0x10] sm:$0xf]
      %v419 = vld [vmem:[%s413 + $0x14] sm:$0xf]
      %v420 = vld [vmem:[%s413 + $0x18] sm:$0xf]
      %v421 = vld [vmem:[%s413 + $0x1c] sm:$0xf]
      %v423 = vunpack.c.l.b16 %v409
      %v424 = vpack.c.b16 %v423, %v423
      %v425 = vrot.slane %v424, 2
      %v434 = vunpack.c.l.b16 %v414
      %v435 = vunpack.c.l.b16 %v415
      %v436 = vunpack.c.l.b16 %v416
      %v437 = vunpack.c.l.b16 %v417
      %v438 = vunpack.c.l.b16 %v418
      %v439 = vunpack.c.l.b16 %v419
      %v440 = vunpack.c.l.b16 %v420
      %v441 = vunpack.c.l.b16 %v421
      %v442 = vpack.c.b16 %v435, %v434
      %v443 = vpack.c.b16 %v437, %v436
      %v444 = vpack.c.b16 %v439, %v438
      %v445 = vpack.c.b16 %v441, %v440
      %v451 = vsel %vm229, %v425, 0
      %453 = vmatpush.bf16.msra.mxu0 0
      %454 = vmatpush.bf16.msra.mxu0 0
      %455 = vmatpush.bf16.msra.mxu0 0
      %456 = vmatpush.bf16.msra.mxu0 0
      %457 = vmatpush.bf16.msra.mxu0 %v445
      %458 = vmatpush.bf16.msra.mxu0 %v444
      %459 = vmatpush.bf16.msra.mxu0 %v443
      %460 = vmatpush.bf16.msra.mxu0 %v442
      %461 = vmatmul.bf16.gmra.mxu0 %v451
      %v462 = vpop.f32.mrf.mxu0
      %v463 = vadd.f32 0.0, %v462
      %v464 = vpop.f32.mrf.mxu0
      %465 = vdwg.mxu0
      %v466 = vadd.f32 %v408, %v463
      %v467 = vld [vmem:[%s163] sm:$0xc]
      %v468 = vld [vmem:[%s163 + $0x4] sm:$0x1]
      %s469 = sadd.s32 %s169, 5
      %s470 = smul.u32 %s469, 8
      %s471 = smul.addr %s470, 4
      %s472 = scalar_lea.vmem %s1, %s471
      %v473 = vld [vmem:[%s472] sm:$0xf]
      %v474 = vld [vmem:[%s472 + $0x4] sm:$0xf]
      %v475 = vld [vmem:[%s472 + $0x8] sm:$0xf]
      %v476 = vld [vmem:[%s472 + $0xc] sm:$0xf]
      %v477 = vld [vmem:[%s472 + $0x10] sm:$0xf]
      %v478 = vld [vmem:[%s472 + $0x14] sm:$0xf]
      %v479 = vld [vmem:[%s472 + $0x18] sm:$0xf]
      %v480 = vld [vmem:[%s472 + $0x1c] sm:$0xf]
      %v483 = vunpack.c.l.b16 %v467
      %v484 = vunpack.c.l.b16 %v468
      %v485 = vpack.c.b16 %v484, %v483
      %v487 = vshrl.u32 %v485, 16
      %v489 = vrot.slane %v487, 2
      %v490 = vshll.u32 %v485, 16
      %v492 = vrot.slane %v490, 3
      %v493 = vor.u32 %v489, %v492
      %v502 = vunpack.c.l.b16 %v473
      %v503 = vunpack.c.l.b16 %v474
      %v504 = vunpack.c.l.b16 %v475
      %v505 = vunpack.c.l.b16 %v476
      %v506 = vunpack.c.l.b16 %v477
      %v507 = vunpack.c.l.b16 %v478
      %v508 = vunpack.c.l.b16 %v479
      %v509 = vunpack.c.l.b16 %v480
      %v510 = vpack.c.b16 %v503, %v502
      %v511 = vpack.c.b16 %v505, %v504
      %v512 = vpack.c.b16 %v507, %v506
      %v513 = vpack.c.b16 %v509, %v508
      %v519 = vsel %vm229, %v493, 0
      %521 = vmatpush.bf16.msra.mxu0 0
      %522 = vmatpush.bf16.msra.mxu0 0
      %523 = vmatpush.bf16.msra.mxu0 0
      %524 = vmatpush.bf16.msra.mxu0 0
      %525 = vmatpush.bf16.msra.mxu0 %v513
      %526 = vmatpush.bf16.msra.mxu0 %v512
      %527 = vmatpush.bf16.msra.mxu0 %v511
      %528 = vmatpush.bf16.msra.mxu0 %v510
      %529 = vmatmul.bf16.gmra.mxu0 %v519
      %v530 = vpop.f32.mrf.mxu0
      %v531 = vadd.f32 0.0, %v530
      %v532 = vpop.f32.mrf.mxu0
      %533 = vdwg.mxu0
      %v534 = vadd.f32 %v466, %v531
      %v535 = vld [vmem:[%s163] sm:$0x8]
      %s536 = sadd.s32 %s169, 6
      %s537 = smul.u32 %s536, 8
      %s538 = smul.addr %s537, 4
      %s539 = scalar_lea.vmem %s1, %s538
      %v540 = vld [vmem:[%s539] sm:$0xf]
      %v541 = vld [vmem:[%s539 + $0x4] sm:$0xf]
      %v542 = vld [vmem:[%s539 + $0x8] sm:$0xf]
      %v543 = vld [vmem:[%s539 + $0xc] sm:$0xf]
      %v544 = vld [vmem:[%s539 + $0x10] sm:$0xf]
      %v545 = vld [vmem:[%s539 + $0x14] sm:$0xf]
      %v546 = vld [vmem:[%s539 + $0x18] sm:$0xf]
      %v547 = vld [vmem:[%s539 + $0x1c] sm:$0xf]
      %v549 = vunpack.c.l.b16 %v535
      %v550 = vpack.c.b16 %v484, %v549
      %v551 = vrot.slane %v550, 3
      %v560 = vunpack.c.l.b16 %v540
      %v561 = vunpack.c.l.b16 %v541
      %v562 = vunpack.c.l.b16 %v542
      %v563 = vunpack.c.l.b16 %v543
      %v564 = vunpack.c.l.b16 %v544
      %v565 = vunpack.c.l.b16 %v545
      %v566 = vunpack.c.l.b16 %v546
      %v567 = vunpack.c.l.b16 %v547
      %v568 = vpack.c.b16 %v561, %v560
      %v569 = vpack.c.b16 %v563, %v562
      %v570 = vpack.c.b16 %v565, %v564
      %v571 = vpack.c.b16 %v567, %v566
      %v577 = vsel %vm229, %v551, 0
      %579 = vmatpush.bf16.msra.mxu0 0
      %580 = vmatpush.bf16.msra.mxu0 0
      %581 = vmatpush.bf16.msra.mxu0 0
      %582 = vmatpush.bf16.msra.mxu0 0
      %583 = vmatpush.bf16.msra.mxu0 %v571
      %584 = vmatpush.bf16.msra.mxu0 %v570
      %585 = vmatpush.bf16.msra.mxu0 %v569
      %586 = vmatpush.bf16.msra.mxu0 %v568
      %587 = vmatmul.bf16.gmra.mxu0 %v577
      %v588 = vpop.f32.mrf.mxu0
      %v589 = vadd.f32 0.0, %v588
      %v590 = vpop.f32.mrf.mxu0
      %591 = vdwg.mxu0
      %v592 = vadd.f32 %v534, %v589
      %v593 = vld [vmem:[%s163 + $0x4] sm:$0x3]
      %s594 = sadd.s32 %s169, 7
      %s595 = smul.u32 %s594, 8
      %s596 = smul.addr %s595, 4
      %s597 = scalar_lea.vmem %s1, %s596
      %v598 = vld [vmem:[%s597] sm:$0xf]
      %v599 = vld [vmem:[%s597 + $0x4] sm:$0xf]
      %v600 = vld [vmem:[%s597 + $0x8] sm:$0xf]
      %v601 = vld [vmem:[%s597 + $0xc] sm:$0xf]
      %v602 = vld [vmem:[%s597 + $0x10] sm:$0xf]
      %v603 = vld [vmem:[%s597 + $0x14] sm:$0xf]
      %v604 = vld [vmem:[%s597 + $0x18] sm:$0xf]
      %v605 = vld [vmem:[%s597 + $0x1c] sm:$0xf]
      %v607 = vunpack.c.l.b16 %v593
      %v608 = vpack.c.b16 %v607, %v549
      %v610 = vshrl.u32 %v608, 16
      %v612 = vrot.slane %v610, 3
      %v613 = vshll.u32 %v608, 16
      %v615 = vrot.slane %v613, 4
      %v616 = vor.u32 %v612, %v615
      %v625 = vunpack.c.l.b16 %v598
      %v626 = vunpack.c.l.b16 %v599
      %v627 = vunpack.c.l.b16 %v600
      %v628 = vunpack.c.l.b16 %v601
      %v629 = vunpack.c.l.b16 %v602
      %v630 = vunpack.c.l.b16 %v603
      %v631 = vunpack.c.l.b16 %v604
      %v632 = vunpack.c.l.b16 %v605
      %v633 = vpack.c.b16 %v626, %v625
      %v634 = vpack.c.b16 %v628, %v627
      %v635 = vpack.c.b16 %v630, %v629
      %v636 = vpack.c.b16 %v632, %v631
      %v642 = vsel %vm229, %v616, 0
      %644 = vmatpush.bf16.msra.mxu0 0
      %645 = vmatpush.bf16.msra.mxu0 0
      %646 = vmatpush.bf16.msra.mxu0 0
      %647 = vmatpush.bf16.msra.mxu0 0
      %648 = vmatpush.bf16.msra.mxu0 %v636
      %649 = vmatpush.bf16.msra.mxu0 %v635
      %650 = vmatpush.bf16.msra.mxu0 %v634
      %651 = vmatpush.bf16.msra.mxu0 %v633
      %652 = vmatmul.bf16.gmra.mxu0 %v642
      %v653 = vpop.f32.mrf.mxu0
      %v654 = vadd.f32 0.0, %v653
      %v655 = vpop.f32.mrf.mxu0
      %656 = vdwg.mxu0
      %v657 = vadd.f32 %v592, %v654
      %s658 = sadd.s32 %s169, 8
      %s659 = smul.u32 %s658, 8
      %s660 = smul.addr %s659, 4
      %s661 = scalar_lea.vmem %s1, %s660
      %v662 = vld [vmem:[%s661] sm:$0xf]
      %v663 = vld [vmem:[%s661 + $0x4] sm:$0xf]
      %v664 = vld [vmem:[%s661 + $0x8] sm:$0xf]
      %v665 = vld [vmem:[%s661 + $0xc] sm:$0xf]
      %v666 = vld [vmem:[%s661 + $0x10] sm:$0xf]
      %v667 = vld [vmem:[%s661 + $0x14] sm:$0xf]
      %v668 = vld [vmem:[%s661 + $0x18] sm:$0xf]
      %v669 = vld [vmem:[%s661 + $0x1c] sm:$0xf]
      %v678 = vunpack.c.l.b16 %v662
      %v679 = vunpack.c.l.b16 %v663
      %v680 = vunpack.c.l.b16 %v664
      %v681 = vunpack.c.l.b16 %v665
      %v682 = vunpack.c.l.b16 %v666
      %v683 = vunpack.c.l.b16 %v667
      %v684 = vunpack.c.l.b16 %v668
      %v685 = vunpack.c.l.b16 %v669
      %v686 = vpack.c.b16 %v679, %v678
      %v687 = vpack.c.b16 %v681, %v680
      %v688 = vpack.c.b16 %v683, %v682
      %v689 = vpack.c.b16 %v685, %v684
      %v695 = vsel %vm229, %v593, 0
      %697 = vmatpush.bf16.msra.mxu0 0
      %698 = vmatpush.bf16.msra.mxu0 0
      %699 = vmatpush.bf16.msra.mxu0 0
      %700 = vmatpush.bf16.msra.mxu0 0
      %701 = vmatpush.bf16.msra.mxu0 %v689
      %702 = vmatpush.bf16.msra.mxu0 %v688
      %703 = vmatpush.bf16.msra.mxu0 %v687
      %704 = vmatpush.bf16.msra.mxu0 %v686
      %705 = vmatmul.bf16.gmra.mxu0 %v695
      %v706 = vpop.f32.mrf.mxu0
      %v707 = vadd.f32 0.0, %v706
      %v708 = vpop.f32.mrf.mxu0
      %709 = vdwg.mxu0
      %v710 = vadd.f32 %v657, %v707
      %v711 = vld [vmem:[%s163 + $0x4] sm:$0x7]
      %s712 = sadd.s32 %s169, 9
      %s713 = smul.u32 %s712, 8
      %s714 = smul.addr %s713, 4
      %s715 = scalar_lea.vmem %s1, %s714
      %v716 = vld [vmem:[%s715] sm:$0xf]
      %v717 = vld [vmem:[%s715 + $0x4] sm:$0xf]
      %v718 = vld [vmem:[%s715 + $0x8] sm:$0xf]
      %v719 = vld [vmem:[%s715 + $0xc] sm:$0xf]
      %v720 = vld [vmem:[%s715 + $0x10] sm:$0xf]
      %v721 = vld [vmem:[%s715 + $0x14] sm:$0xf]
      %v722 = vld [vmem:[%s715 + $0x18] sm:$0xf]
      %v723 = vld [vmem:[%s715 + $0x1c] sm:$0xf]
      %v725 = vunpack.c.l.b16 %v711
      %v726 = vpack.c.b16 %v725, %v725
      %v728 = vshrl.u32 %v726, 16
      %v730 = vshll.u32 %v726, 16
      %v732 = vrot.slane %v730, 1
      %v733 = vor.u32 %v728, %v732
      %v742 = vunpack.c.l.b16 %v716
      %v743 = vunpack.c.l.b16 %v717
      %v744 = vunpack.c.l.b16 %v718
      %v745 = vunpack.c.l.b16 %v719
      %v746 = vunpack.c.l.b16 %v720
      %v747 = vunpack.c.l.b16 %v721
      %v748 = vunpack.c.l.b16 %v722
      %v749 = vunpack.c.l.b16 %v723
      %v750 = vpack.c.b16 %v743, %v742
      %v751 = vpack.c.b16 %v745, %v744
      %v752 = vpack.c.b16 %v747, %v746
      %v753 = vpack.c.b16 %v749, %v748
      %v759 = vsel %vm229, %v733, 0
      %761 = vmatpush.bf16.msra.mxu0 0
      %762 = vmatpush.bf16.msra.mxu0 0
      %763 = vmatpush.bf16.msra.mxu0 0
      %764 = vmatpush.bf16.msra.mxu0 0
      %765 = vmatpush.bf16.msra.mxu0 %v753
      %766 = vmatpush.bf16.msra.mxu0 %v752
      %767 = vmatpush.bf16.msra.mxu0 %v751
      %768 = vmatpush.bf16.msra.mxu0 %v750
      %769 = vmatmul.bf16.gmra.mxu0 %v759
      %v770 = vpop.f32.mrf.mxu0
      %v771 = vadd.f32 0.0, %v770
      %v772 = vpop.f32.mrf.mxu0
      %773 = vdwg.mxu0
      %v774 = vadd.f32 %v710, %v771
      %v775 = vld [vmem:[%s163 + $0x4] sm:$0x6]
      %s776 = sadd.s32 %s169, 10
      %s777 = smul.u32 %s776, 8
      %s778 = smul.addr %s777, 4
      %s779 = scalar_lea.vmem %s1, %s778
      %v780 = vld [vmem:[%s779] sm:$0xf]
      %v781 = vld [vmem:[%s779 + $0x4] sm:$0xf]
      %v782 = vld [vmem:[%s779 + $0x8] sm:$0xf]
      %v783 = vld [vmem:[%s779 + $0xc] sm:$0xf]
      %v784 = vld [vmem:[%s779 + $0x10] sm:$0xf]
      %v785 = vld [vmem:[%s779 + $0x14] sm:$0xf]
      %v786 = vld [vmem:[%s779 + $0x18] sm:$0xf]
      %v787 = vld [vmem:[%s779 + $0x1c] sm:$0xf]
      %v789 = vunpack.c.l.b16 %v775
      %v790 = vpack.c.b16 %v789, %v789
      %v791 = vrot.slane %v790, 1
      %v800 = vunpack.c.l.b16 %v780
      %v801 = vunpack.c.l.b16 %v781
      %v802 = vunpack.c.l.b16 %v782
      %v803 = vunpack.c.l.b16 %v783
      %v804 = vunpack.c.l.b16 %v784
      %v805 = vunpack.c.l.b16 %v785
      %v806 = vunpack.c.l.b16 %v786
      %v807 = vunpack.c.l.b16 %v787
      %v808 = vpack.c.b16 %v801, %v800
      %v809 = vpack.c.b16 %v803, %v802
      %v810 = vpack.c.b16 %v805, %v804
      %v811 = vpack.c.b16 %v807, %v806
      %v817 = vsel %vm229, %v791, 0
      %819 = vmatpush.bf16.msra.mxu0 0
      %820 = vmatpush.bf16.msra.mxu0 0
      %821 = vmatpush.bf16.msra.mxu0 0
      %822 = vmatpush.bf16.msra.mxu0 0
      %823 = vmatpush.bf16.msra.mxu0 %v811
      %824 = vmatpush.bf16.msra.mxu0 %v810
      %825 = vmatpush.bf16.msra.mxu0 %v809
      %826 = vmatpush.bf16.msra.mxu0 %v808
      %827 = vmatmul.bf16.gmra.mxu0 %v817
      %v828 = vpop.f32.mrf.mxu0
      %v829 = vadd.f32 0.0, %v828
      %v830 = vpop.f32.mrf.mxu0
      %831 = vdwg.mxu0
      %v832 = vadd.f32 %v774, %v829
      %v833 = vld [vmem:[%s163 + $0x4] sm:$0xe]
      %s834 = sadd.s32 %s169, 11
      %s835 = smul.u32 %s834, 8
      %s836 = smul.addr %s835, 4
      %s837 = scalar_lea.vmem %s1, %s836
      %v838 = vld [vmem:[%s837] sm:$0xf]
      %v839 = vld [vmem:[%s837 + $0x4] sm:$0xf]
      %v840 = vld [vmem:[%s837 + $0x8] sm:$0xf]
      %v841 = vld [vmem:[%s837 + $0xc] sm:$0xf]
      %v842 = vld [vmem:[%s837 + $0x10] sm:$0xf]
      %v843 = vld [vmem:[%s837 + $0x14] sm:$0xf]
      %v844 = vld [vmem:[%s837 + $0x18] sm:$0xf]
      %v845 = vld [vmem:[%s837 + $0x1c] sm:$0xf]
      %v847 = vunpack.c.l.b16 %v833
      %v848 = vpack.c.b16 %v847, %v847
      %v850 = vshrl.u32 %v848, 16
      %v852 = vrot.slane %v850, 1
      %v853 = vshll.u32 %v848, 16
      %v855 = vrot.slane %v853, 2
      %v856 = vor.u32 %v852, %v855
      %v865 = vunpack.c.l.b16 %v838
      %v866 = vunpack.c.l.b16 %v839
      %v867 = vunpack.c.l.b16 %v840
      %v868 = vunpack.c.l.b16 %v841
      %v869 = vunpack.c.l.b16 %v842
      %v870 = vunpack.c.l.b16 %v843
      %v871 = vunpack.c.l.b16 %v844
      %v872 = vunpack.c.l.b16 %v845
      %v873 = vpack.c.b16 %v866, %v865
      %v874 = vpack.c.b16 %v868, %v867
      %v875 = vpack.c.b16 %v870, %v869
      %v876 = vpack.c.b16 %v872, %v871
      %v882 = vsel %vm229, %v856, 0
      %884 = vmatpush.bf16.msra.mxu0 0
      %885 = vmatpush.bf16.msra.mxu0 0
      %886 = vmatpush.bf16.msra.mxu0 0
      %887 = vmatpush.bf16.msra.mxu0 0
      %888 = vmatpush.bf16.msra.mxu0 %v876
      %889 = vmatpush.bf16.msra.mxu0 %v875
      %890 = vmatpush.bf16.msra.mxu0 %v874
      %891 = vmatpush.bf16.msra.mxu0 %v873
      %892 = vmatmul.bf16.gmra.mxu0 %v882
      %v893 = vpop.f32.mrf.mxu0
      %v894 = vadd.f32 0.0, %v893
      %v895 = vpop.f32.mrf.mxu0
      %896 = vdwg.mxu0
      %v897 = vadd.f32 %v832, %v894
      %v898 = vld [vmem:[%s163 + $0x4] sm:$0xc]
      %s899 = sadd.s32 %s169, 12
      %s900 = smul.u32 %s899, 8
      %s901 = smul.addr %s900, 4
      %s902 = scalar_lea.vmem %s1, %s901
      %v903 = vld [vmem:[%s902] sm:$0xf]
      %v904 = vld [vmem:[%s902 + $0x4] sm:$0xf]
      %v905 = vld [vmem:[%s902 + $0x8] sm:$0xf]
      %v906 = vld [vmem:[%s902 + $0xc] sm:$0xf]
      %v907 = vld [vmem:[%s902 + $0x10] sm:$0xf]
      %v908 = vld [vmem:[%s902 + $0x14] sm:$0xf]
      %v909 = vld [vmem:[%s902 + $0x18] sm:$0xf]
      %v910 = vld [vmem:[%s902 + $0x1c] sm:$0xf]
      %v912 = vunpack.c.l.b16 %v898
      %v913 = vpack.c.b16 %v912, %v912
      %v914 = vrot.slane %v913, 2
      %v923 = vunpack.c.l.b16 %v903
      %v924 = vunpack.c.l.b16 %v904
      %v925 = vunpack.c.l.b16 %v905
      %v926 = vunpack.c.l.b16 %v906
      %v927 = vunpack.c.l.b16 %v907
      %v928 = vunpack.c.l.b16 %v908
      %v929 = vunpack.c.l.b16 %v909
      %v930 = vunpack.c.l.b16 %v910
      %v931 = vpack.c.b16 %v924, %v923
      %v932 = vpack.c.b16 %v926, %v925
      %v933 = vpack.c.b16 %v928, %v927
      %v934 = vpack.c.b16 %v930, %v929
      %v940 = vsel %vm229, %v914, 0
      %942 = vmatpush.bf16.msra.mxu0 0
      %943 = vmatpush.bf16.msra.mxu0 0
      %944 = vmatpush.bf16.msra.mxu0 0
      %945 = vmatpush.bf16.msra.mxu0 0
      %946 = vmatpush.bf16.msra.mxu0 %v934
      %947 = vmatpush.bf16.msra.mxu0 %v933
      %948 = vmatpush.bf16.msra.mxu0 %v932
      %949 = vmatpush.bf16.msra.mxu0 %v931
      %950 = vmatmul.bf16.gmra.mxu0 %v940
      %v951 = vpop.f32.mrf.mxu0
      %v952 = vadd.f32 0.0, %v951
      %v953 = vpop.f32.mrf.mxu0
      %954 = vdwg.mxu0
      %v955 = vadd.f32 %v897, %v952
      %v956 = vld [vmem:[%s163 + $0x4] sm:$0xc]
      %v957 = vld [vmem:[%s163 + $0x8] sm:$0x1]
      %s958 = sadd.s32 %s169, 13
      %s959 = smul.u32 %s958, 8
      %s960 = smul.addr %s959, 4
      %s961 = scalar_lea.vmem %s1, %s960
      %v962 = vld [vmem:[%s961] sm:$0xf]
      %v963 = vld [vmem:[%s961 + $0x4] sm:$0xf]
      %v964 = vld [vmem:[%s961 + $0x8] sm:$0xf]
      %v965 = vld [vmem:[%s961 + $0xc] sm:$0xf]
      %v966 = vld [vmem:[%s961 + $0x10] sm:$0xf]
      %v967 = vld [vmem:[%s961 + $0x14] sm:$0xf]
      %v968 = vld [vmem:[%s961 + $0x18] sm:$0xf]
      %v969 = vld [vmem:[%s961 + $0x1c] sm:$0xf]
      %v972 = vunpack.c.l.b16 %v956
      %v973 = vunpack.c.l.b16 %v957
      %v974 = vpack.c.b16 %v973, %v972
      %v976 = vshrl.u32 %v974, 16
      %v978 = vrot.slane %v976, 2
      %v979 = vshll.u32 %v974, 16
      %v981 = vrot.slane %v979, 3
      %v982 = vor.u32 %v978, %v981
      %v991 = vunpack.c.l.b16 %v962
      %v992 = vunpack.c.l.b16 %v963
      %v993 = vunpack.c.l.b16 %v964
      %v994 = vunpack.c.l.b16 %v965
      %v995 = vunpack.c.l.b16 %v966
      %v996 = vunpack.c.l.b16 %v967
      %v997 = vunpack.c.l.b16 %v968
      %v998 = vunpack.c.l.b16 %v969
      %v999 = vpack.c.b16 %v992, %v991
      %v1000 = vpack.c.b16 %v994, %v993
      %v1001 = vpack.c.b16 %v996, %v995
      %v1002 = vpack.c.b16 %v998, %v997
      %v1008 = vsel %vm229, %v982, 0
      %1010 = vmatpush.bf16.msra.mxu0 0
      %1011 = vmatpush.bf16.msra.mxu0 0
      %1012 = vmatpush.bf16.msra.mxu0 0
      %1013 = vmatpush.bf16.msra.mxu0 0
      %1014 = vmatpush.bf16.msra.mxu0 %v1002
      %1015 = vmatpush.bf16.msra.mxu0 %v1001
      %1016 = vmatpush.bf16.msra.mxu0 %v1000
      %1017 = vmatpush.bf16.msra.mxu0 %v999
      %1018 = vmatmul.bf16.gmra.mxu0 %v1008
      %v1019 = vpop.f32.mrf.mxu0
      %v1020 = vadd.f32 0.0, %v1019
      %v1021 = vpop.f32.mrf.mxu0
      %1022 = vdwg.mxu0
      %v1023 = vadd.f32 %v955, %v1020
      %v1024 = vld [vmem:[%s163 + $0x4] sm:$0x8]
      %s1025 = sadd.s32 %s169, 14
      %s1026 = smul.u32 %s1025, 8
      %s1027 = smul.addr %s1026, 4
      %s1028 = scalar_lea.vmem %s1, %s1027
      %v1029 = vld [vmem:[%s1028] sm:$0xf]
      %v1030 = vld [vmem:[%s1028 + $0x4] sm:$0xf]
      %v1031 = vld [vmem:[%s1028 + $0x8] sm:$0xf]
      %v1032 = vld [vmem:[%s1028 + $0xc] sm:$0xf]
      %v1033 = vld [vmem:[%s1028 + $0x10] sm:$0xf]
      %v1034 = vld [vmem:[%s1028 + $0x14] sm:$0xf]
      %v1035 = vld [vmem:[%s1028 + $0x18] sm:$0xf]
      %v1036 = vld [vmem:[%s1028 + $0x1c] sm:$0xf]
      %v1038 = vunpack.c.l.b16 %v1024
      %v1039 = vpack.c.b16 %v973, %v1038
      %v1040 = vrot.slane %v1039, 3
      %v1049 = vunpack.c.l.b16 %v1029
      %v1050 = vunpack.c.l.b16 %v1030
      %v1051 = vunpack.c.l.b16 %v1031
      %v1052 = vunpack.c.l.b16 %v1032
      %v1053 = vunpack.c.l.b16 %v1033
      %v1054 = vunpack.c.l.b16 %v1034
      %v1055 = vunpack.c.l.b16 %v1035
      %v1056 = vunpack.c.l.b16 %v1036
      %v1057 = vpack.c.b16 %v1050, %v1049
      %v1058 = vpack.c.b16 %v1052, %v1051
      %v1059 = vpack.c.b16 %v1054, %v1053
      %v1060 = vpack.c.b16 %v1056, %v1055
      %v1066 = vsel %vm229, %v1040, 0
      %1068 = vmatpush.bf16.msra.mxu0 0
      %1069 = vmatpush.bf16.msra.mxu0 0
      %1070 = vmatpush.bf16.msra.mxu0 0
      %1071 = vmatpush.bf16.msra.mxu0 0
      %1072 = vmatpush.bf16.msra.mxu0 %v1060
      %1073 = vmatpush.bf16.msra.mxu0 %v1059
      %1074 = vmatpush.bf16.msra.mxu0 %v1058
      %1075 = vmatpush.bf16.msra.mxu0 %v1057
      %1076 = vmatmul.bf16.gmra.mxu0 %v1066
      %v1077 = vpop.f32.mrf.mxu0
      %v1078 = vadd.f32 0.0, %v1077
      %v1079 = vpop.f32.mrf.mxu0
      %1080 = vdwg.mxu0
      %v1081 = vadd.f32 %v1023, %v1078
      %v1082 = vld [vmem:[%s163 + $0x8] sm:$0x3]
      %s1083 = sadd.s32 %s169, 15
      %s1084 = smul.u32 %s1083, 8
      %s1085 = smul.addr %s1084, 4
      %s1086 = scalar_lea.vmem %s1, %s1085
      %v1087 = vld [vmem:[%s1086] sm:$0xf]
      %v1088 = vld [vmem:[%s1086 + $0x4] sm:$0xf]
      %v1089 = vld [vmem:[%s1086 + $0x8] sm:$0xf]
      %v1090 = vld [vmem:[%s1086 + $0xc] sm:$0xf]
      %v1091 = vld [vmem:[%s1086 + $0x10] sm:$0xf]
      %v1092 = vld [vmem:[%s1086 + $0x14] sm:$0xf]
      %v1093 = vld [vmem:[%s1086 + $0x18] sm:$0xf]
      %v1094 = vld [vmem:[%s1086 + $0x1c] sm:$0xf]
      %v1096 = vunpack.c.l.b16 %v1082
      %v1097 = vpack.c.b16 %v1096, %v1038
      %v1099 = vshrl.u32 %v1097, 16
      %v1101 = vrot.slane %v1099, 3
      %v1102 = vshll.u32 %v1097, 16
      %v1104 = vrot.slane %v1102, 4
      %v1105 = vor.u32 %v1101, %v1104
      %v1114 = vunpack.c.l.b16 %v1087
      %v1115 = vunpack.c.l.b16 %v1088
      %v1116 = vunpack.c.l.b16 %v1089
      %v1117 = vunpack.c.l.b16 %v1090
      %v1118 = vunpack.c.l.b16 %v1091
      %v1119 = vunpack.c.l.b16 %v1092
      %v1120 = vunpack.c.l.b16 %v1093
      %v1121 = vunpack.c.l.b16 %v1094
      %v1122 = vpack.c.b16 %v1115, %v1114
      %v1123 = vpack.c.b16 %v1117, %v1116
      %v1124 = vpack.c.b16 %v1119, %v1118
      %v1125 = vpack.c.b16 %v1121, %v1120
      %v1131 = vsel %vm229, %v1105, 0
      %1133 = vmatpush.bf16.msra.mxu0 0
      %1134 = vmatpush.bf16.msra.mxu0 0
      %1135 = vmatpush.bf16.msra.mxu0 0
      %1136 = vmatpush.bf16.msra.mxu0 0
      %1137 = vmatpush.bf16.msra.mxu0 %v1125
      %1138 = vmatpush.bf16.msra.mxu0 %v1124
      %1139 = vmatpush.bf16.msra.mxu0 %v1123
      %1140 = vmatpush.bf16.msra.mxu0 %v1122
      %1141 = vmatmul.bf16.gmra.mxu0 %v1131
      %v1142 = vpop.f32.mrf.mxu0
      %v1143 = vadd.f32 0.0, %v1142
      %v1144 = vpop.f32.mrf.mxu0
      %1145 = vdwg.mxu0
      %v1146 = vadd.f32 %v1081, %v1143
      %p1147 = scmp.eq.s32.totalorder %s18, 0
      // Predicated region
      $region29: #{discriminator_forward.9} parent=27 // pred_check
        %p1148 = pneg %p1147
      $region30: #{discriminator_forward.9} parent=27 // pred_check_branch
        %1150 = sbr.rel (%p1148) target = $region32
      $region31: #{discriminator_forward.9} parent=27 // pred_region
        %vm1151 = vcmask 60416
        %1152 = vst.msk [vmem:[%s167] sm:$0xf] %vm1151, %v1146
      $region32: #{discriminator_forward.9} parent=27 // pred_fallthru
        _
      %p1153 = scmp.lt.s32.totalorder %s17, 1
      %s1154 = scalar_select %p1153, %s17, 1
      %s1155 = smul.addr %s1154, 4
      %s1156 = scalar_lea.vmem %s2, %s1155
      // Predicated region
      $region33: #{discriminator_forward.9} parent=27 // pred_check
        %p1157 = pneg %p92
      $region34: #{discriminator_forward.9} parent=27 // pred_check_branch
        %1159 = sbr.rel (%p1157) target = $region36
      $region35: #{discriminator_forward.9} parent=27 // pred_region
        _
      $region36: #{discriminator_forward.9} parent=27 // pred_fallthru
        _
    $region28: #{discriminator_forward.9} parent=5 // pred_fallthru
      _
    %p1160 = scmp.le.s32.totalorder 2, %s8
    // Predicated region
    $region37: #{discriminator_forward.9} parent=5 // pred_check
      %p1161 = pneg %p1160
    $region38: #{discriminator_forward.9} parent=5 // pred_check_branch
      %1163 = sbr.rel (%p1161) target = $region40
    $region39: #{discriminator_forward.9} parent=5 // pred_region
      %s1164 = ssub.s32 %s8, 2
      // Predicated region
      $region41: #{discriminator_forward.9} parent=39 // pred_check
        %p1165 = pneg %p98
      $region42: #{discriminator_forward.9} parent=39 // pred_check_branch
        %1167 = sbr.rel (%p1165) target = $region44
      $region43: #{discriminator_forward.9} parent=39 // pred_region
        %p1168 = scmp.lt.s32.totalorder %s19, 1
        %s1169 = scalar_select %p1168, %s19, 1
        %s1170 = smul.addr %s1169, 4
        %s1171 = scalar_lea.vmem %s2, %s1170
      $region44: #{discriminator_forward.9} parent=39 // pred_fallthru
        _
    $region40: #{discriminator_forward.9} parent=5 // pred_fallthru
      _
  $region6: #{discriminator_forward.9} parent=0 // loop_footer
    %s12 = sadd.s32 1, %s8
  $region7: #{discriminator_forward.9} parent=0 // loop_footer_branch
    %7 = sbr.rel target = $region3
  $region8: #{discriminator_forward.9} parent=0 // loop_exit
    _

</llo_original>
